<compile_context>
chip_gen: v7x
topology: tpu7x:2x2x1
jax: 0.10.0
libtpu: 0.0.40
codegen_flags: <defaults>
</compile_context>

<pallas_src>
import jax
import jax.numpy as jnp
from jax.experimental import pallas as pl
from jax.experimental.pallas import tpu as pltpu


def _add_pos_kernel(x_ref, pos_ref, o_ref):
    # (B, tn, C) + (1, tn, C) -> (B, tn, C); batch broadcast done in-register.
    o_ref[...] = x_ref[...] + pos_ref[...]


def _sublane_quantum(dtype):
    """Minimum second-minor tile multiple for this dtype (8/16/32)."""
    itemsize = jnp.dtype(dtype).itemsize
    return max(8, 32 // itemsize)


def _vmem_budget_bytes():
    """Generation-aware budget for the double-buffered working set."""
    try:
        phys = pltpu.get_tpu_info().vmem_capacity_bytes
    except Exception:  # interpret mode / older jax: be conservative (v7x per-TC)
        phys = 64 * 1024 * 1024
    # Use <= ~40% of physical VMEM, and never more than 28 MiB so the scoped
    # limit we request below stays comfortable on every generation.
    return min(int(phys * 0.4), 28 * 1024 * 1024)


def _pick_tn(B, N, C, dtype, vmem_budget_bytes, min_steps=4):
    """Largest token tile that (a) divides N, (b) is a multiple of the sublane
    quantum, (c) fits the double-buffered VMEM budget, preferring >= min_steps
    grid steps so megacore sharding + per-core pipelining both stay alive."""
    itemsize = jnp.dtype(dtype).itemsize
    sub = _sublane_quantum(dtype)

    cands = [t for t in range(sub, N + 1, sub) if N % t == 0]
    if not cands:          # N smaller than the sublane quantum: single block
        cands = [N]

    def db_bytes(t):
        # double-buffered: (x tile + pos tile + out tile) * 2
        return 2 * (B * t * C + t * C + B * t * C) * itemsize

    fitting = [t for t in cands if db_bytes(t) <= vmem_budget_bytes]
    if not fitting:
        return cands[0]    # smallest legal tile; vmem_limit override covers it

    preferred = [t for t in fitting if N // t >= min_steps]
    return max(preferred) if preferred else max(fitting)


def learned_positional_encoding_3d(x, position_embeddings, *, tn=None):
    """out = x + position_embeddings, position_embeddings of shape (1, N, C)."""
    B, N, C = x.shape
    assert position_embeddings.shape == (1, N, C)
    assert position_embeddings.dtype == x.dtype

    itemsize = jnp.dtype(x.dtype).itemsize
    if tn is None:
        tn = _pick_tn(B, N, C, x.dtype, _vmem_budget_bytes())
    assert N % tn == 0, f"token tile {tn} must divide N={N}"

    # Double-buffered footprint of one grid step; request scoped VMEM to match
    # (>= 32 MiB so v5e's 16 MiB default does not block tn=1024, capped at
    # 48 MiB to stay well inside v7x's 64 MiB physical VMEM).
    db_footprint = 2 * (2 * B * tn * C + tn * C) * itemsize
    vmem_limit = int(min(48 << 20, max(32 << 20, db_footprint + (8 << 20))))

    cost = pl.CostEstimate(
        flops=B * N * C,
        transcendentals=0,
        bytes_accessed=(2 * B * N * C + N * C) * itemsize,
    )

    grid = (N // tn,)
    return pl.pallas_call(
        _add_pos_kernel,
        out_shape=jax.ShapeDtypeStruct((B, N, C), x.dtype),
        grid=grid,
        in_specs=[
            # x tile: all batch rows, tn tokens, full (lane-dense) embed dim.
            pl.BlockSpec((B, tn, C), lambda n: (0, n, 0)),
            # position embeddings: same token tile, read once per tile total.
            pl.BlockSpec((1, tn, C), lambda n: (0, n, 0)),
        ],
        out_specs=pl.BlockSpec((B, tn, C), lambda n: (0, n, 0)),
        # Reuse x's HBM buffer for the output (realized when caller donates x).
        input_output_aliases={0: 0},
        compiler_params=pltpu.CompilerParams(
            dimension_semantics=("parallel",),
            vmem_limit_bytes=vmem_limit,
        ),
        cost_estimate=cost,
    )(x, position_embeddings)


if __name__ == "__main__":
    # Module fixes the parameter shape at (1, 4096, 512); use a small batch.
    B, N, C = 2, 4096, 512

    key = jax.random.PRNGKey(0)
    kx, kp = jax.random.split(key)
    x = jax.random.normal(kx, (B, N, C), dtype=jnp.float32)
    # Deterministic synthetic parameter (original module inits to zeros).
    position_embeddings = jax.random.normal(kp, (1, N, C), dtype=jnp.float32)

    # Pure-JAX reference of the PyTorch forward — computed and materialized
    # BEFORE the donated kernel call, since x's buffer is invalidated by it.
    ref = jax.block_until_ready(x + position_embeddings)

    # jit + donate x so input_output_aliases={0:0} is actually realized
    # (no defensive copy of x).
    fwd = jax.jit(learned_positional_encoding_3d, donate_argnums=(0,))
    out = jax.block_until_ready(fwd(x, position_embeddings))
    del x  # donated; do not touch after the call

    assert out.shape == (B, N, C)
    assert out.dtype == ref.dtype
    assert jnp.allclose(out, ref, atol=1e-6, rtol=1e-6)

    print("KERNEL_OK")
</pallas_src>

<mosaic_0001>
module attributes {stable_mosaic.version = 11 : i64} {
  func.func @_add_pos_kernel(%arg0: i32, %arg1: memref<2x1024x512xf32, #tpu.memory_space<vmem>>, %arg2: memref<1x1024x512xf32, #tpu.memory_space<vmem>>, %arg3: memref<2x1024x512xf32, #tpu.memory_space<vmem>>) attributes {dimension_semantics = [#tpu.dimension_semantics<parallel>], iteration_bounds = array<i64: 4>, scalar_prefetch = 0 : i64, scratch_operands = 0 : i64, tpu.core_type = #tpu.core_type<tc>, window_params = [{transform_indices = @transform_0, window_bounds = array<i64: 2, 1024, 512>}, {transform_indices = @transform_1, window_bounds = array<i64: 1, 1024, 512>}, {transform_indices = @transform_2, window_bounds = array<i64: 2, 1024, 512>}]} {
    %c0 = arith.constant 0 : index
    %c0_0 = arith.constant 0 : index
    %c0_1 = arith.constant 0 : index
    %0 = vector.load %arg1[%c0, %c0_0, %c0_1] : memref<2x1024x512xf32, #tpu.memory_space<vmem>>, vector<2x1024x512xf32>
    %c0_2 = arith.constant 0 : index
    %c0_3 = arith.constant 0 : index
    %c0_4 = arith.constant 0 : index
    %1 = vector.load %arg2[%c0_2, %c0_3, %c0_4] : memref<1x1024x512xf32, #tpu.memory_space<vmem>>, vector<1x1024x512xf32>
    %2 = vector.broadcast %1 : vector<1x1024x512xf32> to vector<2x1024x512xf32>
    %3 = arith.addf %0, %2 : vector<2x1024x512xf32>
    %c0_5 = arith.constant 0 : index
    %c0_6 = arith.constant 0 : index
    %c0_7 = arith.constant 0 : index
    %4 = vector.load %arg3[%c0_5, %c0_6, %c0_7] : memref<2x1024x512xf32, #tpu.memory_space<vmem>>, vector<2x1024x512xf32>
    tpu.vector_store %arg3[%c0_5, %c0_6, %c0_7], %3 {strides = array<i32>} : memref<2x1024x512xf32, #tpu.memory_space<vmem>>, vector<2x1024x512xf32>,
    return
  }
  func.func @transform_0(%arg0: i32) -> (i32, i32, i32) {
    %c0_i32 = arith.constant 0 : i32
    %c0_i32_0 = arith.constant 0 : i32
    %c0_i32_1 = arith.constant 0 : i32
    return %c0_i32, %arg0, %c0_i32_0 : i32, i32, i32
  }
  func.func @transform_1(%arg0: i32) -> (i32, i32, i32) {
    %c0_i32 = arith.constant 0 : i32
    %c0_i32_0 = arith.constant 0 : i32
    %c0_i32_1 = arith.constant 0 : i32
    return %c0_i32, %arg0, %c0_i32_0 : i32, i32, i32
  }
  func.func @transform_2(%arg0: i32) -> (i32, i32, i32) {
    %c0_i32 = arith.constant 0 : i32
    %c0_i32_0 = arith.constant 0 : i32
    %c0_i32_1 = arith.constant 0 : i32
    return %c0_i32, %arg0, %c0_i32_0 : i32, i32, i32
  }
}

</mosaic_0001>

<llo_original>
// kernel: learned_positional_encoding_3d.1
$region0: #{learned_positional_encoding_3d.1}
  #allocation0 [shape = 'u32[]', space=smem, size = 0x4, offset = 0x4, fixed_abs, tag = 'smem constant byte address 0x4 - core index']
  #allocation1 [shape = 'u32[144,128]{1,0:T(1,128)}', space=vmem, size = 0x12000, scoped, tag = 'internal scratch']
  #allocation8 [shape = 's32[]', space=sflag, size = 0x4, offset = 0, fixed_abs, tag = 'sflag constant byte address 0x0 - dummy sync flag']
  #allocation10 [shape = 's32[]', space=sflag, size = 0x4, offset = 0, fixed_abs, tag = 'sflag constant byte address 0x0 - dummy sync flag']
  %s0 = inlined_call_operand.hbm [shape: f32[2,4096,512], index: 0, kind: input, shape index: {}, may-alias: {0,2}]
  %s1 = inlined_call_operand.hbm [shape: f32[1,4096,512], index: 1, kind: input, shape index: {}]
  %s2 = inlined_call_operand.hbm [shape: f32[2,4096,512], index: 2, kind: output, shape index: {}, may-alias: {0,2}]
  %s3 = sld [smem:[#allocation0]]
  $region49: #{learned_positional_encoding_3d.1} parent=0
    _
  %s5 = ssub.s32 1, %s3
  %s6 = scalar_select 0, %s5, %s3
  $region1: #{learned_positional_encoding_3d.1} parent=0
    #allocation2 [shape = 'u8[8388608]{0}', space=vmem, size = 0x800000, scoped, tag = 'input window, operand 0']
    #allocation3 [shape = 's32[2]{0}', space=sflag, size = 0x8, scoped, tag = 'scoped memory for learned_positional_encoding_3d.1']
    #allocation4 [shape = 's32[2]{0}', space=sflag, size = 0x8, scoped, tag = 'scoped memory for learned_positional_encoding_3d.1']
    #allocation5 [shape = 'u8[4194304]{0}', space=vmem, size = 0x400000, scoped, tag = 'input window, operand 1']
    #allocation6 [shape = 's32[2]{0}', space=sflag, size = 0x8, scoped, tag = 'scoped memory for learned_positional_encoding_3d.1']
    #allocation7 [shape = 'u8[8388608]{0}', space=vmem, size = 0x800000, scoped, tag = 'output window, operand 0']
    %7 = vsyncpa [#allocation3], 0
    %s8 = scalar_lea.sflag [#allocation3], 1
    %9 = vsyncpa %s8, 0
    %10 = vsyncpa [#allocation6], 0
    %s11 = scalar_lea.sflag [#allocation6], 1
    %12 = vsyncpa %s11, 0
    %13 = vsyncpa [#allocation4], 0
    %s14 = scalar_lea.sflag [#allocation4], 1
    %15 = vsyncpa %s14, 0
    loop: start=0, step=1, limit=6
    $region2: #{learned_positional_encoding_3d.1} parent=1 // loop_pre_header
      _
    $region3: #{learned_positional_encoding_3d.1} parent=1 // loop_header
      %s17 = sphi 0, %s21
      %p18 = scmp.ge.s32.totalorder %s17, 6
      %s27 = sphi 0, %s29
      %s30 = sphi 0, %s27
      %s31 = sphi 0, %s30
      %s47 = sphi 0, %s31
      %s53 = sphi 0, %s55
      %s56 = sphi 0, %s53
      %s57 = sphi 0, %s56
      %s73 = sphi 0, %s57
      %s79 = sphi 0, %s81
      %s82 = sphi 0, %s79
      %s83 = sphi 0, %s82
      %s99 = sphi 0, %s83
    $region4: #{learned_positional_encoding_3d.1} parent=1 // loop_header_branch
      %20 = sbr.rel (%p18) target = $region8
    $region5: #{learned_positional_encoding_3d.1} parent=1 // loop_body
      %s22 = ssub.s32 %s17, 1
      %s23 = ssub.s32 %s17, 2
      %s24 = sadd.s32 %s17, 1
      %s25 = ssub.s32 %s17, %s24
      %p26 = scmp.eq.s32.totalorder %s25, 0
      %s28 = sadd.s32 %s27, 1
      %s29 = scalar_select %p26, %s27, %s28
      %p32 = pneg %p26
      %p33 = scmp.eq.s32.totalorder %s17, 3
      %p34 = por %p32, %p33
      %p35 = scmp.ne.s32.totalorder %s27, %s30
      %p36 = scmp.eq.s32.totalorder %s17, 0
      %p37 = por %p35, %p36
      %p38 = scmp.ne.s32.totalorder %s27, %s30
      %p39 = scmp.eq.s32.totalorder %s22, 3
      %p40 = por %p38, %p39
      %p41 = scmp.ne.s32.totalorder %s30, %s31
      %p42 = scmp.eq.s32.totalorder %s22, 0
      %p43 = por %p41, %p42
      %p44 = scmp.ne.s32.totalorder %s30, %s31
      %p45 = scmp.eq.s32.totalorder %s23, 3
      %p46 = por %p44, %p45
      %p48 = scmp.ne.s32.totalorder %s31, %s47
      %p49 = scmp.eq.s32.totalorder %s23, 0
      %p50 = por %p48, %p49
      %s51 = ssub.s32 %s17, %s24
      %p52 = scmp.eq.s32.totalorder %s51, 0
      %s54 = sadd.s32 %s53, 1
      %s55 = scalar_select %p52, %s53, %s54
      %p58 = pneg %p52
      %p59 = scmp.eq.s32.totalorder %s17, 3
      %p60 = por %p58, %p59
      %p61 = scmp.ne.s32.totalorder %s53, %s56
      %p62 = scmp.eq.s32.totalorder %s17, 0
      %p63 = por %p61, %p62
      %p64 = scmp.ne.s32.totalorder %s53, %s56
      %p65 = scmp.eq.s32.totalorder %s22, 3
      %p66 = por %p64, %p65
      %p67 = scmp.ne.s32.totalorder %s56, %s57
      %p68 = scmp.eq.s32.totalorder %s22, 0
      %p69 = por %p67, %p68
      %p70 = scmp.ne.s32.totalorder %s56, %s57
      %p71 = scmp.eq.s32.totalorder %s23, 3
      %p72 = por %p70, %p71
      %p74 = scmp.ne.s32.totalorder %s57, %s73
      %p75 = scmp.eq.s32.totalorder %s23, 0
      %p76 = por %p74, %p75
      %s77 = ssub.s32 %s17, %s24
      %p78 = scmp.eq.s32.totalorder %s77, 0
      %s80 = sadd.s32 %s79, 1
      %s81 = scalar_select %p78, %s79, %s80
      %p84 = pneg %p78
      %p85 = scmp.eq.s32.totalorder %s17, 3
      %p86 = por %p84, %p85
      %p87 = scmp.ne.s32.totalorder %s79, %s82
      %p88 = scmp.eq.s32.totalorder %s17, 0
      %p89 = por %p87, %p88
      %p90 = scmp.ne.s32.totalorder %s79, %s82
      %p91 = scmp.eq.s32.totalorder %s22, 3
      %p92 = por %p90, %p91
      %p93 = scmp.ne.s32.totalorder %s82, %s83
      %p94 = scmp.eq.s32.totalorder %s22, 0
      %p95 = por %p93, %p94
      %p96 = scmp.ne.s32.totalorder %s82, %s83
      %p97 = scmp.eq.s32.totalorder %s23, 3
      %p98 = por %p96, %p97
      %p100 = scmp.ne.s32.totalorder %s83, %s99
      %p101 = scmp.eq.s32.totalorder %s23, 0
      %p102 = por %p100, %p101
      %p103 = scmp.le.s32.totalorder 1, %s17
      %p104 = scmp.lt.s32.totalorder %s17, 5
      %p105 = pnand %p103, %p104
      %p106 = pneg %p105
      // Predicated region
      $region9: #{learned_positional_encoding_3d.1} parent=5 // pred_check
        _
      $region10: #{learned_positional_encoding_3d.1} parent=5 // pred_check_branch
        %108 = sbr.rel (%p105) target = $region12
      $region11: #{learned_positional_encoding_3d.1} parent=5 // pred_region
        %s109 = ssub.s32 %s17, 1
      $region12: #{learned_positional_encoding_3d.1} parent=5 // pred_fallthru
        _
      %p110 = scmp.lt.s32.totalorder %s17, 4
      // Predicated region
      $region13: #{learned_positional_encoding_3d.1} parent=5 // pred_check
        %p111 = pneg %p110
      $region14: #{learned_positional_encoding_3d.1} parent=5 // pred_check_branch
        %113 = sbr.rel (%p111) target = $region16
      $region15: #{learned_positional_encoding_3d.1} parent=5 // pred_region
        // Predicated region
        $region17: #{learned_positional_encoding_3d.1} parent=15 // pred_check
          %p114 = pneg %p37
        $region18: #{learned_positional_encoding_3d.1} parent=15 // pred_check_branch
          %116 = sbr.rel (%p114) target = $region20
        $region19: #{learned_positional_encoding_3d.1} parent=15 // pred_region
          #allocation9 [shape = 'u32[6]{0}', space=smem, size = 0x18, scoped, tag = 'DMA stride descriptor']
          %s117 = sand.u32 %s27, 1
          %s118 = scalar_lea.sflag [#allocation3], %s117
          %s119 = sand.u32 %s27, 1
          %s120 = smul.addr %s119, 8192
          %s121 = scalar_lea.vmem [#allocation2], %s120
          %s122 = smul.u32 128, %s17
          %s124 = ssub.s32 131072, 131072
          %125 = vsyncadd %s118, %s124
          %s126 = smul.addr %s122, 4
          %s127 = smul.addr %s126, 128
          %s128 = scalar_lea.hbm %s0, %s127
          %s130 = sshll.u32 1, 14
          %s131 = sxor.u32 4294967295, %s130
          %s133 = sld [smem:[#allocation0]]
          %s134 = sadd.s32 2, %s133
          %s136 = sshll.u32 7, 26
          %s137 = sxor.u32 4294967295, %s136
          %s138 = sand.u32 0, %s137
          %s139 = sshll.u32 %s134, 26
          %s140 = sor.u32 %s138, %s139
          %s141 = sshll.u32 %s121, 4
          %s142 = int_to_ptr.vmem [resolvable:$true] %s141
          %148 = sst [smem:[#allocation9]] 262144
          %s149 = scalar_lea.smem [#allocation9], 1
          %150 = sst [smem:[%s149]] 65536
          %s151 = scalar_lea.smem [#allocation9], 2
          %152 = sst [smem:[%s151]] 128
          %s153 = scalar_lea.smem [#allocation9], 3
          %154 = sst [smem:[%s153]] 512
          %s155 = scalar_lea.smem [#allocation9], 4
          %156 = sst [smem:[%s155]] 512
          %s157 = scalar_lea.smem [#allocation9], 5
          %158 = sst [smem:[%s157]] 32
          %160 = dma.general %s128, 131072, %s142, %s118, [#allocation8], [#allocation9], %s140, 0
        $region20: #{learned_positional_encoding_3d.1} parent=15 // pred_fallthru
          _
        // Predicated region
        $region21: #{learned_positional_encoding_3d.1} parent=15 // pred_check
          %p161 = pneg %p63
        $region22: #{learned_positional_encoding_3d.1} parent=15 // pred_check_branch
          %163 = sbr.rel (%p161) target = $region24
        $region23: #{learned_positional_encoding_3d.1} parent=15 // pred_region
          %s164 = sand.u32 %s53, 1
          %s165 = scalar_lea.sflag [#allocation6], %s164
          %s166 = sand.u32 %s53, 1
          %s167 = smul.addr %s166, 4096
          %s168 = scalar_lea.vmem [#allocation5], %s167
          %s169 = smul.u32 128, %s17
          %s171 = ssub.s32 65536, 65536
          %172 = vsyncadd %s165, %s171
          %s173 = smul.addr %s169, 4
          %s174 = smul.addr %s173, 128
          %s175 = scalar_lea.hbm %s1, %s174
          %s176 = sshll.u32 %s168, 4
          %s177 = int_to_ptr.vmem [resolvable:$true] %s176
          %182 = dma.hbm_to_vmem [thread:$0]  %s175, 65536, %s177, %s165, 512, 512, 32
        $region24: #{learned_positional_encoding_3d.1} parent=15 // pred_fallthru
          _
      $region16: #{learned_positional_encoding_3d.1} parent=5 // pred_fallthru
        _
      %p183 = scmp.le.s32.totalorder 1, %s17
      %p184 = scmp.lt.s32.totalorder %s17, 5
      %p185 = pnand %p183, %p184
      %p186 = pneg %p185
      // Predicated region
      $region25: #{learned_positional_encoding_3d.1} parent=5 // pred_check
        _
      $region26: #{learned_positional_encoding_3d.1} parent=5 // pred_check_branch
        %188 = sbr.rel (%p185) target = $region28
      $region27: #{learned_positional_encoding_3d.1} parent=5 // pred_region
        %s189 = ssub.s32 %s17, 1
        %s190 = sand.u32 %s30, 1
        %s191 = scalar_lea.sflag [#allocation3], %s190
        %s192 = sand.u32 %s30, 1
        %s193 = smul.addr %s192, 8192
        %s194 = scalar_lea.vmem [#allocation2], %s193
        // Predicated region
        $region29: #{learned_positional_encoding_3d.1} parent=27 // pred_check
          %p195 = pneg %p43
        $region30: #{learned_positional_encoding_3d.1} parent=27 // pred_check_branch
          %197 = sbr.rel (%p195) target = $region32
        $region31: #{learned_positional_encoding_3d.1} parent=27 // pred_region
          %198 = dma.done %s191, 131072
        $region32: #{learned_positional_encoding_3d.1} parent=27 // pred_fallthru
          _
        %s199 = sand.u32 %s56, 1
        %s200 = scalar_lea.sflag [#allocation6], %s199
        %s201 = sand.u32 %s56, 1
        %s202 = smul.addr %s201, 4096
        %s203 = scalar_lea.vmem [#allocation5], %s202
        // Predicated region
        $region33: #{learned_positional_encoding_3d.1} parent=27 // pred_check
          %p204 = pneg %p69
        $region34: #{learned_positional_encoding_3d.1} parent=27 // pred_check_branch
          %206 = sbr.rel (%p204) target = $region36
        $region35: #{learned_positional_encoding_3d.1} parent=27 // pred_region
          %207 = dma.done %s200, 65536
        $region36: #{learned_positional_encoding_3d.1} parent=27 // pred_fallthru
          _
        %s208 = sand.u32 %s30, 1
        %s209 = scalar_lea.sflag [#allocation3], %s208
        %s210 = sand.u32 %s30, 1
        %s211 = smul.addr %s210, 8192
        %s212 = scalar_lea.vmem [#allocation2], %s211
        %p213 = pneg %p43
        %p214 = pneg %p40
        %s215 = sand.u32 %s56, 1
        %s216 = scalar_lea.sflag [#allocation6], %s215
        %s217 = sand.u32 %s56, 1
        %s218 = smul.addr %s217, 4096
        %s219 = scalar_lea.vmem [#allocation5], %s218
        %p220 = pneg %p69
        %p221 = pneg %p66
        %p222 = pneg %p95
        %p223 = pneg %p92
        %s224 = sand.u32 %s82, 1
        %s225 = scalar_lea.sflag [#allocation4], %s224
        %s226 = sand.u32 %s82, 1
        %s227 = smul.addr %s226, 8192
        %s228 = scalar_lea.vmem [#allocation7], %s227
        %s229 = smul.u32 128, %s22
        %s230 = smul.u32 128, %s22
        %s231 = smul.u32 128, %s22
        %v232 = vld [vmem:[%s194] sm:$0xff]
        %v233 = vld [vmem:[%s194 + $0x8] sm:$0xff]
        %v234 = vld [vmem:[%s194 + $0x10] sm:$0xff]
        %v235 = vld [vmem:[%s194 + $0x18] sm:$0xff]
        %v236 = vld [vmem:[%s194 + $0x20] sm:$0xff]
        %v237 = vld [vmem:[%s194 + $0x28] sm:$0xff]
        %v238 = vld [vmem:[%s194 + $0x30] sm:$0xff]
        %v239 = vld [vmem:[%s194 + $0x38] sm:$0xff]
        %v240 = vld [vmem:[%s194 + $0x40] sm:$0xff]
        %v241 = vld [vmem:[%s194 + $0x48] sm:$0xff]
        %v242 = vld [vmem:[%s194 + $0x50] sm:$0xff]
        %v243 = vld [vmem:[%s194 + $0x58] sm:$0xff]
        %v244 = vld [vmem:[%s194 + $0x60] sm:$0xff]
        %v245 = vld [vmem:[%s194 + $0x68] sm:$0xff]
        %v246 = vld [vmem:[%s194 + $0x70] sm:$0xff]
        %v247 = vld [vmem:[%s194 + $0x78] sm:$0xff]
        %v248 = vld [vmem:[%s194 + $0x80] sm:$0xff]
        %v249 = vld [vmem:[%s194 + $0x88] sm:$0xff]
        %v250 = vld [vmem:[%s194 + $0x90] sm:$0xff]
        %v251 = vld [vmem:[%s194 + $0x98] sm:$0xff]
        %v252 = vld [vmem:[%s194 + $0xa0] sm:$0xff]
        %v253 = vld [vmem:[%s194 + $0xa8] sm:$0xff]
        %v254 = vld [vmem:[%s194 + $0xb0] sm:$0xff]
        %v255 = vld [vmem:[%s194 + $0xb8] sm:$0xff]
        %v256 = vld [vmem:[%s194 + $0xc0] sm:$0xff]
        %v257 = vld [vmem:[%s194 + $0xc8] sm:$0xff]
        %v258 = vld [vmem:[%s194 + $0xd0] sm:$0xff]
        %v259 = vld [vmem:[%s194 + $0xd8] sm:$0xff]
        %v260 = vld [vmem:[%s194 + $0xe0] sm:$0xff]
        %v261 = vld [vmem:[%s194 + $0xe8] sm:$0xff]
        %v262 = vld [vmem:[%s194 + $0xf0] sm:$0xff]
        %v263 = vld [vmem:[%s194 + $0xf8] sm:$0xff]
        %v264 = vld [vmem:[%s194 + $0x100] sm:$0xff]
        %v265 = vld [vmem:[%s194 + $0x108] sm:$0xff]
        %v266 = vld [vmem:[%s194 + $0x110] sm:$0xff]
        %v267 = vld [vmem:[%s194 + $0x118] sm:$0xff]
        %v268 = vld [vmem:[%s194 + $0x120] sm:$0xff]
        %v269 = vld [vmem:[%s194 + $0x128] sm:$0xff]
        %v270 = vld [vmem:[%s194 + $0x130] sm:$0xff]
        %v271 = vld [vmem:[%s194 + $0x138] sm:$0xff]
        %v272 = vld [vmem:[%s194 + $0x140] sm:$0xff]
        %v273 = vld [vmem:[%s194 + $0x148] sm:$0xff]
        %v274 = vld [vmem:[%s194 + $0x150] sm:$0xff]
        %v275 = vld [vmem:[%s194 + $0x158] sm:$0xff]
        %v276 = vld [vmem:[%s194 + $0x160] sm:$0xff]
        %v277 = vld [vmem:[%s194 + $0x168] sm:$0xff]
        %v278 = vld [vmem:[%s194 + $0x170] sm:$0xff]
        %v279 = vld [vmem:[%s194 + $0x178] sm:$0xff]
        %v280 = vld [vmem:[%s194 + $0x180] sm:$0xff]
        %v281 = vld [vmem:[%s194 + $0x188] sm:$0xff]
        %v282 = vld [vmem:[%s194 + $0x190] sm:$0xff]
        %v283 = vld [vmem:[%s194 + $0x198] sm:$0xff]
        %v284 = vld [vmem:[%s194 + $0x1a0] sm:$0xff]
        %v285 = vld [vmem:[%s194 + $0x1a8] sm:$0xff]
        %v286 = vld [vmem:[%s194 + $0x1b0] sm:$0xff]
        %v287 = vld [vmem:[%s194 + $0x1b8] sm:$0xff]
        %v288 = vld [vmem:[%s194 + $0x1c0] sm:$0xff]
        %v289 = vld [vmem:[%s194 + $0x1c8] sm:$0xff]
        %v290 = vld [vmem:[%s194 + $0x1d0] sm:$0xff]
        %v291 = vld [vmem:[%s194 + $0x1d8] sm:$0xff]
        %v292 = vld [vmem:[%s194 + $0x1e0] sm:$0xff]
        %v293 = vld [vmem:[%s194 + $0x1e8] sm:$0xff]
        %v294 = vld [vmem:[%s194 + $0x1f0] sm:$0xff]
        %v295 = vld [vmem:[%s194 + $0x1f8] sm:$0xff]
        %v296 = vld [vmem:[%s194 + $0x200] sm:$0xff]
        %v297 = vld [vmem:[%s194 + $0x208] sm:$0xff]
        %v298 = vld [vmem:[%s194 + $0x210] sm:$0xff]
        %v299 = vld [vmem:[%s194 + $0x218] sm:$0xff]
        %v300 = vld [vmem:[%s194 + $0x220] sm:$0xff]
        %v301 = vld [vmem:[%s194 + $0x228] sm:$0xff]
        %v302 = vld [vmem:[%s194 + $0x230] sm:$0xff]
        %v303 = vld [vmem:[%s194 + $0x238] sm:$0xff]
        %v304 = vld [vmem:[%s194 + $0x240] sm:$0xff]
        %v305 = vld [vmem:[%s194 + $0x248] sm:$0xff]
        %v306 = vld [vmem:[%s194 + $0x250] sm:$0xff]
        %v307 = vld [vmem:[%s194 + $0x258] sm:$0xff]
        %v308 = vld [vmem:[%s194 + $0x260] sm:$0xff]
        %v309 = vld [vmem:[%s194 + $0x268] sm:$0xff]
        %v310 = vld [vmem:[%s194 + $0x270] sm:$0xff]
        %v311 = vld [vmem:[%s194 + $0x278] sm:$0xff]
        %v312 = vld [vmem:[%s194 + $0x280] sm:$0xff]
        %v313 = vld [vmem:[%s194 + $0x288] sm:$0xff]
        %v314 = vld [vmem:[%s194 + $0x290] sm:$0xff]
        %v315 = vld [vmem:[%s194 + $0x298] sm:$0xff]
        %v316 = vld [vmem:[%s194 + $0x2a0] sm:$0xff]
        %v317 = vld [vmem:[%s194 + $0x2a8] sm:$0xff]
        %v318 = vld [vmem:[%s194 + $0x2b0] sm:$0xff]
        %v319 = vld [vmem:[%s194 + $0x2b8] sm:$0xff]
        %v320 = vld [vmem:[%s194 + $0x2c0] sm:$0xff]
        %v321 = vld [vmem:[%s194 + $0x2c8] sm:$0xff]
        %v322 = vld [vmem:[%s194 + $0x2d0] sm:$0xff]
        %v323 = vld [vmem:[%s194 + $0x2d8] sm:$0xff]
        %v324 = vld [vmem:[%s194 + $0x2e0] sm:$0xff]
        %v325 = vld [vmem:[%s194 + $0x2e8] sm:$0xff]
        %v326 = vld [vmem:[%s194 + $0x2f0] sm:$0xff]
        %v327 = vld [vmem:[%s194 + $0x2f8] sm:$0xff]
        %v328 = vld [vmem:[%s194 + $0x300] sm:$0xff]
        %v329 = vld [vmem:[%s194 + $0x308] sm:$0xff]
        %v330 = vld [vmem:[%s194 + $0x310] sm:$0xff]
        %v331 = vld [vmem:[%s194 + $0x318] sm:$0xff]
        %v332 = vld [vmem:[%s194 + $0x320] sm:$0xff]
        %v333 = vld [vmem:[%s194 + $0x328] sm:$0xff]
        %v334 = vld [vmem:[%s194 + $0x330] sm:$0xff]
        %v335 = vld [vmem:[%s194 + $0x338] sm:$0xff]
        %v336 = vld [vmem:[%s194 + $0x340] sm:$0xff]
        %v337 = vld [vmem:[%s194 + $0x348] sm:$0xff]
        %v338 = vld [vmem:[%s194 + $0x350] sm:$0xff]
        %v339 = vld [vmem:[%s194 + $0x358] sm:$0xff]
        %v340 = vld [vmem:[%s194 + $0x360] sm:$0xff]
        %v341 = vld [vmem:[%s194 + $0x368] sm:$0xff]
        %v342 = vld [vmem:[%s194 + $0x370] sm:$0xff]
        %v343 = vld [vmem:[%s194 + $0x378] sm:$0xff]
        %v344 = vld [vmem:[%s194 + $0x380] sm:$0xff]
        %v345 = vld [vmem:[%s194 + $0x388] sm:$0xff]
        %v346 = vld [vmem:[%s194 + $0x390] sm:$0xff]
        %v347 = vld [vmem:[%s194 + $0x398] sm:$0xff]
        %v348 = vld [vmem:[%s194 + $0x3a0] sm:$0xff]
        %v349 = vld [vmem:[%s194 + $0x3a8] sm:$0xff]
        %v350 = vld [vmem:[%s194 + $0x3b0] sm:$0xff]
        %v351 = vld [vmem:[%s194 + $0x3b8] sm:$0xff]
        %v352 = vld [vmem:[%s194 + $0x3c0] sm:$0xff]
        %v353 = vld [vmem:[%s194 + $0x3c8] sm:$0xff]
        %v354 = vld [vmem:[%s194 + $0x3d0] sm:$0xff]
        %v355 = vld [vmem:[%s194 + $0x3d8] sm:$0xff]
        %v356 = vld [vmem:[%s194 + $0x3e0] sm:$0xff]
        %v357 = vld [vmem:[%s194 + $0x3e8] sm:$0xff]
        %v358 = vld [vmem:[%s194 + $0x3f0] sm:$0xff]
        %v359 = vld [vmem:[%s194 + $0x3f8] sm:$0xff]
        %v360 = vld [vmem:[%s194 + $0x400] sm:$0xff]
        %v361 = vld [vmem:[%s194 + $0x408] sm:$0xff]
        %v362 = vld [vmem:[%s194 + $0x410] sm:$0xff]
        %v363 = vld [vmem:[%s194 + $0x418] sm:$0xff]
        %v364 = vld [vmem:[%s194 + $0x420] sm:$0xff]
        %v365 = vld [vmem:[%s194 + $0x428] sm:$0xff]
        %v366 = vld [vmem:[%s194 + $0x430] sm:$0xff]
        %v367 = vld [vmem:[%s194 + $0x438] sm:$0xff]
        %v368 = vld [vmem:[%s194 + $0x440] sm:$0xff]
        %v369 = vld [vmem:[%s194 + $0x448] sm:$0xff]
        %v370 = vld [vmem:[%s194 + $0x450] sm:$0xff]
        %v371 = vld [vmem:[%s194 + $0x458] sm:$0xff]
        %v372 = vld [vmem:[%s194 + $0x460] sm:$0xff]
        %v373 = vld [vmem:[%s194 + $0x468] sm:$0xff]
        %v374 = vld [vmem:[%s194 + $0x470] sm:$0xff]
        %v375 = vld [vmem:[%s194 + $0x478] sm:$0xff]
        %v376 = vld [vmem:[%s194 + $0x480] sm:$0xff]
        %v377 = vld [vmem:[%s194 + $0x488] sm:$0xff]
        %v378 = vld [vmem:[%s194 + $0x490] sm:$0xff]
        %v379 = vld [vmem:[%s194 + $0x498] sm:$0xff]
        %v380 = vld [vmem:[%s194 + $0x4a0] sm:$0xff]
        %v381 = vld [vmem:[%s194 + $0x4a8] sm:$0xff]
        %v382 = vld [vmem:[%s194 + $0x4b0] sm:$0xff]
        %v383 = vld [vmem:[%s194 + $0x4b8] sm:$0xff]
        %v384 = vld [vmem:[%s194 + $0x4c0] sm:$0xff]
        %v385 = vld [vmem:[%s194 + $0x4c8] sm:$0xff]
        %v386 = vld [vmem:[%s194 + $0x4d0] sm:$0xff]
        %v387 = vld [vmem:[%s194 + $0x4d8] sm:$0xff]
        %v388 = vld [vmem:[%s194 + $0x4e0] sm:$0xff]
        %v389 = vld [vmem:[%s194 + $0x4e8] sm:$0xff]
        %v390 = vld [vmem:[%s194 + $0x4f0] sm:$0xff]
        %v391 = vld [vmem:[%s194 + $0x4f8] sm:$0xff]
        %v392 = vld [vmem:[%s194 + $0x500] sm:$0xff]
        %v393 = vld [vmem:[%s194 + $0x508] sm:$0xff]
        %v394 = vld [vmem:[%s194 + $0x510] sm:$0xff]
        %v395 = vld [vmem:[%s194 + $0x518] sm:$0xff]
        %v396 = vld [vmem:[%s194 + $0x520] sm:$0xff]
        %v397 = vld [vmem:[%s194 + $0x528] sm:$0xff]
        %v398 = vld [vmem:[%s194 + $0x530] sm:$0xff]
        %v399 = vld [vmem:[%s194 + $0x538] sm:$0xff]
        %v400 = vld [vmem:[%s194 + $0x540] sm:$0xff]
        %v401 = vld [vmem:[%s194 + $0x548] sm:$0xff]
        %v402 = vld [vmem:[%s194 + $0x550] sm:$0xff]
        %v403 = vld [vmem:[%s194 + $0x558] sm:$0xff]
        %v404 = vld [vmem:[%s194 + $0x560] sm:$0xff]
        %v405 = vld [vmem:[%s194 + $0x568] sm:$0xff]
        %v406 = vld [vmem:[%s194 + $0x570] sm:$0xff]
        %v407 = vld [vmem:[%s194 + $0x578] sm:$0xff]
        %v408 = vld [vmem:[%s194 + $0x580] sm:$0xff]
        %v409 = vld [vmem:[%s194 + $0x588] sm:$0xff]
        %v410 = vld [vmem:[%s194 + $0x590] sm:$0xff]
        %v411 = vld [vmem:[%s194 + $0x598] sm:$0xff]
        %v412 = vld [vmem:[%s194 + $0x5a0] sm:$0xff]
        %v413 = vld [vmem:[%s194 + $0x5a8] sm:$0xff]
        %v414 = vld [vmem:[%s194 + $0x5b0] sm:$0xff]
        %v415 = vld [vmem:[%s194 + $0x5b8] sm:$0xff]
        %v416 = vld [vmem:[%s194 + $0x5c0] sm:$0xff]
        %v417 = vld [vmem:[%s194 + $0x5c8] sm:$0xff]
        %v418 = vld [vmem:[%s194 + $0x5d0] sm:$0xff]
        %v419 = vld [vmem:[%s194 + $0x5d8] sm:$0xff]
        %v420 = vld [vmem:[%s194 + $0x5e0] sm:$0xff]
        %v421 = vld [vmem:[%s194 + $0x5e8] sm:$0xff]
        %v422 = vld [vmem:[%s194 + $0x5f0] sm:$0xff]
        %v423 = vld [vmem:[%s194 + $0x5f8] sm:$0xff]
        %v424 = vld [vmem:[%s194 + $0x600] sm:$0xff]
        %v425 = vld [vmem:[%s194 + $0x608] sm:$0xff]
        %v426 = vld [vmem:[%s194 + $0x610] sm:$0xff]
        %v427 = vld [vmem:[%s194 + $0x618] sm:$0xff]
        %v428 = vld [vmem:[%s194 + $0x620] sm:$0xff]
        %v429 = vld [vmem:[%s194 + $0x628] sm:$0xff]
        %v430 = vld [vmem:[%s194 + $0x630] sm:$0xff]
        %v431 = vld [vmem:[%s194 + $0x638] sm:$0xff]
        %v432 = vld [vmem:[%s194 + $0x640] sm:$0xff]
        %v433 = vld [vmem:[%s194 + $0x648] sm:$0xff]
        %v434 = vld [vmem:[%s194 + $0x650] sm:$0xff]
        %v435 = vld [vmem:[%s194 + $0x658] sm:$0xff]
        %v436 = vld [vmem:[%s194 + $0x660] sm:$0xff]
        %v437 = vld [vmem:[%s194 + $0x668] sm:$0xff]
        %v438 = vld [vmem:[%s194 + $0x670] sm:$0xff]
        %v439 = vld [vmem:[%s194 + $0x678] sm:$0xff]
        %v440 = vld [vmem:[%s194 + $0x680] sm:$0xff]
        %v441 = vld [vmem:[%s194 + $0x688] sm:$0xff]
        %v442 = vld [vmem:[%s194 + $0x690] sm:$0xff]
        %v443 = vld [vmem:[%s194 + $0x698] sm:$0xff]
        %v444 = vld [vmem:[%s194 + $0x6a0] sm:$0xff]
        %v445 = vld [vmem:[%s194 + $0x6a8] sm:$0xff]
        %v446 = vld [vmem:[%s194 + $0x6b0] sm:$0xff]
        %v447 = vld [vmem:[%s194 + $0x6b8] sm:$0xff]
        %v448 = vld [vmem:[%s194 + $0x6c0] sm:$0xff]
        %v449 = vld [vmem:[%s194 + $0x6c8] sm:$0xff]
        %v450 = vld [vmem:[%s194 + $0x6d0] sm:$0xff]
        %v451 = vld [vmem:[%s194 + $0x6d8] sm:$0xff]
        %v452 = vld [vmem:[%s194 + $0x6e0] sm:$0xff]
        %v453 = vld [vmem:[%s194 + $0x6e8] sm:$0xff]
        %v454 = vld [vmem:[%s194 + $0x6f0] sm:$0xff]
        %v455 = vld [vmem:[%s194 + $0x6f8] sm:$0xff]
        %v456 = vld [vmem:[%s194 + $0x700] sm:$0xff]
        %v457 = vld [vmem:[%s194 + $0x708] sm:$0xff]
        %v458 = vld [vmem:[%s194 + $0x710] sm:$0xff]
        %v459 = vld [vmem:[%s194 + $0x718] sm:$0xff]
        %v460 = vld [vmem:[%s194 + $0x720] sm:$0xff]
        %v461 = vld [vmem:[%s194 + $0x728] sm:$0xff]
        %v462 = vld [vmem:[%s194 + $0x730] sm:$0xff]
        %v463 = vld [vmem:[%s194 + $0x738] sm:$0xff]
        %v464 = vld [vmem:[%s194 + $0x740] sm:$0xff]
        %v465 = vld [vmem:[%s194 + $0x748] sm:$0xff]
        %v466 = vld [vmem:[%s194 + $0x750] sm:$0xff]
        %v467 = vld [vmem:[%s194 + $0x758] sm:$0xff]
        %v468 = vld [vmem:[%s194 + $0x760] sm:$0xff]
        %v469 = vld [vmem:[%s194 + $0x768] sm:$0xff]
        %v470 = vld [vmem:[%s194 + $0x770] sm:$0xff]
        %v471 = vld [vmem:[%s194 + $0x778] sm:$0xff]
        %v472 = vld [vmem:[%s194 + $0x780] sm:$0xff]
        %v473 = vld [vmem:[%s194 + $0x788] sm:$0xff]
        %v474 = vld [vmem:[%s194 + $0x790] sm:$0xff]
        %v475 = vld [vmem:[%s194 + $0x798] sm:$0xff]
        %v476 = vld [vmem:[%s194 + $0x7a0] sm:$0xff]
        %v477 = vld [vmem:[%s194 + $0x7a8] sm:$0xff]
        %v478 = vld [vmem:[%s194 + $0x7b0] sm:$0xff]
        %v479 = vld [vmem:[%s194 + $0x7b8] sm:$0xff]
        %v480 = vld [vmem:[%s194 + $0x7c0] sm:$0xff]
        %v481 = vld [vmem:[%s194 + $0x7c8] sm:$0xff]
        %v482 = vld [vmem:[%s194 + $0x7d0] sm:$0xff]
        %v483 = vld [vmem:[%s194 + $0x7d8] sm:$0xff]
        %v484 = vld [vmem:[%s194 + $0x7e0] sm:$0xff]
        %v485 = vld [vmem:[%s194 + $0x7e8] sm:$0xff]
        %v486 = vld [vmem:[%s194 + $0x7f0] sm:$0xff]
        %v487 = vld [vmem:[%s194 + $0x7f8] sm:$0xff]
        %v488 = vld [vmem:[%s194 + $0x800] sm:$0xff]
        %v489 = vld [vmem:[%s194 + $0x808] sm:$0xff]
        %v490 = vld [vmem:[%s194 + $0x810] sm:$0xff]
        %v491 = vld [vmem:[%s194 + $0x818] sm:$0xff]
        %v492 = vld [vmem:[%s194 + $0x820] sm:$0xff]
        %v493 = vld [vmem:[%s194 + $0x828] sm:$0xff]
        %v494 = vld [vmem:[%s194 + $0x830] sm:$0xff]
        %v495 = vld [vmem:[%s194 + $0x838] sm:$0xff]
        %v496 = vld [vmem:[%s194 + $0x840] sm:$0xff]
        %v497 = vld [vmem:[%s194 + $0x848] sm:$0xff]
        %v498 = vld [vmem:[%s194 + $0x850] sm:$0xff]
        %v499 = vld [vmem:[%s194 + $0x858] sm:$0xff]
        %v500 = vld [vmem:[%s194 + $0x860] sm:$0xff]
        %v501 = vld [vmem:[%s194 + $0x868] sm:$0xff]
        %v502 = vld [vmem:[%s194 + $0x870] sm:$0xff]
        %v503 = vld [vmem:[%s194 + $0x878] sm:$0xff]
        %v504 = vld [vmem:[%s194 + $0x880] sm:$0xff]
        %v505 = vld [vmem:[%s194 + $0x888] sm:$0xff]
        %v506 = vld [vmem:[%s194 + $0x890] sm:$0xff]
        %v507 = vld [vmem:[%s194 + $0x898] sm:$0xff]
        %v508 = vld [vmem:[%s194 + $0x8a0] sm:$0xff]
        %v509 = vld [vmem:[%s194 + $0x8a8] sm:$0xff]
        %v510 = vld [vmem:[%s194 + $0x8b0] sm:$0xff]
        %v511 = vld [vmem:[%s194 + $0x8b8] sm:$0xff]
        %v512 = vld [vmem:[%s194 + $0x8c0] sm:$0xff]
        %v513 = vld [vmem:[%s194 + $0x8c8] sm:$0xff]
        %v514 = vld [vmem:[%s194 + $0x8d0] sm:$0xff]
        %v515 = vld [vmem:[%s194 + $0x8d8] sm:$0xff]
        %v516 = vld [vmem:[%s194 + $0x8e0] sm:$0xff]
        %v517 = vld [vmem:[%s194 + $0x8e8] sm:$0xff]
        %v518 = vld [vmem:[%s194 + $0x8f0] sm:$0xff]
        %v519 = vld [vmem:[%s194 + $0x8f8] sm:$0xff]
        %v520 = vld [vmem:[%s194 + $0x900] sm:$0xff]
        %v521 = vld [vmem:[%s194 + $0x908] sm:$0xff]
        %v522 = vld [vmem:[%s194 + $0x910] sm:$0xff]
        %v523 = vld [vmem:[%s194 + $0x918] sm:$0xff]
        %v524 = vld [vmem:[%s194 + $0x920] sm:$0xff]
        %v525 = vld [vmem:[%s194 + $0x928] sm:$0xff]
        %v526 = vld [vmem:[%s194 + $0x930] sm:$0xff]
        %v527 = vld [vmem:[%s194 + $0x938] sm:$0xff]
        %v528 = vld [vmem:[%s194 + $0x940] sm:$0xff]
        %v529 = vld [vmem:[%s194 + $0x948] sm:$0xff]
        %v530 = vld [vmem:[%s194 + $0x950] sm:$0xff]
        %v531 = vld [vmem:[%s194 + $0x958] sm:$0xff]
        %v532 = vld [vmem:[%s194 + $0x960] sm:$0xff]
        %v533 = vld [vmem:[%s194 + $0x968] sm:$0xff]
        %v534 = vld [vmem:[%s194 + $0x970] sm:$0xff]
        %v535 = vld [vmem:[%s194 + $0x978] sm:$0xff]
        %v536 = vld [vmem:[%s194 + $0x980] sm:$0xff]
        %v537 = vld [vmem:[%s194 + $0x988] sm:$0xff]
        %v538 = vld [vmem:[%s194 + $0x990] sm:$0xff]
        %v539 = vld [vmem:[%s194 + $0x998] sm:$0xff]
        %v540 = vld [vmem:[%s194 + $0x9a0] sm:$0xff]
        %v541 = vld [vmem:[%s194 + $0x9a8] sm:$0xff]
        %v542 = vld [vmem:[%s194 + $0x9b0] sm:$0xff]
        %v543 = vld [vmem:[%s194 + $0x9b8] sm:$0xff]
        %v544 = vld [vmem:[%s194 + $0x9c0] sm:$0xff]
        %v545 = vld [vmem:[%s194 + $0x9c8] sm:$0xff]
        %v546 = vld [vmem:[%s194 + $0x9d0] sm:$0xff]
        %v547 = vld [vmem:[%s194 + $0x9d8] sm:$0xff]
        %v548 = vld [vmem:[%s194 + $0x9e0] sm:$0xff]
        %v549 = vld [vmem:[%s194 + $0x9e8] sm:$0xff]
        %v550 = vld [vmem:[%s194 + $0x9f0] sm:$0xff]
        %v551 = vld [vmem:[%s194 + $0x9f8] sm:$0xff]
        %v552 = vld [vmem:[%s194 + $0xa00] sm:$0xff]
        %v553 = vld [vmem:[%s194 + $0xa08] sm:$0xff]
        %v554 = vld [vmem:[%s194 + $0xa10] sm:$0xff]
        %v555 = vld [vmem:[%s194 + $0xa18] sm:$0xff]
        %v556 = vld [vmem:[%s194 + $0xa20] sm:$0xff]
        %v557 = vld [vmem:[%s194 + $0xa28] sm:$0xff]
        %v558 = vld [vmem:[%s194 + $0xa30] sm:$0xff]
        %v559 = vld [vmem:[%s194 + $0xa38] sm:$0xff]
        %v560 = vld [vmem:[%s194 + $0xa40] sm:$0xff]
        %v561 = vld [vmem:[%s194 + $0xa48] sm:$0xff]
        %v562 = vld [vmem:[%s194 + $0xa50] sm:$0xff]
        %v563 = vld [vmem:[%s194 + $0xa58] sm:$0xff]
        %v564 = vld [vmem:[%s194 + $0xa60] sm:$0xff]
        %v565 = vld [vmem:[%s194 + $0xa68] sm:$0xff]
        %v566 = vld [vmem:[%s194 + $0xa70] sm:$0xff]
        %v567 = vld [vmem:[%s194 + $0xa78] sm:$0xff]
        %v568 = vld [vmem:[%s194 + $0xa80] sm:$0xff]
        %v569 = vld [vmem:[%s194 + $0xa88] sm:$0xff]
        %v570 = vld [vmem:[%s194 + $0xa90] sm:$0xff]
        %v571 = vld [vmem:[%s194 + $0xa98] sm:$0xff]
        %v572 = vld [vmem:[%s194 + $0xaa0] sm:$0xff]
        %v573 = vld [vmem:[%s194 + $0xaa8] sm:$0xff]
        %v574 = vld [vmem:[%s194 + $0xab0] sm:$0xff]
        %v575 = vld [vmem:[%s194 + $0xab8] sm:$0xff]
        %v576 = vld [vmem:[%s194 + $0xac0] sm:$0xff]
        %v577 = vld [vmem:[%s194 + $0xac8] sm:$0xff]
        %v578 = vld [vmem:[%s194 + $0xad0] sm:$0xff]
        %v579 = vld [vmem:[%s194 + $0xad8] sm:$0xff]
        %v580 = vld [vmem:[%s194 + $0xae0] sm:$0xff]
        %v581 = vld [vmem:[%s194 + $0xae8] sm:$0xff]
        %v582 = vld [vmem:[%s194 + $0xaf0] sm:$0xff]
        %v583 = vld [vmem:[%s194 + $0xaf8] sm:$0xff]
        %v584 = vld [vmem:[%s194 + $0xb00] sm:$0xff]
        %v585 = vld [vmem:[%s194 + $0xb08] sm:$0xff]
        %v586 = vld [vmem:[%s194 + $0xb10] sm:$0xff]
        %v587 = vld [vmem:[%s194 + $0xb18] sm:$0xff]
        %v588 = vld [vmem:[%s194 + $0xb20] sm:$0xff]
        %v589 = vld [vmem:[%s194 + $0xb28] sm:$0xff]
        %v590 = vld [vmem:[%s194 + $0xb30] sm:$0xff]
        %v591 = vld [vmem:[%s194 + $0xb38] sm:$0xff]
        %v592 = vld [vmem:[%s194 + $0xb40] sm:$0xff]
        %v593 = vld [vmem:[%s194 + $0xb48] sm:$0xff]
        %v594 = vld [vmem:[%s194 + $0xb50] sm:$0xff]
        %v595 = vld [vmem:[%s194 + $0xb58] sm:$0xff]
        %v596 = vld [vmem:[%s194 + $0xb60] sm:$0xff]
        %v597 = vld [vmem:[%s194 + $0xb68] sm:$0xff]
        %v598 = vld [vmem:[%s194 + $0xb70] sm:$0xff]
        %v599 = vld [vmem:[%s194 + $0xb78] sm:$0xff]
        %v600 = vld [vmem:[%s194 + $0xb80] sm:$0xff]
        %v601 = vld [vmem:[%s194 + $0xb88] sm:$0xff]
        %v602 = vld [vmem:[%s194 + $0xb90] sm:$0xff]
        %v603 = vld [vmem:[%s194 + $0xb98] sm:$0xff]
        %v604 = vld [vmem:[%s194 + $0xba0] sm:$0xff]
        %v605 = vld [vmem:[%s194 + $0xba8] sm:$0xff]
        %v606 = vld [vmem:[%s194 + $0xbb0] sm:$0xff]
        %v607 = vld [vmem:[%s194 + $0xbb8] sm:$0xff]
        %v608 = vld [vmem:[%s194 + $0xbc0] sm:$0xff]
        %v609 = vld [vmem:[%s194 + $0xbc8] sm:$0xff]
        %v610 = vld [vmem:[%s194 + $0xbd0] sm:$0xff]
        %v611 = vld [vmem:[%s194 + $0xbd8] sm:$0xff]
        %v612 = vld [vmem:[%s194 + $0xbe0] sm:$0xff]
        %v613 = vld [vmem:[%s194 + $0xbe8] sm:$0xff]
        %v614 = vld [vmem:[%s194 + $0xbf0] sm:$0xff]
        %v615 = vld [vmem:[%s194 + $0xbf8] sm:$0xff]
        %v616 = vld [vmem:[%s194 + $0xc00] sm:$0xff]
        %v617 = vld [vmem:[%s194 + $0xc08] sm:$0xff]
        %v618 = vld [vmem:[%s194 + $0xc10] sm:$0xff]
        %v619 = vld [vmem:[%s194 + $0xc18] sm:$0xff]
        %v620 = vld [vmem:[%s194 + $0xc20] sm:$0xff]
        %v621 = vld [vmem:[%s194 + $0xc28] sm:$0xff]
        %v622 = vld [vmem:[%s194 + $0xc30] sm:$0xff]
        %v623 = vld [vmem:[%s194 + $0xc38] sm:$0xff]
        %v624 = vld [vmem:[%s194 + $0xc40] sm:$0xff]
        %v625 = vld [vmem:[%s194 + $0xc48] sm:$0xff]
        %v626 = vld [vmem:[%s194 + $0xc50] sm:$0xff]
        %v627 = vld [vmem:[%s194 + $0xc58] sm:$0xff]
        %v628 = vld [vmem:[%s194 + $0xc60] sm:$0xff]
        %v629 = vld [vmem:[%s194 + $0xc68] sm:$0xff]
        %v630 = vld [vmem:[%s194 + $0xc70] sm:$0xff]
        %v631 = vld [vmem:[%s194 + $0xc78] sm:$0xff]
        %v632 = vld [vmem:[%s194 + $0xc80] sm:$0xff]
        %v633 = vld [vmem:[%s194 + $0xc88] sm:$0xff]
        %v634 = vld [vmem:[%s194 + $0xc90] sm:$0xff]
        %v635 = vld [vmem:[%s194 + $0xc98] sm:$0xff]
        %v636 = vld [vmem:[%s194 + $0xca0] sm:$0xff]
        %v637 = vld [vmem:[%s194 + $0xca8] sm:$0xff]
        %v638 = vld [vmem:[%s194 + $0xcb0] sm:$0xff]
        %v639 = vld [vmem:[%s194 + $0xcb8] sm:$0xff]
        %v640 = vld [vmem:[%s194 + $0xcc0] sm:$0xff]
        %v641 = vld [vmem:[%s194 + $0xcc8] sm:$0xff]
        %v642 = vld [vmem:[%s194 + $0xcd0] sm:$0xff]
        %v643 = vld [vmem:[%s194 + $0xcd8] sm:$0xff]
        %v644 = vld [vmem:[%s194 + $0xce0] sm:$0xff]
        %v645 = vld [vmem:[%s194 + $0xce8] sm:$0xff]
        %v646 = vld [vmem:[%s194 + $0xcf0] sm:$0xff]
        %v647 = vld [vmem:[%s194 + $0xcf8] sm:$0xff]
        %v648 = vld [vmem:[%s194 + $0xd00] sm:$0xff]
        %v649 = vld [vmem:[%s194 + $0xd08] sm:$0xff]
        %v650 = vld [vmem:[%s194 + $0xd10] sm:$0xff]
        %v651 = vld [vmem:[%s194 + $0xd18] sm:$0xff]
        %v652 = vld [vmem:[%s194 + $0xd20] sm:$0xff]
        %v653 = vld [vmem:[%s194 + $0xd28] sm:$0xff]
        %v654 = vld [vmem:[%s194 + $0xd30] sm:$0xff]
        %v655 = vld [vmem:[%s194 + $0xd38] sm:$0xff]
        %v656 = vld [vmem:[%s194 + $0xd40] sm:$0xff]
        %v657 = vld [vmem:[%s194 + $0xd48] sm:$0xff]
        %v658 = vld [vmem:[%s194 + $0xd50] sm:$0xff]
        %v659 = vld [vmem:[%s194 + $0xd58] sm:$0xff]
        %v660 = vld [vmem:[%s194 + $0xd60] sm:$0xff]
        %v661 = vld [vmem:[%s194 + $0xd68] sm:$0xff]
        %v662 = vld [vmem:[%s194 + $0xd70] sm:$0xff]
        %v663 = vld [vmem:[%s194 + $0xd78] sm:$0xff]
        %v664 = vld [vmem:[%s194 + $0xd80] sm:$0xff]
        %v665 = vld [vmem:[%s194 + $0xd88] sm:$0xff]
        %v666 = vld [vmem:[%s194 + $0xd90] sm:$0xff]
        %v667 = vld [vmem:[%s194 + $0xd98] sm:$0xff]
        %v668 = vld [vmem:[%s194 + $0xda0] sm:$0xff]
        %v669 = vld [vmem:[%s194 + $0xda8] sm:$0xff]
        %v670 = vld [vmem:[%s194 + $0xdb0] sm:$0xff]
        %v671 = vld [vmem:[%s194 + $0xdb8] sm:$0xff]
        %v672 = vld [vmem:[%s194 + $0xdc0] sm:$0xff]
        %v673 = vld [vmem:[%s194 + $0xdc8] sm:$0xff]
        %v674 = vld [vmem:[%s194 + $0xdd0] sm:$0xff]
        %v675 = vld [vmem:[%s194 + $0xdd8] sm:$0xff]
        %v676 = vld [vmem:[%s194 + $0xde0] sm:$0xff]
        %v677 = vld [vmem:[%s194 + $0xde8] sm:$0xff]
        %v678 = vld [vmem:[%s194 + $0xdf0] sm:$0xff]
        %v679 = vld [vmem:[%s194 + $0xdf8] sm:$0xff]
        %v680 = vld [vmem:[%s194 + $0xe00] sm:$0xff]
        %v681 = vld [vmem:[%s194 + $0xe08] sm:$0xff]
        %v682 = vld [vmem:[%s194 + $0xe10] sm:$0xff]
        %v683 = vld [vmem:[%s194 + $0xe18] sm:$0xff]
        %v684 = vld [vmem:[%s194 + $0xe20] sm:$0xff]
        %v685 = vld [vmem:[%s194 + $0xe28] sm:$0xff]
        %v686 = vld [vmem:[%s194 + $0xe30] sm:$0xff]
        %v687 = vld [vmem:[%s194 + $0xe38] sm:$0xff]
        %v688 = vld [vmem:[%s194 + $0xe40] sm:$0xff]
        %v689 = vld [vmem:[%s194 + $0xe48] sm:$0xff]
        %v690 = vld [vmem:[%s194 + $0xe50] sm:$0xff]
        %v691 = vld [vmem:[%s194 + $0xe58] sm:$0xff]
        %v692 = vld [vmem:[%s194 + $0xe60] sm:$0xff]
        %v693 = vld [vmem:[%s194 + $0xe68] sm:$0xff]
        %v694 = vld [vmem:[%s194 + $0xe70] sm:$0xff]
        %v695 = vld [vmem:[%s194 + $0xe78] sm:$0xff]
        %v696 = vld [vmem:[%s194 + $0xe80] sm:$0xff]
        %v697 = vld [vmem:[%s194 + $0xe88] sm:$0xff]
        %v698 = vld [vmem:[%s194 + $0xe90] sm:$0xff]
        %v699 = vld [vmem:[%s194 + $0xe98] sm:$0xff]
        %v700 = vld [vmem:[%s194 + $0xea0] sm:$0xff]
        %v701 = vld [vmem:[%s194 + $0xea8] sm:$0xff]
        %v702 = vld [vmem:[%s194 + $0xeb0] sm:$0xff]
        %v703 = vld [vmem:[%s194 + $0xeb8] sm:$0xff]
        %v704 = vld [vmem:[%s194 + $0xec0] sm:$0xff]
        %v705 = vld [vmem:[%s194 + $0xec8] sm:$0xff]
        %v706 = vld [vmem:[%s194 + $0xed0] sm:$0xff]
        %v707 = vld [vmem:[%s194 + $0xed8] sm:$0xff]
        %v708 = vld [vmem:[%s194 + $0xee0] sm:$0xff]
        %v709 = vld [vmem:[%s194 + $0xee8] sm:$0xff]
        %v710 = vld [vmem:[%s194 + $0xef0] sm:$0xff]
        %v711 = vld [vmem:[%s194 + $0xef8] sm:$0xff]
        %v712 = vld [vmem:[%s194 + $0xf00] sm:$0xff]
        %v713 = vld [vmem:[%s194 + $0xf08] sm:$0xff]
        %v714 = vld [vmem:[%s194 + $0xf10] sm:$0xff]
        %v715 = vld [vmem:[%s194 + $0xf18] sm:$0xff]
        %v716 = vld [vmem:[%s194 + $0xf20] sm:$0xff]
        %v717 = vld [vmem:[%s194 + $0xf28] sm:$0xff]
        %v718 = vld [vmem:[%s194 + $0xf30] sm:$0xff]
        %v719 = vld [vmem:[%s194 + $0xf38] sm:$0xff]
        %v720 = vld [vmem:[%s194 + $0xf40] sm:$0xff]
        %v721 = vld [vmem:[%s194 + $0xf48] sm:$0xff]
        %v722 = vld [vmem:[%s194 + $0xf50] sm:$0xff]
        %v723 = vld [vmem:[%s194 + $0xf58] sm:$0xff]
        %v724 = vld [vmem:[%s194 + $0xf60] sm:$0xff]
        %v725 = vld [vmem:[%s194 + $0xf68] sm:$0xff]
        %v726 = vld [vmem:[%s194 + $0xf70] sm:$0xff]
        %v727 = vld [vmem:[%s194 + $0xf78] sm:$0xff]
        %v728 = vld [vmem:[%s194 + $0xf80] sm:$0xff]
        %v729 = vld [vmem:[%s194 + $0xf88] sm:$0xff]
        %v730 = vld [vmem:[%s194 + $0xf90] sm:$0xff]
        %v731 = vld [vmem:[%s194 + $0xf98] sm:$0xff]
        %v732 = vld [vmem:[%s194 + $0xfa0] sm:$0xff]
        %v733 = vld [vmem:[%s194 + $0xfa8] sm:$0xff]
        %v734 = vld [vmem:[%s194 + $0xfb0] sm:$0xff]
        %v735 = vld [vmem:[%s194 + $0xfb8] sm:$0xff]
        %v736 = vld [vmem:[%s194 + $0xfc0] sm:$0xff]
        %v737 = vld [vmem:[%s194 + $0xfc8] sm:$0xff]
        %v738 = vld [vmem:[%s194 + $0xfd0] sm:$0xff]
        %v739 = vld [vmem:[%s194 + $0xfd8] sm:$0xff]
        %v740 = vld [vmem:[%s194 + $0xfe0] sm:$0xff]
        %v741 = vld [vmem:[%s194 + $0xfe8] sm:$0xff]
        %v742 = vld [vmem:[%s194 + $0xff0] sm:$0xff]
        %v743 = vld [vmem:[%s194 + $0xff8] sm:$0xff]
        %v744 = vld [vmem:[%s194 + $0x1000] sm:$0xff]
        %v745 = vld [vmem:[%s194 + $0x1008] sm:$0xff]
        %v746 = vld [vmem:[%s194 + $0x1010] sm:$0xff]
        %v747 = vld [vmem:[%s194 + $0x1018] sm:$0xff]
        %v748 = vld [vmem:[%s194 + $0x1020] sm:$0xff]
        %v749 = vld [vmem:[%s194 + $0x1028] sm:$0xff]
        %v750 = vld [vmem:[%s194 + $0x1030] sm:$0xff]
        %v751 = vld [vmem:[%s194 + $0x1038] sm:$0xff]
        %v752 = vld [vmem:[%s194 + $0x1040] sm:$0xff]
        %v753 = vld [vmem:[%s194 + $0x1048] sm:$0xff]
        %v754 = vld [vmem:[%s194 + $0x1050] sm:$0xff]
        %v755 = vld [vmem:[%s194 + $0x1058] sm:$0xff]
        %v756 = vld [vmem:[%s194 + $0x1060] sm:$0xff]
        %v757 = vld [vmem:[%s194 + $0x1068] sm:$0xff]
        %v758 = vld [vmem:[%s194 + $0x1070] sm:$0xff]
        %v759 = vld [vmem:[%s194 + $0x1078] sm:$0xff]
        %v760 = vld [vmem:[%s194 + $0x1080] sm:$0xff]
        %v761 = vld [vmem:[%s194 + $0x1088] sm:$0xff]
        %v762 = vld [vmem:[%s194 + $0x1090] sm:$0xff]
        %v763 = vld [vmem:[%s194 + $0x1098] sm:$0xff]
        %v764 = vld [vmem:[%s194 + $0x10a0] sm:$0xff]
        %v765 = vld [vmem:[%s194 + $0x10a8] sm:$0xff]
        %v766 = vld [vmem:[%s194 + $0x10b0] sm:$0xff]
        %v767 = vld [vmem:[%s194 + $0x10b8] sm:$0xff]
        %v768 = vld [vmem:[%s194 + $0x10c0] sm:$0xff]
        %v769 = vld [vmem:[%s194 + $0x10c8] sm:$0xff]
        %v770 = vld [vmem:[%s194 + $0x10d0] sm:$0xff]
        %v771 = vld [vmem:[%s194 + $0x10d8] sm:$0xff]
        %v772 = vld [vmem:[%s194 + $0x10e0] sm:$0xff]
        %v773 = vld [vmem:[%s194 + $0x10e8] sm:$0xff]
        %v774 = vld [vmem:[%s194 + $0x10f0] sm:$0xff]
        %v775 = vld [vmem:[%s194 + $0x10f8] sm:$0xff]
        %v776 = vld [vmem:[%s194 + $0x1100] sm:$0xff]
        %v777 = vld [vmem:[%s194 + $0x1108] sm:$0xff]
        %v778 = vld [vmem:[%s194 + $0x1110] sm:$0xff]
        %v779 = vld [vmem:[%s194 + $0x1118] sm:$0xff]
        %v780 = vld [vmem:[%s194 + $0x1120] sm:$0xff]
        %v781 = vld [vmem:[%s194 + $0x1128] sm:$0xff]
        %v782 = vld [vmem:[%s194 + $0x1130] sm:$0xff]
        %v783 = vld [vmem:[%s194 + $0x1138] sm:$0xff]
        %v784 = vld [vmem:[%s194 + $0x1140] sm:$0xff]
        %v785 = vld [vmem:[%s194 + $0x1148] sm:$0xff]
        %v786 = vld [vmem:[%s194 + $0x1150] sm:$0xff]
        %v787 = vld [vmem:[%s194 + $0x1158] sm:$0xff]
        %v788 = vld [vmem:[%s194 + $0x1160] sm:$0xff]
        %v789 = vld [vmem:[%s194 + $0x1168] sm:$0xff]
        %v790 = vld [vmem:[%s194 + $0x1170] sm:$0xff]
        %v791 = vld [vmem:[%s194 + $0x1178] sm:$0xff]
        %v792 = vld [vmem:[%s194 + $0x1180] sm:$0xff]
        %v793 = vld [vmem:[%s194 + $0x1188] sm:$0xff]
        %v794 = vld [vmem:[%s194 + $0x1190] sm:$0xff]
        %v795 = vld [vmem:[%s194 + $0x1198] sm:$0xff]
        %v796 = vld [vmem:[%s194 + $0x11a0] sm:$0xff]
        %v797 = vld [vmem:[%s194 + $0x11a8] sm:$0xff]
        %v798 = vld [vmem:[%s194 + $0x11b0] sm:$0xff]
        %v799 = vld [vmem:[%s194 + $0x11b8] sm:$0xff]
        %v800 = vld [vmem:[%s194 + $0x11c0] sm:$0xff]
        %v801 = vld [vmem:[%s194 + $0x11c8] sm:$0xff]
        %v802 = vld [vmem:[%s194 + $0x11d0] sm:$0xff]
        %v803 = vld [vmem:[%s194 + $0x11d8] sm:$0xff]
        %v804 = vld [vmem:[%s194 + $0x11e0] sm:$0xff]
        %v805 = vld [vmem:[%s194 + $0x11e8] sm:$0xff]
        %v806 = vld [vmem:[%s194 + $0x11f0] sm:$0xff]
        %v807 = vld [vmem:[%s194 + $0x11f8] sm:$0xff]
        %v808 = vld [vmem:[%s194 + $0x1200] sm:$0xff]
        %v809 = vld [vmem:[%s194 + $0x1208] sm:$0xff]
        %v810 = vld [vmem:[%s194 + $0x1210] sm:$0xff]
        %v811 = vld [vmem:[%s194 + $0x1218] sm:$0xff]
        %v812 = vld [vmem:[%s194 + $0x1220] sm:$0xff]
        %v813 = vld [vmem:[%s194 + $0x1228] sm:$0xff]
        %v814 = vld [vmem:[%s194 + $0x1230] sm:$0xff]
        %v815 = vld [vmem:[%s194 + $0x1238] sm:$0xff]
        %v816 = vld [vmem:[%s194 + $0x1240] sm:$0xff]
        %v817 = vld [vmem:[%s194 + $0x1248] sm:$0xff]
        %v818 = vld [vmem:[%s194 + $0x1250] sm:$0xff]
        %v819 = vld [vmem:[%s194 + $0x1258] sm:$0xff]
        %v820 = vld [vmem:[%s194 + $0x1260] sm:$0xff]
        %v821 = vld [vmem:[%s194 + $0x1268] sm:$0xff]
        %v822 = vld [vmem:[%s194 + $0x1270] sm:$0xff]
        %v823 = vld [vmem:[%s194 + $0x1278] sm:$0xff]
        %v824 = vld [vmem:[%s194 + $0x1280] sm:$0xff]
        %v825 = vld [vmem:[%s194 + $0x1288] sm:$0xff]
        %v826 = vld [vmem:[%s194 + $0x1290] sm:$0xff]
        %v827 = vld [vmem:[%s194 + $0x1298] sm:$0xff]
        %v828 = vld [vmem:[%s194 + $0x12a0] sm:$0xff]
        %v829 = vld [vmem:[%s194 + $0x12a8] sm:$0xff]
        %v830 = vld [vmem:[%s194 + $0x12b0] sm:$0xff]
        %v831 = vld [vmem:[%s194 + $0x12b8] sm:$0xff]
        %v832 = vld [vmem:[%s194 + $0x12c0] sm:$0xff]
        %v833 = vld [vmem:[%s194 + $0x12c8] sm:$0xff]
        %v834 = vld [vmem:[%s194 + $0x12d0] sm:$0xff]
        %v835 = vld [vmem:[%s194 + $0x12d8] sm:$0xff]
        %v836 = vld [vmem:[%s194 + $0x12e0] sm:$0xff]
        %v837 = vld [vmem:[%s194 + $0x12e8] sm:$0xff]
        %v838 = vld [vmem:[%s194 + $0x12f0] sm:$0xff]
        %v839 = vld [vmem:[%s194 + $0x12f8] sm:$0xff]
        %v840 = vld [vmem:[%s194 + $0x1300] sm:$0xff]
        %v841 = vld [vmem:[%s194 + $0x1308] sm:$0xff]
        %v842 = vld [vmem:[%s194 + $0x1310] sm:$0xff]
        %v843 = vld [vmem:[%s194 + $0x1318] sm:$0xff]
        %v844 = vld [vmem:[%s194 + $0x1320] sm:$0xff]
        %v845 = vld [vmem:[%s194 + $0x1328] sm:$0xff]
        %v846 = vld [vmem:[%s194 + $0x1330] sm:$0xff]
        %v847 = vld [vmem:[%s194 + $0x1338] sm:$0xff]
        %v848 = vld [vmem:[%s194 + $0x1340] sm:$0xff]
        %v849 = vld [vmem:[%s194 + $0x1348] sm:$0xff]
        %v850 = vld [vmem:[%s194 + $0x1350] sm:$0xff]
        %v851 = vld [vmem:[%s194 + $0x1358] sm:$0xff]
        %v852 = vld [vmem:[%s194 + $0x1360] sm:$0xff]
        %v853 = vld [vmem:[%s194 + $0x1368] sm:$0xff]
        %v854 = vld [vmem:[%s194 + $0x1370] sm:$0xff]
        %v855 = vld [vmem:[%s194 + $0x1378] sm:$0xff]
        %v856 = vld [vmem:[%s194 + $0x1380] sm:$0xff]
        %v857 = vld [vmem:[%s194 + $0x1388] sm:$0xff]
        %v858 = vld [vmem:[%s194 + $0x1390] sm:$0xff]
        %v859 = vld [vmem:[%s194 + $0x1398] sm:$0xff]
        %v860 = vld [vmem:[%s194 + $0x13a0] sm:$0xff]
        %v861 = vld [vmem:[%s194 + $0x13a8] sm:$0xff]
        %v862 = vld [vmem:[%s194 + $0x13b0] sm:$0xff]
        %v863 = vld [vmem:[%s194 + $0x13b8] sm:$0xff]
        %v864 = vld [vmem:[%s194 + $0x13c0] sm:$0xff]
        %v865 = vld [vmem:[%s194 + $0x13c8] sm:$0xff]
        %v866 = vld [vmem:[%s194 + $0x13d0] sm:$0xff]
        %v867 = vld [vmem:[%s194 + $0x13d8] sm:$0xff]
        %v868 = vld [vmem:[%s194 + $0x13e0] sm:$0xff]
        %v869 = vld [vmem:[%s194 + $0x13e8] sm:$0xff]
        %v870 = vld [vmem:[%s194 + $0x13f0] sm:$0xff]
        %v871 = vld [vmem:[%s194 + $0x13f8] sm:$0xff]
        %v872 = vld [vmem:[%s194 + $0x1400] sm:$0xff]
        %v873 = vld [vmem:[%s194 + $0x1408] sm:$0xff]
        %v874 = vld [vmem:[%s194 + $0x1410] sm:$0xff]
        %v875 = vld [vmem:[%s194 + $0x1418] sm:$0xff]
        %v876 = vld [vmem:[%s194 + $0x1420] sm:$0xff]
        %v877 = vld [vmem:[%s194 + $0x1428] sm:$0xff]
        %v878 = vld [vmem:[%s194 + $0x1430] sm:$0xff]
        %v879 = vld [vmem:[%s194 + $0x1438] sm:$0xff]
        %v880 = vld [vmem:[%s194 + $0x1440] sm:$0xff]
        %v881 = vld [vmem:[%s194 + $0x1448] sm:$0xff]
        %v882 = vld [vmem:[%s194 + $0x1450] sm:$0xff]
        %v883 = vld [vmem:[%s194 + $0x1458] sm:$0xff]
        %v884 = vld [vmem:[%s194 + $0x1460] sm:$0xff]
        %v885 = vld [vmem:[%s194 + $0x1468] sm:$0xff]
        %v886 = vld [vmem:[%s194 + $0x1470] sm:$0xff]
        %v887 = vld [vmem:[%s194 + $0x1478] sm:$0xff]
        %v888 = vld [vmem:[%s194 + $0x1480] sm:$0xff]
        %v889 = vld [vmem:[%s194 + $0x1488] sm:$0xff]
        %v890 = vld [vmem:[%s194 + $0x1490] sm:$0xff]
        %v891 = vld [vmem:[%s194 + $0x1498] sm:$0xff]
        %v892 = vld [vmem:[%s194 + $0x14a0] sm:$0xff]
        %v893 = vld [vmem:[%s194 + $0x14a8] sm:$0xff]
        %v894 = vld [vmem:[%s194 + $0x14b0] sm:$0xff]
        %v895 = vld [vmem:[%s194 + $0x14b8] sm:$0xff]
        %v896 = vld [vmem:[%s194 + $0x14c0] sm:$0xff]
        %v897 = vld [vmem:[%s194 + $0x14c8] sm:$0xff]
        %v898 = vld [vmem:[%s194 + $0x14d0] sm:$0xff]
        %v899 = vld [vmem:[%s194 + $0x14d8] sm:$0xff]
        %v900 = vld [vmem:[%s194 + $0x14e0] sm:$0xff]
        %v901 = vld [vmem:[%s194 + $0x14e8] sm:$0xff]
        %v902 = vld [vmem:[%s194 + $0x14f0] sm:$0xff]
        %v903 = vld [vmem:[%s194 + $0x14f8] sm:$0xff]
        %v904 = vld [vmem:[%s194 + $0x1500] sm:$0xff]
        %v905 = vld [vmem:[%s194 + $0x1508] sm:$0xff]
        %v906 = vld [vmem:[%s194 + $0x1510] sm:$0xff]
        %v907 = vld [vmem:[%s194 + $0x1518] sm:$0xff]
        %v908 = vld [vmem:[%s194 + $0x1520] sm:$0xff]
        %v909 = vld [vmem:[%s194 + $0x1528] sm:$0xff]
        %v910 = vld [vmem:[%s194 + $0x1530] sm:$0xff]
        %v911 = vld [vmem:[%s194 + $0x1538] sm:$0xff]
        %v912 = vld [vmem:[%s194 + $0x1540] sm:$0xff]
        %v913 = vld [vmem:[%s194 + $0x1548] sm:$0xff]
        %v914 = vld [vmem:[%s194 + $0x1550] sm:$0xff]
        %v915 = vld [vmem:[%s194 + $0x1558] sm:$0xff]
        %v916 = vld [vmem:[%s194 + $0x1560] sm:$0xff]
        %v917 = vld [vmem:[%s194 + $0x1568] sm:$0xff]
        %v918 = vld [vmem:[%s194 + $0x1570] sm:$0xff]
        %v919 = vld [vmem:[%s194 + $0x1578] sm:$0xff]
        %v920 = vld [vmem:[%s194 + $0x1580] sm:$0xff]
        %v921 = vld [vmem:[%s194 + $0x1588] sm:$0xff]
        %v922 = vld [vmem:[%s194 + $0x1590] sm:$0xff]
        %v923 = vld [vmem:[%s194 + $0x1598] sm:$0xff]
        %v924 = vld [vmem:[%s194 + $0x15a0] sm:$0xff]
        %v925 = vld [vmem:[%s194 + $0x15a8] sm:$0xff]
        %v926 = vld [vmem:[%s194 + $0x15b0] sm:$0xff]
        %v927 = vld [vmem:[%s194 + $0x15b8] sm:$0xff]
        %v928 = vld [vmem:[%s194 + $0x15c0] sm:$0xff]
        %v929 = vld [vmem:[%s194 + $0x15c8] sm:$0xff]
        %v930 = vld [vmem:[%s194 + $0x15d0] sm:$0xff]
        %v931 = vld [vmem:[%s194 + $0x15d8] sm:$0xff]
        %v932 = vld [vmem:[%s194 + $0x15e0] sm:$0xff]
        %v933 = vld [vmem:[%s194 + $0x15e8] sm:$0xff]
        %v934 = vld [vmem:[%s194 + $0x15f0] sm:$0xff]
        %v935 = vld [vmem:[%s194 + $0x15f8] sm:$0xff]
        %v936 = vld [vmem:[%s194 + $0x1600] sm:$0xff]
        %v937 = vld [vmem:[%s194 + $0x1608] sm:$0xff]
        %v938 = vld [vmem:[%s194 + $0x1610] sm:$0xff]
        %v939 = vld [vmem:[%s194 + $0x1618] sm:$0xff]
        %v940 = vld [vmem:[%s194 + $0x1620] sm:$0xff]
        %v941 = vld [vmem:[%s194 + $0x1628] sm:$0xff]
        %v942 = vld [vmem:[%s194 + $0x1630] sm:$0xff]
        %v943 = vld [vmem:[%s194 + $0x1638] sm:$0xff]
        %v944 = vld [vmem:[%s194 + $0x1640] sm:$0xff]
        %v945 = vld [vmem:[%s194 + $0x1648] sm:$0xff]
        %v946 = vld [vmem:[%s194 + $0x1650] sm:$0xff]
        %v947 = vld [vmem:[%s194 + $0x1658] sm:$0xff]
        %v948 = vld [vmem:[%s194 + $0x1660] sm:$0xff]
        %v949 = vld [vmem:[%s194 + $0x1668] sm:$0xff]
        %v950 = vld [vmem:[%s194 + $0x1670] sm:$0xff]
        %v951 = vld [vmem:[%s194 + $0x1678] sm:$0xff]
        %v952 = vld [vmem:[%s194 + $0x1680] sm:$0xff]
        %v953 = vld [vmem:[%s194 + $0x1688] sm:$0xff]
        %v954 = vld [vmem:[%s194 + $0x1690] sm:$0xff]
        %v955 = vld [vmem:[%s194 + $0x1698] sm:$0xff]
        %v956 = vld [vmem:[%s194 + $0x16a0] sm:$0xff]
        %v957 = vld [vmem:[%s194 + $0x16a8] sm:$0xff]
        %v958 = vld [vmem:[%s194 + $0x16b0] sm:$0xff]
        %v959 = vld [vmem:[%s194 + $0x16b8] sm:$0xff]
        %v960 = vld [vmem:[%s194 + $0x16c0] sm:$0xff]
        %v961 = vld [vmem:[%s194 + $0x16c8] sm:$0xff]
        %v962 = vld [vmem:[%s194 + $0x16d0] sm:$0xff]
        %v963 = vld [vmem:[%s194 + $0x16d8] sm:$0xff]
        %v964 = vld [vmem:[%s194 + $0x16e0] sm:$0xff]
        %v965 = vld [vmem:[%s194 + $0x16e8] sm:$0xff]
        %v966 = vld [vmem:[%s194 + $0x16f0] sm:$0xff]
        %v967 = vld [vmem:[%s194 + $0x16f8] sm:$0xff]
        %v968 = vld [vmem:[%s194 + $0x1700] sm:$0xff]
        %v969 = vld [vmem:[%s194 + $0x1708] sm:$0xff]
        %v970 = vld [vmem:[%s194 + $0x1710] sm:$0xff]
        %v971 = vld [vmem:[%s194 + $0x1718] sm:$0xff]
        %v972 = vld [vmem:[%s194 + $0x1720] sm:$0xff]
        %v973 = vld [vmem:[%s194 + $0x1728] sm:$0xff]
        %v974 = vld [vmem:[%s194 + $0x1730] sm:$0xff]
        %v975 = vld [vmem:[%s194 + $0x1738] sm:$0xff]
        %v976 = vld [vmem:[%s194 + $0x1740] sm:$0xff]
        %v977 = vld [vmem:[%s194 + $0x1748] sm:$0xff]
        %v978 = vld [vmem:[%s194 + $0x1750] sm:$0xff]
        %v979 = vld [vmem:[%s194 + $0x1758] sm:$0xff]
        %v980 = vld [vmem:[%s194 + $0x1760] sm:$0xff]
        %v981 = vld [vmem:[%s194 + $0x1768] sm:$0xff]
        %v982 = vld [vmem:[%s194 + $0x1770] sm:$0xff]
        %v983 = vld [vmem:[%s194 + $0x1778] sm:$0xff]
        %v984 = vld [vmem:[%s194 + $0x1780] sm:$0xff]
        %v985 = vld [vmem:[%s194 + $0x1788] sm:$0xff]
        %v986 = vld [vmem:[%s194 + $0x1790] sm:$0xff]
        %v987 = vld [vmem:[%s194 + $0x1798] sm:$0xff]
        %v988 = vld [vmem:[%s194 + $0x17a0] sm:$0xff]
        %v989 = vld [vmem:[%s194 + $0x17a8] sm:$0xff]
        %v990 = vld [vmem:[%s194 + $0x17b0] sm:$0xff]
        %v991 = vld [vmem:[%s194 + $0x17b8] sm:$0xff]
        %v992 = vld [vmem:[%s194 + $0x17c0] sm:$0xff]
        %v993 = vld [vmem:[%s194 + $0x17c8] sm:$0xff]
        %v994 = vld [vmem:[%s194 + $0x17d0] sm:$0xff]
        %v995 = vld [vmem:[%s194 + $0x17d8] sm:$0xff]
        %v996 = vld [vmem:[%s194 + $0x17e0] sm:$0xff]
        %v997 = vld [vmem:[%s194 + $0x17e8] sm:$0xff]
        %v998 = vld [vmem:[%s194 + $0x17f0] sm:$0xff]
        %v999 = vld [vmem:[%s194 + $0x17f8] sm:$0xff]
        %v1000 = vld [vmem:[%s194 + $0x1800] sm:$0xff]
        %v1001 = vld [vmem:[%s194 + $0x1808] sm:$0xff]
        %v1002 = vld [vmem:[%s194 + $0x1810] sm:$0xff]
        %v1003 = vld [vmem:[%s194 + $0x1818] sm:$0xff]
        %v1004 = vld [vmem:[%s194 + $0x1820] sm:$0xff]
        %v1005 = vld [vmem:[%s194 + $0x1828] sm:$0xff]
        %v1006 = vld [vmem:[%s194 + $0x1830] sm:$0xff]
        %v1007 = vld [vmem:[%s194 + $0x1838] sm:$0xff]
        %v1008 = vld [vmem:[%s194 + $0x1840] sm:$0xff]
        %v1009 = vld [vmem:[%s194 + $0x1848] sm:$0xff]
        %v1010 = vld [vmem:[%s194 + $0x1850] sm:$0xff]
        %v1011 = vld [vmem:[%s194 + $0x1858] sm:$0xff]
        %v1012 = vld [vmem:[%s194 + $0x1860] sm:$0xff]
        %v1013 = vld [vmem:[%s194 + $0x1868] sm:$0xff]
        %v1014 = vld [vmem:[%s194 + $0x1870] sm:$0xff]
        %v1015 = vld [vmem:[%s194 + $0x1878] sm:$0xff]
        %v1016 = vld [vmem:[%s194 + $0x1880] sm:$0xff]
        %v1017 = vld [vmem:[%s194 + $0x1888] sm:$0xff]
        %v1018 = vld [vmem:[%s194 + $0x1890] sm:$0xff]
        %v1019 = vld [vmem:[%s194 + $0x1898] sm:$0xff]
        %v1020 = vld [vmem:[%s194 + $0x18a0] sm:$0xff]
        %v1021 = vld [vmem:[%s194 + $0x18a8] sm:$0xff]
        %v1022 = vld [vmem:[%s194 + $0x18b0] sm:$0xff]
        %v1023 = vld [vmem:[%s194 + $0x18b8] sm:$0xff]
        %v1024 = vld [vmem:[%s194 + $0x18c0] sm:$0xff]
        %v1025 = vld [vmem:[%s194 + $0x18c8] sm:$0xff]
        %v1026 = vld [vmem:[%s194 + $0x18d0] sm:$0xff]
        %v1027 = vld [vmem:[%s194 + $0x18d8] sm:$0xff]
        %v1028 = vld [vmem:[%s194 + $0x18e0] sm:$0xff]
        %v1029 = vld [vmem:[%s194 + $0x18e8] sm:$0xff]
        %v1030 = vld [vmem:[%s194 + $0x18f0] sm:$0xff]
        %v1031 = vld [vmem:[%s194 + $0x18f8] sm:$0xff]
        %v1032 = vld [vmem:[%s194 + $0x1900] sm:$0xff]
        %v1033 = vld [vmem:[%s194 + $0x1908] sm:$0xff]
        %v1034 = vld [vmem:[%s194 + $0x1910] sm:$0xff]
        %v1035 = vld [vmem:[%s194 + $0x1918] sm:$0xff]
        %v1036 = vld [vmem:[%s194 + $0x1920] sm:$0xff]
        %v1037 = vld [vmem:[%s194 + $0x1928] sm:$0xff]
        %v1038 = vld [vmem:[%s194 + $0x1930] sm:$0xff]
        %v1039 = vld [vmem:[%s194 + $0x1938] sm:$0xff]
        %v1040 = vld [vmem:[%s194 + $0x1940] sm:$0xff]
        %v1041 = vld [vmem:[%s194 + $0x1948] sm:$0xff]
        %v1042 = vld [vmem:[%s194 + $0x1950] sm:$0xff]
        %v1043 = vld [vmem:[%s194 + $0x1958] sm:$0xff]
        %v1044 = vld [vmem:[%s194 + $0x1960] sm:$0xff]
        %v1045 = vld [vmem:[%s194 + $0x1968] sm:$0xff]
        %v1046 = vld [vmem:[%s194 + $0x1970] sm:$0xff]
        %v1047 = vld [vmem:[%s194 + $0x1978] sm:$0xff]
        %v1048 = vld [vmem:[%s194 + $0x1980] sm:$0xff]
        %v1049 = vld [vmem:[%s194 + $0x1988] sm:$0xff]
        %v1050 = vld [vmem:[%s194 + $0x1990] sm:$0xff]
        %v1051 = vld [vmem:[%s194 + $0x1998] sm:$0xff]
        %v1052 = vld [vmem:[%s194 + $0x19a0] sm:$0xff]
        %v1053 = vld [vmem:[%s194 + $0x19a8] sm:$0xff]
        %v1054 = vld [vmem:[%s194 + $0x19b0] sm:$0xff]
        %v1055 = vld [vmem:[%s194 + $0x19b8] sm:$0xff]
        %v1056 = vld [vmem:[%s194 + $0x19c0] sm:$0xff]
        %v1057 = vld [vmem:[%s194 + $0x19c8] sm:$0xff]
        %v1058 = vld [vmem:[%s194 + $0x19d0] sm:$0xff]
        %v1059 = vld [vmem:[%s194 + $0x19d8] sm:$0xff]
        %v1060 = vld [vmem:[%s194 + $0x19e0] sm:$0xff]
        %v1061 = vld [vmem:[%s194 + $0x19e8] sm:$0xff]
        %v1062 = vld [vmem:[%s194 + $0x19f0] sm:$0xff]
        %v1063 = vld [vmem:[%s194 + $0x19f8] sm:$0xff]
        %v1064 = vld [vmem:[%s194 + $0x1a00] sm:$0xff]
        %v1065 = vld [vmem:[%s194 + $0x1a08] sm:$0xff]
        %v1066 = vld [vmem:[%s194 + $0x1a10] sm:$0xff]
        %v1067 = vld [vmem:[%s194 + $0x1a18] sm:$0xff]
        %v1068 = vld [vmem:[%s194 + $0x1a20] sm:$0xff]
        %v1069 = vld [vmem:[%s194 + $0x1a28] sm:$0xff]
        %v1070 = vld [vmem:[%s194 + $0x1a30] sm:$0xff]
        %v1071 = vld [vmem:[%s194 + $0x1a38] sm:$0xff]
        %v1072 = vld [vmem:[%s194 + $0x1a40] sm:$0xff]
        %v1073 = vld [vmem:[%s194 + $0x1a48] sm:$0xff]
        %v1074 = vld [vmem:[%s194 + $0x1a50] sm:$0xff]
        %v1075 = vld [vmem:[%s194 + $0x1a58] sm:$0xff]
        %v1076 = vld [vmem:[%s194 + $0x1a60] sm:$0xff]
        %v1077 = vld [vmem:[%s194 + $0x1a68] sm:$0xff]
        %v1078 = vld [vmem:[%s194 + $0x1a70] sm:$0xff]
        %v1079 = vld [vmem:[%s194 + $0x1a78] sm:$0xff]
        %v1080 = vld [vmem:[%s194 + $0x1a80] sm:$0xff]
        %v1081 = vld [vmem:[%s194 + $0x1a88] sm:$0xff]
        %v1082 = vld [vmem:[%s194 + $0x1a90] sm:$0xff]
        %v1083 = vld [vmem:[%s194 + $0x1a98] sm:$0xff]
        %v1084 = vld [vmem:[%s194 + $0x1aa0] sm:$0xff]
        %v1085 = vld [vmem:[%s194 + $0x1aa8] sm:$0xff]
        %v1086 = vld [vmem:[%s194 + $0x1ab0] sm:$0xff]
        %v1087 = vld [vmem:[%s194 + $0x1ab8] sm:$0xff]
        %v1088 = vld [vmem:[%s194 + $0x1ac0] sm:$0xff]
        %v1089 = vld [vmem:[%s194 + $0x1ac8] sm:$0xff]
        %v1090 = vld [vmem:[%s194 + $0x1ad0] sm:$0xff]
        %v1091 = vld [vmem:[%s194 + $0x1ad8] sm:$0xff]
        %v1092 = vld [vmem:[%s194 + $0x1ae0] sm:$0xff]
        %v1093 = vld [vmem:[%s194 + $0x1ae8] sm:$0xff]
        %v1094 = vld [vmem:[%s194 + $0x1af0] sm:$0xff]
        %v1095 = vld [vmem:[%s194 + $0x1af8] sm:$0xff]
        %v1096 = vld [vmem:[%s194 + $0x1b00] sm:$0xff]
        %v1097 = vld [vmem:[%s194 + $0x1b08] sm:$0xff]
        %v1098 = vld [vmem:[%s194 + $0x1b10] sm:$0xff]
        %v1099 = vld [vmem:[%s194 + $0x1b18] sm:$0xff]
        %v1100 = vld [vmem:[%s194 + $0x1b20] sm:$0xff]
        %v1101 = vld [vmem:[%s194 + $0x1b28] sm:$0xff]
        %v1102 = vld [vmem:[%s194 + $0x1b30] sm:$0xff]
        %v1103 = vld [vmem:[%s194 + $0x1b38] sm:$0xff]
        %v1104 = vld [vmem:[%s194 + $0x1b40] sm:$0xff]
        %v1105 = vld [vmem:[%s194 + $0x1b48] sm:$0xff]
        %v1106 = vld [vmem:[%s194 + $0x1b50] sm:$0xff]
        %v1107 = vld [vmem:[%s194 + $0x1b58] sm:$0xff]
        %v1108 = vld [vmem:[%s194 + $0x1b60] sm:$0xff]
        %v1109 = vld [vmem:[%s194 + $0x1b68] sm:$0xff]
        %v1110 = vld [vmem:[%s194 + $0x1b70] sm:$0xff]
        %v1111 = vld [vmem:[%s194 + $0x1b78] sm:$0xff]
        %v1112 = vld [vmem:[%s194 + $0x1b80] sm:$0xff]
        %v1113 = vld [vmem:[%s194 + $0x1b88] sm:$0xff]
        %v1114 = vld [vmem:[%s194 + $0x1b90] sm:$0xff]
        %v1115 = vld [vmem:[%s194 + $0x1b98] sm:$0xff]
        %v1116 = vld [vmem:[%s194 + $0x1ba0] sm:$0xff]
        %v1117 = vld [vmem:[%s194 + $0x1ba8] sm:$0xff]
        %v1118 = vld [vmem:[%s194 + $0x1bb0] sm:$0xff]
        %v1119 = vld [vmem:[%s194 + $0x1bb8] sm:$0xff]
        %v1120 = vld [vmem:[%s194 + $0x1bc0] sm:$0xff]
        %v1121 = vld [vmem:[%s194 + $0x1bc8] sm:$0xff]
        %v1122 = vld [vmem:[%s194 + $0x1bd0] sm:$0xff]
        %v1123 = vld [vmem:[%s194 + $0x1bd8] sm:$0xff]
        %v1124 = vld [vmem:[%s194 + $0x1be0] sm:$0xff]
        %v1125 = vld [vmem:[%s194 + $0x1be8] sm:$0xff]
        %v1126 = vld [vmem:[%s194 + $0x1bf0] sm:$0xff]
        %v1127 = vld [vmem:[%s194 + $0x1bf8] sm:$0xff]
        %v1128 = vld [vmem:[%s194 + $0x1c00] sm:$0xff]
        %v1129 = vld [vmem:[%s194 + $0x1c08] sm:$0xff]
        %v1130 = vld [vmem:[%s194 + $0x1c10] sm:$0xff]
        %v1131 = vld [vmem:[%s194 + $0x1c18] sm:$0xff]
        %v1132 = vld [vmem:[%s194 + $0x1c20] sm:$0xff]
        %v1133 = vld [vmem:[%s194 + $0x1c28] sm:$0xff]
        %v1134 = vld [vmem:[%s194 + $0x1c30] sm:$0xff]
        %v1135 = vld [vmem:[%s194 + $0x1c38] sm:$0xff]
        %v1136 = vld [vmem:[%s194 + $0x1c40] sm:$0xff]
        %v1137 = vld [vmem:[%s194 + $0x1c48] sm:$0xff]
        %v1138 = vld [vmem:[%s194 + $0x1c50] sm:$0xff]
        %v1139 = vld [vmem:[%s194 + $0x1c58] sm:$0xff]
        %v1140 = vld [vmem:[%s194 + $0x1c60] sm:$0xff]
        %v1141 = vld [vmem:[%s194 + $0x1c68] sm:$0xff]
        %v1142 = vld [vmem:[%s194 + $0x1c70] sm:$0xff]
        %v1143 = vld [vmem:[%s194 + $0x1c78] sm:$0xff]
        %v1144 = vld [vmem:[%s194 + $0x1c80] sm:$0xff]
        %v1145 = vld [vmem:[%s194 + $0x1c88] sm:$0xff]
        %v1146 = vld [vmem:[%s194 + $0x1c90] sm:$0xff]
        %v1147 = vld [vmem:[%s194 + $0x1c98] sm:$0xff]
        %v1148 = vld [vmem:[%s194 + $0x1ca0] sm:$0xff]
        %v1149 = vld [vmem:[%s194 + $0x1ca8] sm:$0xff]
        %v1150 = vld [vmem:[%s194 + $0x1cb0] sm:$0xff]
        %v1151 = vld [vmem:[%s194 + $0x1cb8] sm:$0xff]
        %v1152 = vld [vmem:[%s194 + $0x1cc0] sm:$0xff]
        %v1153 = vld [vmem:[%s194 + $0x1cc8] sm:$0xff]
        %v1154 = vld [vmem:[%s194 + $0x1cd0] sm:$0xff]
        %v1155 = vld [vmem:[%s194 + $0x1cd8] sm:$0xff]
        %v1156 = vld [vmem:[%s194 + $0x1ce0] sm:$0xff]
        %v1157 = vld [vmem:[%s194 + $0x1ce8] sm:$0xff]
        %v1158 = vld [vmem:[%s194 + $0x1cf0] sm:$0xff]
        %v1159 = vld [vmem:[%s194 + $0x1cf8] sm:$0xff]
        %v1160 = vld [vmem:[%s194 + $0x1d00] sm:$0xff]
        %v1161 = vld [vmem:[%s194 + $0x1d08] sm:$0xff]
        %v1162 = vld [vmem:[%s194 + $0x1d10] sm:$0xff]
        %v1163 = vld [vmem:[%s194 + $0x1d18] sm:$0xff]
        %v1164 = vld [vmem:[%s194 + $0x1d20] sm:$0xff]
        %v1165 = vld [vmem:[%s194 + $0x1d28] sm:$0xff]
        %v1166 = vld [vmem:[%s194 + $0x1d30] sm:$0xff]
        %v1167 = vld [vmem:[%s194 + $0x1d38] sm:$0xff]
        %v1168 = vld [vmem:[%s194 + $0x1d40] sm:$0xff]
        %v1169 = vld [vmem:[%s194 + $0x1d48] sm:$0xff]
        %v1170 = vld [vmem:[%s194 + $0x1d50] sm:$0xff]
        %v1171 = vld [vmem:[%s194 + $0x1d58] sm:$0xff]
        %v1172 = vld [vmem:[%s194 + $0x1d60] sm:$0xff]
        %v1173 = vld [vmem:[%s194 + $0x1d68] sm:$0xff]
        %v1174 = vld [vmem:[%s194 + $0x1d70] sm:$0xff]
        %v1175 = vld [vmem:[%s194 + $0x1d78] sm:$0xff]
        %v1176 = vld [vmem:[%s194 + $0x1d80] sm:$0xff]
        %v1177 = vld [vmem:[%s194 + $0x1d88] sm:$0xff]
        %v1178 = vld [vmem:[%s194 + $0x1d90] sm:$0xff]
        %v1179 = vld [vmem:[%s194 + $0x1d98] sm:$0xff]
        %v1180 = vld [vmem:[%s194 + $0x1da0] sm:$0xff]
        %v1181 = vld [vmem:[%s194 + $0x1da8] sm:$0xff]
        %v1182 = vld [vmem:[%s194 + $0x1db0] sm:$0xff]
        %v1183 = vld [vmem:[%s194 + $0x1db8] sm:$0xff]
        %v1184 = vld [vmem:[%s194 + $0x1dc0] sm:$0xff]
        %v1185 = vld [vmem:[%s194 + $0x1dc8] sm:$0xff]
        %v1186 = vld [vmem:[%s194 + $0x1dd0] sm:$0xff]
        %v1187 = vld [vmem:[%s194 + $0x1dd8] sm:$0xff]
        %v1188 = vld [vmem:[%s194 + $0x1de0] sm:$0xff]
        %v1189 = vld [vmem:[%s194 + $0x1de8] sm:$0xff]
        %v1190 = vld [vmem:[%s194 + $0x1df0] sm:$0xff]
        %v1191 = vld [vmem:[%s194 + $0x1df8] sm:$0xff]
        %v1192 = vld [vmem:[%s194 + $0x1e00] sm:$0xff]
        %v1193 = vld [vmem:[%s194 + $0x1e08] sm:$0xff]
        %v1194 = vld [vmem:[%s194 + $0x1e10] sm:$0xff]
        %v1195 = vld [vmem:[%s194 + $0x1e18] sm:$0xff]
        %v1196 = vld [vmem:[%s194 + $0x1e20] sm:$0xff]
        %v1197 = vld [vmem:[%s194 + $0x1e28] sm:$0xff]
        %v1198 = vld [vmem:[%s194 + $0x1e30] sm:$0xff]
        %v1199 = vld [vmem:[%s194 + $0x1e38] sm:$0xff]
        %v1200 = vld [vmem:[%s194 + $0x1e40] sm:$0xff]
        %v1201 = vld [vmem:[%s194 + $0x1e48] sm:$0xff]
        %v1202 = vld [vmem:[%s194 + $0x1e50] sm:$0xff]
        %v1203 = vld [vmem:[%s194 + $0x1e58] sm:$0xff]
        %v1204 = vld [vmem:[%s194 + $0x1e60] sm:$0xff]
        %v1205 = vld [vmem:[%s194 + $0x1e68] sm:$0xff]
        %v1206 = vld [vmem:[%s194 + $0x1e70] sm:$0xff]
        %v1207 = vld [vmem:[%s194 + $0x1e78] sm:$0xff]
        %v1208 = vld [vmem:[%s194 + $0x1e80] sm:$0xff]
        %v1209 = vld [vmem:[%s194 + $0x1e88] sm:$0xff]
        %v1210 = vld [vmem:[%s194 + $0x1e90] sm:$0xff]
        %v1211 = vld [vmem:[%s194 + $0x1e98] sm:$0xff]
        %v1212 = vld [vmem:[%s194 + $0x1ea0] sm:$0xff]
        %v1213 = vld [vmem:[%s194 + $0x1ea8] sm:$0xff]
        %v1214 = vld [vmem:[%s194 + $0x1eb0] sm:$0xff]
        %v1215 = vld [vmem:[%s194 + $0x1eb8] sm:$0xff]
        %v1216 = vld [vmem:[%s194 + $0x1ec0] sm:$0xff]
        %v1217 = vld [vmem:[%s194 + $0x1ec8] sm:$0xff]
        %v1218 = vld [vmem:[%s194 + $0x1ed0] sm:$0xff]
        %v1219 = vld [vmem:[%s194 + $0x1ed8] sm:$0xff]
        %v1220 = vld [vmem:[%s194 + $0x1ee0] sm:$0xff]
        %v1221 = vld [vmem:[%s194 + $0x1ee8] sm:$0xff]
        %v1222 = vld [vmem:[%s194 + $0x1ef0] sm:$0xff]
        %v1223 = vld [vmem:[%s194 + $0x1ef8] sm:$0xff]
        %v1224 = vld [vmem:[%s194 + $0x1f00] sm:$0xff]
        %v1225 = vld [vmem:[%s194 + $0x1f08] sm:$0xff]
        %v1226 = vld [vmem:[%s194 + $0x1f10] sm:$0xff]
        %v1227 = vld [vmem:[%s194 + $0x1f18] sm:$0xff]
        %v1228 = vld [vmem:[%s194 + $0x1f20] sm:$0xff]
        %v1229 = vld [vmem:[%s194 + $0x1f28] sm:$0xff]
        %v1230 = vld [vmem:[%s194 + $0x1f30] sm:$0xff]
        %v1231 = vld [vmem:[%s194 + $0x1f38] sm:$0xff]
        %v1232 = vld [vmem:[%s194 + $0x1f40] sm:$0xff]
        %v1233 = vld [vmem:[%s194 + $0x1f48] sm:$0xff]
        %v1234 = vld [vmem:[%s194 + $0x1f50] sm:$0xff]
        %v1235 = vld [vmem:[%s194 + $0x1f58] sm:$0xff]
        %v1236 = vld [vmem:[%s194 + $0x1f60] sm:$0xff]
        %v1237 = vld [vmem:[%s194 + $0x1f68] sm:$0xff]
        %v1238 = vld [vmem:[%s194 + $0x1f70] sm:$0xff]
        %v1239 = vld [vmem:[%s194 + $0x1f78] sm:$0xff]
        %v1240 = vld [vmem:[%s194 + $0x1f80] sm:$0xff]
        %v1241 = vld [vmem:[%s194 + $0x1f88] sm:$0xff]
        %v1242 = vld [vmem:[%s194 + $0x1f90] sm:$0xff]
        %v1243 = vld [vmem:[%s194 + $0x1f98] sm:$0xff]
        %v1244 = vld [vmem:[%s194 + $0x1fa0] sm:$0xff]
        %v1245 = vld [vmem:[%s194 + $0x1fa8] sm:$0xff]
        %v1246 = vld [vmem:[%s194 + $0x1fb0] sm:$0xff]
        %v1247 = vld [vmem:[%s194 + $0x1fb8] sm:$0xff]
        %v1248 = vld [vmem:[%s194 + $0x1fc0] sm:$0xff]
        %v1249 = vld [vmem:[%s194 + $0x1fc8] sm:$0xff]
        %v1250 = vld [vmem:[%s194 + $0x1fd0] sm:$0xff]
        %v1251 = vld [vmem:[%s194 + $0x1fd8] sm:$0xff]
        %v1252 = vld [vmem:[%s194 + $0x1fe0] sm:$0xff]
        %v1253 = vld [vmem:[%s194 + $0x1fe8] sm:$0xff]
        %v1254 = vld [vmem:[%s194 + $0x1ff0] sm:$0xff]
        %v1255 = vld [vmem:[%s194 + $0x1ff8] sm:$0xff]
        %v1256 = vld [vmem:[%s203] sm:$0xff]
        %v1257 = vld [vmem:[%s203 + $0x8] sm:$0xff]
        %v1258 = vld [vmem:[%s203 + $0x10] sm:$0xff]
        %v1259 = vld [vmem:[%s203 + $0x18] sm:$0xff]
        %v1260 = vld [vmem:[%s203 + $0x20] sm:$0xff]
        %v1261 = vld [vmem:[%s203 + $0x28] sm:$0xff]
        %v1262 = vld [vmem:[%s203 + $0x30] sm:$0xff]
        %v1263 = vld [vmem:[%s203 + $0x38] sm:$0xff]
        %v1264 = vld [vmem:[%s203 + $0x40] sm:$0xff]
        %v1265 = vld [vmem:[%s203 + $0x48] sm:$0xff]
        %v1266 = vld [vmem:[%s203 + $0x50] sm:$0xff]
        %v1267 = vld [vmem:[%s203 + $0x58] sm:$0xff]
        %v1268 = vld [vmem:[%s203 + $0x60] sm:$0xff]
        %v1269 = vld [vmem:[%s203 + $0x68] sm:$0xff]
        %v1270 = vld [vmem:[%s203 + $0x70] sm:$0xff]
        %v1271 = vld [vmem:[%s203 + $0x78] sm:$0xff]
        %v1272 = vld [vmem:[%s203 + $0x80] sm:$0xff]
        %v1273 = vld [vmem:[%s203 + $0x88] sm:$0xff]
        %v1274 = vld [vmem:[%s203 + $0x90] sm:$0xff]
        %v1275 = vld [vmem:[%s203 + $0x98] sm:$0xff]
        %v1276 = vld [vmem:[%s203 + $0xa0] sm:$0xff]
        %v1277 = vld [vmem:[%s203 + $0xa8] sm:$0xff]
        %v1278 = vld [vmem:[%s203 + $0xb0] sm:$0xff]
        %v1279 = vld [vmem:[%s203 + $0xb8] sm:$0xff]
        %v1280 = vld [vmem:[%s203 + $0xc0] sm:$0xff]
        %v1281 = vld [vmem:[%s203 + $0xc8] sm:$0xff]
        %v1282 = vld [vmem:[%s203 + $0xd0] sm:$0xff]
        %v1283 = vld [vmem:[%s203 + $0xd8] sm:$0xff]
        %v1284 = vld [vmem:[%s203 + $0xe0] sm:$0xff]
        %v1285 = vld [vmem:[%s203 + $0xe8] sm:$0xff]
        %v1286 = vld [vmem:[%s203 + $0xf0] sm:$0xff]
        %v1287 = vld [vmem:[%s203 + $0xf8] sm:$0xff]
        %v1288 = vld [vmem:[%s203 + $0x100] sm:$0xff]
        %v1289 = vld [vmem:[%s203 + $0x108] sm:$0xff]
        %v1290 = vld [vmem:[%s203 + $0x110] sm:$0xff]
        %v1291 = vld [vmem:[%s203 + $0x118] sm:$0xff]
        %v1292 = vld [vmem:[%s203 + $0x120] sm:$0xff]
        %v1293 = vld [vmem:[%s203 + $0x128] sm:$0xff]
        %v1294 = vld [vmem:[%s203 + $0x130] sm:$0xff]
        %v1295 = vld [vmem:[%s203 + $0x138] sm:$0xff]
        %v1296 = vld [vmem:[%s203 + $0x140] sm:$0xff]
        %v1297 = vld [vmem:[%s203 + $0x148] sm:$0xff]
        %v1298 = vld [vmem:[%s203 + $0x150] sm:$0xff]
        %v1299 = vld [vmem:[%s203 + $0x158] sm:$0xff]
        %v1300 = vld [vmem:[%s203 + $0x160] sm:$0xff]
        %v1301 = vld [vmem:[%s203 + $0x168] sm:$0xff]
        %v1302 = vld [vmem:[%s203 + $0x170] sm:$0xff]
        %v1303 = vld [vmem:[%s203 + $0x178] sm:$0xff]
        %v1304 = vld [vmem:[%s203 + $0x180] sm:$0xff]
        %v1305 = vld [vmem:[%s203 + $0x188] sm:$0xff]
        %v1306 = vld [vmem:[%s203 + $0x190] sm:$0xff]
        %v1307 = vld [vmem:[%s203 + $0x198] sm:$0xff]
        %v1308 = vld [vmem:[%s203 + $0x1a0] sm:$0xff]
        %v1309 = vld [vmem:[%s203 + $0x1a8] sm:$0xff]
        %v1310 = vld [vmem:[%s203 + $0x1b0] sm:$0xff]
        %v1311 = vld [vmem:[%s203 + $0x1b8] sm:$0xff]
        %v1312 = vld [vmem:[%s203 + $0x1c0] sm:$0xff]
        %v1313 = vld [vmem:[%s203 + $0x1c8] sm:$0xff]
        %v1314 = vld [vmem:[%s203 + $0x1d0] sm:$0xff]
        %v1315 = vld [vmem:[%s203 + $0x1d8] sm:$0xff]
        %v1316 = vld [vmem:[%s203 + $0x1e0] sm:$0xff]
        %v1317 = vld [vmem:[%s203 + $0x1e8] sm:$0xff]
        %v1318 = vld [vmem:[%s203 + $0x1f0] sm:$0xff]
        %v1319 = vld [vmem:[%s203 + $0x1f8] sm:$0xff]
        %v1320 = vld [vmem:[%s203 + $0x200] sm:$0xff]
        %v1321 = vld [vmem:[%s203 + $0x208] sm:$0xff]
        %v1322 = vld [vmem:[%s203 + $0x210] sm:$0xff]
        %v1323 = vld [vmem:[%s203 + $0x218] sm:$0xff]
        %v1324 = vld [vmem:[%s203 + $0x220] sm:$0xff]
        %v1325 = vld [vmem:[%s203 + $0x228] sm:$0xff]
        %v1326 = vld [vmem:[%s203 + $0x230] sm:$0xff]
        %v1327 = vld [vmem:[%s203 + $0x238] sm:$0xff]
        %v1328 = vld [vmem:[%s203 + $0x240] sm:$0xff]
        %v1329 = vld [vmem:[%s203 + $0x248] sm:$0xff]
        %v1330 = vld [vmem:[%s203 + $0x250] sm:$0xff]
        %v1331 = vld [vmem:[%s203 + $0x258] sm:$0xff]
        %v1332 = vld [vmem:[%s203 + $0x260] sm:$0xff]
        %v1333 = vld [vmem:[%s203 + $0x268] sm:$0xff]
        %v1334 = vld [vmem:[%s203 + $0x270] sm:$0xff]
        %v1335 = vld [vmem:[%s203 + $0x278] sm:$0xff]
        %v1336 = vld [vmem:[%s203 + $0x280] sm:$0xff]
        %v1337 = vld [vmem:[%s203 + $0x288] sm:$0xff]
        %v1338 = vld [vmem:[%s203 + $0x290] sm:$0xff]
        %v1339 = vld [vmem:[%s203 + $0x298] sm:$0xff]
        %v1340 = vld [vmem:[%s203 + $0x2a0] sm:$0xff]
        %v1341 = vld [vmem:[%s203 + $0x2a8] sm:$0xff]
        %v1342 = vld [vmem:[%s203 + $0x2b0] sm:$0xff]
        %v1343 = vld [vmem:[%s203 + $0x2b8] sm:$0xff]
        %v1344 = vld [vmem:[%s203 + $0x2c0] sm:$0xff]
        %v1345 = vld [vmem:[%s203 + $0x2c8] sm:$0xff]
        %v1346 = vld [vmem:[%s203 + $0x2d0] sm:$0xff]
        %v1347 = vld [vmem:[%s203 + $0x2d8] sm:$0xff]
        %v1348 = vld [vmem:[%s203 + $0x2e0] sm:$0xff]
        %v1349 = vld [vmem:[%s203 + $0x2e8] sm:$0xff]
        %v1350 = vld [vmem:[%s203 + $0x2f0] sm:$0xff]
        %v1351 = vld [vmem:[%s203 + $0x2f8] sm:$0xff]
        %v1352 = vld [vmem:[%s203 + $0x300] sm:$0xff]
        %v1353 = vld [vmem:[%s203 + $0x308] sm:$0xff]
        %v1354 = vld [vmem:[%s203 + $0x310] sm:$0xff]
        %v1355 = vld [vmem:[%s203 + $0x318] sm:$0xff]
        %v1356 = vld [vmem:[%s203 + $0x320] sm:$0xff]
        %v1357 = vld [vmem:[%s203 + $0x328] sm:$0xff]
        %v1358 = vld [vmem:[%s203 + $0x330] sm:$0xff]
        %v1359 = vld [vmem:[%s203 + $0x338] sm:$0xff]
        %v1360 = vld [vmem:[%s203 + $0x340] sm:$0xff]
        %v1361 = vld [vmem:[%s203 + $0x348] sm:$0xff]
        %v1362 = vld [vmem:[%s203 + $0x350] sm:$0xff]
        %v1363 = vld [vmem:[%s203 + $0x358] sm:$0xff]
        %v1364 = vld [vmem:[%s203 + $0x360] sm:$0xff]
        %v1365 = vld [vmem:[%s203 + $0x368] sm:$0xff]
        %v1366 = vld [vmem:[%s203 + $0x370] sm:$0xff]
        %v1367 = vld [vmem:[%s203 + $0x378] sm:$0xff]
        %v1368 = vld [vmem:[%s203 + $0x380] sm:$0xff]
        %v1369 = vld [vmem:[%s203 + $0x388] sm:$0xff]
        %v1370 = vld [vmem:[%s203 + $0x390] sm:$0xff]
        %v1371 = vld [vmem:[%s203 + $0x398] sm:$0xff]
        %v1372 = vld [vmem:[%s203 + $0x3a0] sm:$0xff]
        %v1373 = vld [vmem:[%s203 + $0x3a8] sm:$0xff]
        %v1374 = vld [vmem:[%s203 + $0x3b0] sm:$0xff]
        %v1375 = vld [vmem:[%s203 + $0x3b8] sm:$0xff]
        %v1376 = vld [vmem:[%s203 + $0x3c0] sm:$0xff]
        %v1377 = vld [vmem:[%s203 + $0x3c8] sm:$0xff]
        %v1378 = vld [vmem:[%s203 + $0x3d0] sm:$0xff]
        %v1379 = vld [vmem:[%s203 + $0x3d8] sm:$0xff]
        %v1380 = vld [vmem:[%s203 + $0x3e0] sm:$0xff]
        %v1381 = vld [vmem:[%s203 + $0x3e8] sm:$0xff]
        %v1382 = vld [vmem:[%s203 + $0x3f0] sm:$0xff]
        %v1383 = vld [vmem:[%s203 + $0x3f8] sm:$0xff]
        %v1384 = vld [vmem:[%s203 + $0x400] sm:$0xff]
        %v1385 = vld [vmem:[%s203 + $0x408] sm:$0xff]
        %v1386 = vld [vmem:[%s203 + $0x410] sm:$0xff]
        %v1387 = vld [vmem:[%s203 + $0x418] sm:$0xff]
        %v1388 = vld [vmem:[%s203 + $0x420] sm:$0xff]
        %v1389 = vld [vmem:[%s203 + $0x428] sm:$0xff]
        %v1390 = vld [vmem:[%s203 + $0x430] sm:$0xff]
        %v1391 = vld [vmem:[%s203 + $0x438] sm:$0xff]
        %v1392 = vld [vmem:[%s203 + $0x440] sm:$0xff]
        %v1393 = vld [vmem:[%s203 + $0x448] sm:$0xff]
        %v1394 = vld [vmem:[%s203 + $0x450] sm:$0xff]
        %v1395 = vld [vmem:[%s203 + $0x458] sm:$0xff]
        %v1396 = vld [vmem:[%s203 + $0x460] sm:$0xff]
        %v1397 = vld [vmem:[%s203 + $0x468] sm:$0xff]
        %v1398 = vld [vmem:[%s203 + $0x470] sm:$0xff]
        %v1399 = vld [vmem:[%s203 + $0x478] sm:$0xff]
        %v1400 = vld [vmem:[%s203 + $0x480] sm:$0xff]
        %v1401 = vld [vmem:[%s203 + $0x488] sm:$0xff]
        %v1402 = vld [vmem:[%s203 + $0x490] sm:$0xff]
        %v1403 = vld [vmem:[%s203 + $0x498] sm:$0xff]
        %v1404 = vld [vmem:[%s203 + $0x4a0] sm:$0xff]
        %v1405 = vld [vmem:[%s203 + $0x4a8] sm:$0xff]
        %v1406 = vld [vmem:[%s203 + $0x4b0] sm:$0xff]
        %v1407 = vld [vmem:[%s203 + $0x4b8] sm:$0xff]
        %v1408 = vld [vmem:[%s203 + $0x4c0] sm:$0xff]
        %v1409 = vld [vmem:[%s203 + $0x4c8] sm:$0xff]
        %v1410 = vld [vmem:[%s203 + $0x4d0] sm:$0xff]
        %v1411 = vld [vmem:[%s203 + $0x4d8] sm:$0xff]
        %v1412 = vld [vmem:[%s203 + $0x4e0] sm:$0xff]
        %v1413 = vld [vmem:[%s203 + $0x4e8] sm:$0xff]
        %v1414 = vld [vmem:[%s203 + $0x4f0] sm:$0xff]
        %v1415 = vld [vmem:[%s203 + $0x4f8] sm:$0xff]
        %v1416 = vld [vmem:[%s203 + $0x500] sm:$0xff]
        %v1417 = vld [vmem:[%s203 + $0x508] sm:$0xff]
        %v1418 = vld [vmem:[%s203 + $0x510] sm:$0xff]
        %v1419 = vld [vmem:[%s203 + $0x518] sm:$0xff]
        %v1420 = vld [vmem:[%s203 + $0x520] sm:$0xff]
        %v1421 = vld [vmem:[%s203 + $0x528] sm:$0xff]
        %v1422 = vld [vmem:[%s203 + $0x530] sm:$0xff]
        %v1423 = vld [vmem:[%s203 + $0x538] sm:$0xff]
        %v1424 = vld [vmem:[%s203 + $0x540] sm:$0xff]
        %v1425 = vld [vmem:[%s203 + $0x548] sm:$0xff]
        %v1426 = vld [vmem:[%s203 + $0x550] sm:$0xff]
        %v1427 = vld [vmem:[%s203 + $0x558] sm:$0xff]
        %v1428 = vld [vmem:[%s203 + $0x560] sm:$0xff]
        %v1429 = vld [vmem:[%s203 + $0x568] sm:$0xff]
        %v1430 = vld [vmem:[%s203 + $0x570] sm:$0xff]
        %v1431 = vld [vmem:[%s203 + $0x578] sm:$0xff]
        %v1432 = vld [vmem:[%s203 + $0x580] sm:$0xff]
        %v1433 = vld [vmem:[%s203 + $0x588] sm:$0xff]
        %v1434 = vld [vmem:[%s203 + $0x590] sm:$0xff]
        %v1435 = vld [vmem:[%s203 + $0x598] sm:$0xff]
        %v1436 = vld [vmem:[%s203 + $0x5a0] sm:$0xff]
        %v1437 = vld [vmem:[%s203 + $0x5a8] sm:$0xff]
        %v1438 = vld [vmem:[%s203 + $0x5b0] sm:$0xff]
        %v1439 = vld [vmem:[%s203 + $0x5b8] sm:$0xff]
        %v1440 = vld [vmem:[%s203 + $0x5c0] sm:$0xff]
        %v1441 = vld [vmem:[%s203 + $0x5c8] sm:$0xff]
        %v1442 = vld [vmem:[%s203 + $0x5d0] sm:$0xff]
        %v1443 = vld [vmem:[%s203 + $0x5d8] sm:$0xff]
        %v1444 = vld [vmem:[%s203 + $0x5e0] sm:$0xff]
        %v1445 = vld [vmem:[%s203 + $0x5e8] sm:$0xff]
        %v1446 = vld [vmem:[%s203 + $0x5f0] sm:$0xff]
        %v1447 = vld [vmem:[%s203 + $0x5f8] sm:$0xff]
        %v1448 = vld [vmem:[%s203 + $0x600] sm:$0xff]
        %v1449 = vld [vmem:[%s203 + $0x608] sm:$0xff]
        %v1450 = vld [vmem:[%s203 + $0x610] sm:$0xff]
        %v1451 = vld [vmem:[%s203 + $0x618] sm:$0xff]
        %v1452 = vld [vmem:[%s203 + $0x620] sm:$0xff]
        %v1453 = vld [vmem:[%s203 + $0x628] sm:$0xff]
        %v1454 = vld [vmem:[%s203 + $0x630] sm:$0xff]
        %v1455 = vld [vmem:[%s203 + $0x638] sm:$0xff]
        %v1456 = vld [vmem:[%s203 + $0x640] sm:$0xff]
        %v1457 = vld [vmem:[%s203 + $0x648] sm:$0xff]
        %v1458 = vld [vmem:[%s203 + $0x650] sm:$0xff]
        %v1459 = vld [vmem:[%s203 + $0x658] sm:$0xff]
        %v1460 = vld [vmem:[%s203 + $0x660] sm:$0xff]
        %v1461 = vld [vmem:[%s203 + $0x668] sm:$0xff]
        %v1462 = vld [vmem:[%s203 + $0x670] sm:$0xff]
        %v1463 = vld [vmem:[%s203 + $0x678] sm:$0xff]
        %v1464 = vld [vmem:[%s203 + $0x680] sm:$0xff]
        %v1465 = vld [vmem:[%s203 + $0x688] sm:$0xff]
        %v1466 = vld [vmem:[%s203 + $0x690] sm:$0xff]
        %v1467 = vld [vmem:[%s203 + $0x698] sm:$0xff]
        %v1468 = vld [vmem:[%s203 + $0x6a0] sm:$0xff]
        %v1469 = vld [vmem:[%s203 + $0x6a8] sm:$0xff]
        %v1470 = vld [vmem:[%s203 + $0x6b0] sm:$0xff]
        %v1471 = vld [vmem:[%s203 + $0x6b8] sm:$0xff]
        %v1472 = vld [vmem:[%s203 + $0x6c0] sm:$0xff]
        %v1473 = vld [vmem:[%s203 + $0x6c8] sm:$0xff]
        %v1474 = vld [vmem:[%s203 + $0x6d0] sm:$0xff]
        %v1475 = vld [vmem:[%s203 + $0x6d8] sm:$0xff]
        %v1476 = vld [vmem:[%s203 + $0x6e0] sm:$0xff]
        %v1477 = vld [vmem:[%s203 + $0x6e8] sm:$0xff]
        %v1478 = vld [vmem:[%s203 + $0x6f0] sm:$0xff]
        %v1479 = vld [vmem:[%s203 + $0x6f8] sm:$0xff]
        %v1480 = vld [vmem:[%s203 + $0x700] sm:$0xff]
        %v1481 = vld [vmem:[%s203 + $0x708] sm:$0xff]
        %v1482 = vld [vmem:[%s203 + $0x710] sm:$0xff]
        %v1483 = vld [vmem:[%s203 + $0x718] sm:$0xff]
        %v1484 = vld [vmem:[%s203 + $0x720] sm:$0xff]
        %v1485 = vld [vmem:[%s203 + $0x728] sm:$0xff]
        %v1486 = vld [vmem:[%s203 + $0x730] sm:$0xff]
        %v1487 = vld [vmem:[%s203 + $0x738] sm:$0xff]
        %v1488 = vld [vmem:[%s203 + $0x740] sm:$0xff]
        %v1489 = vld [vmem:[%s203 + $0x748] sm:$0xff]
        %v1490 = vld [vmem:[%s203 + $0x750] sm:$0xff]
        %v1491 = vld [vmem:[%s203 + $0x758] sm:$0xff]
        %v1492 = vld [vmem:[%s203 + $0x760] sm:$0xff]
        %v1493 = vld [vmem:[%s203 + $0x768] sm:$0xff]
        %v1494 = vld [vmem:[%s203 + $0x770] sm:$0xff]
        %v1495 = vld [vmem:[%s203 + $0x778] sm:$0xff]
        %v1496 = vld [vmem:[%s203 + $0x780] sm:$0xff]
        %v1497 = vld [vmem:[%s203 + $0x788] sm:$0xff]
        %v1498 = vld [vmem:[%s203 + $0x790] sm:$0xff]
        %v1499 = vld [vmem:[%s203 + $0x798] sm:$0xff]
        %v1500 = vld [vmem:[%s203 + $0x7a0] sm:$0xff]
        %v1501 = vld [vmem:[%s203 + $0x7a8] sm:$0xff]
        %v1502 = vld [vmem:[%s203 + $0x7b0] sm:$0xff]
        %v1503 = vld [vmem:[%s203 + $0x7b8] sm:$0xff]
        %v1504 = vld [vmem:[%s203 + $0x7c0] sm:$0xff]
        %v1505 = vld [vmem:[%s203 + $0x7c8] sm:$0xff]
        %v1506 = vld [vmem:[%s203 + $0x7d0] sm:$0xff]
        %v1507 = vld [vmem:[%s203 + $0x7d8] sm:$0xff]
        %v1508 = vld [vmem:[%s203 + $0x7e0] sm:$0xff]
        %v1509 = vld [vmem:[%s203 + $0x7e8] sm:$0xff]
        %v1510 = vld [vmem:[%s203 + $0x7f0] sm:$0xff]
        %v1511 = vld [vmem:[%s203 + $0x7f8] sm:$0xff]
        %v1512 = vld [vmem:[%s203 + $0x800] sm:$0xff]
        %v1513 = vld [vmem:[%s203 + $0x808] sm:$0xff]
        %v1514 = vld [vmem:[%s203 + $0x810] sm:$0xff]
        %v1515 = vld [vmem:[%s203 + $0x818] sm:$0xff]
        %v1516 = vld [vmem:[%s203 + $0x820] sm:$0xff]
        %v1517 = vld [vmem:[%s203 + $0x828] sm:$0xff]
        %v1518 = vld [vmem:[%s203 + $0x830] sm:$0xff]
        %v1519 = vld [vmem:[%s203 + $0x838] sm:$0xff]
        %v1520 = vld [vmem:[%s203 + $0x840] sm:$0xff]
        %v1521 = vld [vmem:[%s203 + $0x848] sm:$0xff]
        %v1522 = vld [vmem:[%s203 + $0x850] sm:$0xff]
        %v1523 = vld [vmem:[%s203 + $0x858] sm:$0xff]
        %v1524 = vld [vmem:[%s203 + $0x860] sm:$0xff]
        %v1525 = vld [vmem:[%s203 + $0x868] sm:$0xff]
        %v1526 = vld [vmem:[%s203 + $0x870] sm:$0xff]
        %v1527 = vld [vmem:[%s203 + $0x878] sm:$0xff]
        %v1528 = vld [vmem:[%s203 + $0x880] sm:$0xff]
        %v1529 = vld [vmem:[%s203 + $0x888] sm:$0xff]
        %v1530 = vld [vmem:[%s203 + $0x890] sm:$0xff]
        %v1531 = vld [vmem:[%s203 + $0x898] sm:$0xff]
        %v1532 = vld [vmem:[%s203 + $0x8a0] sm:$0xff]
        %v1533 = vld [vmem:[%s203 + $0x8a8] sm:$0xff]
        %v1534 = vld [vmem:[%s203 + $0x8b0] sm:$0xff]
        %v1535 = vld [vmem:[%s203 + $0x8b8] sm:$0xff]
        %v1536 = vld [vmem:[%s203 + $0x8c0] sm:$0xff]
        %v1537 = vld [vmem:[%s203 + $0x8c8] sm:$0xff]
        %v1538 = vld [vmem:[%s203 + $0x8d0] sm:$0xff]
        %v1539 = vld [vmem:[%s203 + $0x8d8] sm:$0xff]
        %v1540 = vld [vmem:[%s203 + $0x8e0] sm:$0xff]
        %v1541 = vld [vmem:[%s203 + $0x8e8] sm:$0xff]
        %v1542 = vld [vmem:[%s203 + $0x8f0] sm:$0xff]
        %v1543 = vld [vmem:[%s203 + $0x8f8] sm:$0xff]
        %v1544 = vld [vmem:[%s203 + $0x900] sm:$0xff]
        %v1545 = vld [vmem:[%s203 + $0x908] sm:$0xff]
        %v1546 = vld [vmem:[%s203 + $0x910] sm:$0xff]
        %v1547 = vld [vmem:[%s203 + $0x918] sm:$0xff]
        %v1548 = vld [vmem:[%s203 + $0x920] sm:$0xff]
        %v1549 = vld [vmem:[%s203 + $0x928] sm:$0xff]
        %v1550 = vld [vmem:[%s203 + $0x930] sm:$0xff]
        %v1551 = vld [vmem:[%s203 + $0x938] sm:$0xff]
        %v1552 = vld [vmem:[%s203 + $0x940] sm:$0xff]
        %v1553 = vld [vmem:[%s203 + $0x948] sm:$0xff]
        %v1554 = vld [vmem:[%s203 + $0x950] sm:$0xff]
        %v1555 = vld [vmem:[%s203 + $0x958] sm:$0xff]
        %v1556 = vld [vmem:[%s203 + $0x960] sm:$0xff]
        %v1557 = vld [vmem:[%s203 + $0x968] sm:$0xff]
        %v1558 = vld [vmem:[%s203 + $0x970] sm:$0xff]
        %v1559 = vld [vmem:[%s203 + $0x978] sm:$0xff]
        %v1560 = vld [vmem:[%s203 + $0x980] sm:$0xff]
        %v1561 = vld [vmem:[%s203 + $0x988] sm:$0xff]
        %v1562 = vld [vmem:[%s203 + $0x990] sm:$0xff]
        %v1563 = vld [vmem:[%s203 + $0x998] sm:$0xff]
        %v1564 = vld [vmem:[%s203 + $0x9a0] sm:$0xff]
        %v1565 = vld [vmem:[%s203 + $0x9a8] sm:$0xff]
        %v1566 = vld [vmem:[%s203 + $0x9b0] sm:$0xff]
        %v1567 = vld [vmem:[%s203 + $0x9b8] sm:$0xff]
        %v1568 = vld [vmem:[%s203 + $0x9c0] sm:$0xff]
        %v1569 = vld [vmem:[%s203 + $0x9c8] sm:$0xff]
        %v1570 = vld [vmem:[%s203 + $0x9d0] sm:$0xff]
        %v1571 = vld [vmem:[%s203 + $0x9d8] sm:$0xff]
        %v1572 = vld [vmem:[%s203 + $0x9e0] sm:$0xff]
        %v1573 = vld [vmem:[%s203 + $0x9e8] sm:$0xff]
        %v1574 = vld [vmem:[%s203 + $0x9f0] sm:$0xff]
        %v1575 = vld [vmem:[%s203 + $0x9f8] sm:$0xff]
        %v1576 = vld [vmem:[%s203 + $0xa00] sm:$0xff]
        %v1577 = vld [vmem:[%s203 + $0xa08] sm:$0xff]
        %v1578 = vld [vmem:[%s203 + $0xa10] sm:$0xff]
        %v1579 = vld [vmem:[%s203 + $0xa18] sm:$0xff]
        %v1580 = vld [vmem:[%s203 + $0xa20] sm:$0xff]
        %v1581 = vld [vmem:[%s203 + $0xa28] sm:$0xff]
        %v1582 = vld [vmem:[%s203 + $0xa30] sm:$0xff]
        %v1583 = vld [vmem:[%s203 + $0xa38] sm:$0xff]
        %v1584 = vld [vmem:[%s203 + $0xa40] sm:$0xff]
        %v1585 = vld [vmem:[%s203 + $0xa48] sm:$0xff]
        %v1586 = vld [vmem:[%s203 + $0xa50] sm:$0xff]
        %v1587 = vld [vmem:[%s203 + $0xa58] sm:$0xff]
        %v1588 = vld [vmem:[%s203 + $0xa60] sm:$0xff]
        %v1589 = vld [vmem:[%s203 + $0xa68] sm:$0xff]
        %v1590 = vld [vmem:[%s203 + $0xa70] sm:$0xff]
        %v1591 = vld [vmem:[%s203 + $0xa78] sm:$0xff]
        %v1592 = vld [vmem:[%s203 + $0xa80] sm:$0xff]
        %v1593 = vld [vmem:[%s203 + $0xa88] sm:$0xff]
        %v1594 = vld [vmem:[%s203 + $0xa90] sm:$0xff]
        %v1595 = vld [vmem:[%s203 + $0xa98] sm:$0xff]
        %v1596 = vld [vmem:[%s203 + $0xaa0] sm:$0xff]
        %v1597 = vld [vmem:[%s203 + $0xaa8] sm:$0xff]
        %v1598 = vld [vmem:[%s203 + $0xab0] sm:$0xff]
        %v1599 = vld [vmem:[%s203 + $0xab8] sm:$0xff]
        %v1600 = vld [vmem:[%s203 + $0xac0] sm:$0xff]
        %v1601 = vld [vmem:[%s203 + $0xac8] sm:$0xff]
        %v1602 = vld [vmem:[%s203 + $0xad0] sm:$0xff]
        %v1603 = vld [vmem:[%s203 + $0xad8] sm:$0xff]
        %v1604 = vld [vmem:[%s203 + $0xae0] sm:$0xff]
        %v1605 = vld [vmem:[%s203 + $0xae8] sm:$0xff]
        %v1606 = vld [vmem:[%s203 + $0xaf0] sm:$0xff]
        %v1607 = vld [vmem:[%s203 + $0xaf8] sm:$0xff]
        %v1608 = vld [vmem:[%s203 + $0xb00] sm:$0xff]
        %v1609 = vld [vmem:[%s203 + $0xb08] sm:$0xff]
        %v1610 = vld [vmem:[%s203 + $0xb10] sm:$0xff]
        %v1611 = vld [vmem:[%s203 + $0xb18] sm:$0xff]
        %v1612 = vld [vmem:[%s203 + $0xb20] sm:$0xff]
        %v1613 = vld [vmem:[%s203 + $0xb28] sm:$0xff]
        %v1614 = vld [vmem:[%s203 + $0xb30] sm:$0xff]
        %v1615 = vld [vmem:[%s203 + $0xb38] sm:$0xff]
        %v1616 = vld [vmem:[%s203 + $0xb40] sm:$0xff]
        %v1617 = vld [vmem:[%s203 + $0xb48] sm:$0xff]
        %v1618 = vld [vmem:[%s203 + $0xb50] sm:$0xff]
        %v1619 = vld [vmem:[%s203 + $0xb58] sm:$0xff]
        %v1620 = vld [vmem:[%s203 + $0xb60] sm:$0xff]
        %v1621 = vld [vmem:[%s203 + $0xb68] sm:$0xff]
        %v1622 = vld [vmem:[%s203 + $0xb70] sm:$0xff]
        %v1623 = vld [vmem:[%s203 + $0xb78] sm:$0xff]
        %v1624 = vld [vmem:[%s203 + $0xb80] sm:$0xff]
        %v1625 = vld [vmem:[%s203 + $0xb88] sm:$0xff]
        %v1626 = vld [vmem:[%s203 + $0xb90] sm:$0xff]
        %v1627 = vld [vmem:[%s203 + $0xb98] sm:$0xff]
        %v1628 = vld [vmem:[%s203 + $0xba0] sm:$0xff]
        %v1629 = vld [vmem:[%s203 + $0xba8] sm:$0xff]
        %v1630 = vld [vmem:[%s203 + $0xbb0] sm:$0xff]
        %v1631 = vld [vmem:[%s203 + $0xbb8] sm:$0xff]
        %v1632 = vld [vmem:[%s203 + $0xbc0] sm:$0xff]
        %v1633 = vld [vmem:[%s203 + $0xbc8] sm:$0xff]
        %v1634 = vld [vmem:[%s203 + $0xbd0] sm:$0xff]
        %v1635 = vld [vmem:[%s203 + $0xbd8] sm:$0xff]
        %v1636 = vld [vmem:[%s203 + $0xbe0] sm:$0xff]
        %v1637 = vld [vmem:[%s203 + $0xbe8] sm:$0xff]
        %v1638 = vld [vmem:[%s203 + $0xbf0] sm:$0xff]
        %v1639 = vld [vmem:[%s203 + $0xbf8] sm:$0xff]
        %v1640 = vld [vmem:[%s203 + $0xc00] sm:$0xff]
        %v1641 = vld [vmem:[%s203 + $0xc08] sm:$0xff]
        %v1642 = vld [vmem:[%s203 + $0xc10] sm:$0xff]
        %v1643 = vld [vmem:[%s203 + $0xc18] sm:$0xff]
        %v1644 = vld [vmem:[%s203 + $0xc20] sm:$0xff]
        %v1645 = vld [vmem:[%s203 + $0xc28] sm:$0xff]
        %v1646 = vld [vmem:[%s203 + $0xc30] sm:$0xff]
        %v1647 = vld [vmem:[%s203 + $0xc38] sm:$0xff]
        %v1648 = vld [vmem:[%s203 + $0xc40] sm:$0xff]
        %v1649 = vld [vmem:[%s203 + $0xc48] sm:$0xff]
        %v1650 = vld [vmem:[%s203 + $0xc50] sm:$0xff]
        %v1651 = vld [vmem:[%s203 + $0xc58] sm:$0xff]
        %v1652 = vld [vmem:[%s203 + $0xc60] sm:$0xff]
        %v1653 = vld [vmem:[%s203 + $0xc68] sm:$0xff]
        %v1654 = vld [vmem:[%s203 + $0xc70] sm:$0xff]
        %v1655 = vld [vmem:[%s203 + $0xc78] sm:$0xff]
        %v1656 = vld [vmem:[%s203 + $0xc80] sm:$0xff]
        %v1657 = vld [vmem:[%s203 + $0xc88] sm:$0xff]
        %v1658 = vld [vmem:[%s203 + $0xc90] sm:$0xff]
        %v1659 = vld [vmem:[%s203 + $0xc98] sm:$0xff]
        %v1660 = vld [vmem:[%s203 + $0xca0] sm:$0xff]
        %v1661 = vld [vmem:[%s203 + $0xca8] sm:$0xff]
        %v1662 = vld [vmem:[%s203 + $0xcb0] sm:$0xff]
        %v1663 = vld [vmem:[%s203 + $0xcb8] sm:$0xff]
        %v1664 = vld [vmem:[%s203 + $0xcc0] sm:$0xff]
        %v1665 = vld [vmem:[%s203 + $0xcc8] sm:$0xff]
        %v1666 = vld [vmem:[%s203 + $0xcd0] sm:$0xff]
        %v1667 = vld [vmem:[%s203 + $0xcd8] sm:$0xff]
        %v1668 = vld [vmem:[%s203 + $0xce0] sm:$0xff]
        %v1669 = vld [vmem:[%s203 + $0xce8] sm:$0xff]
        %v1670 = vld [vmem:[%s203 + $0xcf0] sm:$0xff]
        %v1671 = vld [vmem:[%s203 + $0xcf8] sm:$0xff]
        %v1672 = vld [vmem:[%s203 + $0xd00] sm:$0xff]
        %v1673 = vld [vmem:[%s203 + $0xd08] sm:$0xff]
        %v1674 = vld [vmem:[%s203 + $0xd10] sm:$0xff]
        %v1675 = vld [vmem:[%s203 + $0xd18] sm:$0xff]
        %v1676 = vld [vmem:[%s203 + $0xd20] sm:$0xff]
        %v1677 = vld [vmem:[%s203 + $0xd28] sm:$0xff]
        %v1678 = vld [vmem:[%s203 + $0xd30] sm:$0xff]
        %v1679 = vld [vmem:[%s203 + $0xd38] sm:$0xff]
        %v1680 = vld [vmem:[%s203 + $0xd40] sm:$0xff]
        %v1681 = vld [vmem:[%s203 + $0xd48] sm:$0xff]
        %v1682 = vld [vmem:[%s203 + $0xd50] sm:$0xff]
        %v1683 = vld [vmem:[%s203 + $0xd58] sm:$0xff]
        %v1684 = vld [vmem:[%s203 + $0xd60] sm:$0xff]
        %v1685 = vld [vmem:[%s203 + $0xd68] sm:$0xff]
        %v1686 = vld [vmem:[%s203 + $0xd70] sm:$0xff]
        %v1687 = vld [vmem:[%s203 + $0xd78] sm:$0xff]
        %v1688 = vld [vmem:[%s203 + $0xd80] sm:$0xff]
        %v1689 = vld [vmem:[%s203 + $0xd88] sm:$0xff]
        %v1690 = vld [vmem:[%s203 + $0xd90] sm:$0xff]
        %v1691 = vld [vmem:[%s203 + $0xd98] sm:$0xff]
        %v1692 = vld [vmem:[%s203 + $0xda0] sm:$0xff]
        %v1693 = vld [vmem:[%s203 + $0xda8] sm:$0xff]
        %v1694 = vld [vmem:[%s203 + $0xdb0] sm:$0xff]
        %v1695 = vld [vmem:[%s203 + $0xdb8] sm:$0xff]
        %v1696 = vld [vmem:[%s203 + $0xdc0] sm:$0xff]
        %v1697 = vld [vmem:[%s203 + $0xdc8] sm:$0xff]
        %v1698 = vld [vmem:[%s203 + $0xdd0] sm:$0xff]
        %v1699 = vld [vmem:[%s203 + $0xdd8] sm:$0xff]
        %v1700 = vld [vmem:[%s203 + $0xde0] sm:$0xff]
        %v1701 = vld [vmem:[%s203 + $0xde8] sm:$0xff]
        %v1702 = vld [vmem:[%s203 + $0xdf0] sm:$0xff]
        %v1703 = vld [vmem:[%s203 + $0xdf8] sm:$0xff]
        %v1704 = vld [vmem:[%s203 + $0xe00] sm:$0xff]
        %v1705 = vld [vmem:[%s203 + $0xe08] sm:$0xff]
        %v1706 = vld [vmem:[%s203 + $0xe10] sm:$0xff]
        %v1707 = vld [vmem:[%s203 + $0xe18] sm:$0xff]
        %v1708 = vld [vmem:[%s203 + $0xe20] sm:$0xff]
        %v1709 = vld [vmem:[%s203 + $0xe28] sm:$0xff]
        %v1710 = vld [vmem:[%s203 + $0xe30] sm:$0xff]
        %v1711 = vld [vmem:[%s203 + $0xe38] sm:$0xff]
        %v1712 = vld [vmem:[%s203 + $0xe40] sm:$0xff]
        %v1713 = vld [vmem:[%s203 + $0xe48] sm:$0xff]
        %v1714 = vld [vmem:[%s203 + $0xe50] sm:$0xff]
        %v1715 = vld [vmem:[%s203 + $0xe58] sm:$0xff]
        %v1716 = vld [vmem:[%s203 + $0xe60] sm:$0xff]
        %v1717 = vld [vmem:[%s203 + $0xe68] sm:$0xff]
        %v1718 = vld [vmem:[%s203 + $0xe70] sm:$0xff]
        %v1719 = vld [vmem:[%s203 + $0xe78] sm:$0xff]
        %v1720 = vld [vmem:[%s203 + $0xe80] sm:$0xff]
        %v1721 = vld [vmem:[%s203 + $0xe88] sm:$0xff]
        %v1722 = vld [vmem:[%s203 + $0xe90] sm:$0xff]
        %v1723 = vld [vmem:[%s203 + $0xe98] sm:$0xff]
        %v1724 = vld [vmem:[%s203 + $0xea0] sm:$0xff]
        %v1725 = vld [vmem:[%s203 + $0xea8] sm:$0xff]
        %v1726 = vld [vmem:[%s203 + $0xeb0] sm:$0xff]
        %v1727 = vld [vmem:[%s203 + $0xeb8] sm:$0xff]
        %v1728 = vld [vmem:[%s203 + $0xec0] sm:$0xff]
        %v1729 = vld [vmem:[%s203 + $0xec8] sm:$0xff]
        %v1730 = vld [vmem:[%s203 + $0xed0] sm:$0xff]
        %v1731 = vld [vmem:[%s203 + $0xed8] sm:$0xff]
        %v1732 = vld [vmem:[%s203 + $0xee0] sm:$0xff]
        %v1733 = vld [vmem:[%s203 + $0xee8] sm:$0xff]
        %v1734 = vld [vmem:[%s203 + $0xef0] sm:$0xff]
        %v1735 = vld [vmem:[%s203 + $0xef8] sm:$0xff]
        %v1736 = vld [vmem:[%s203 + $0xf00] sm:$0xff]
        %v1737 = vld [vmem:[%s203 + $0xf08] sm:$0xff]
        %v1738 = vld [vmem:[%s203 + $0xf10] sm:$0xff]
        %v1739 = vld [vmem:[%s203 + $0xf18] sm:$0xff]
        %v1740 = vld [vmem:[%s203 + $0xf20] sm:$0xff]
        %v1741 = vld [vmem:[%s203 + $0xf28] sm:$0xff]
        %v1742 = vld [vmem:[%s203 + $0xf30] sm:$0xff]
        %v1743 = vld [vmem:[%s203 + $0xf38] sm:$0xff]
        %v1744 = vld [vmem:[%s203 + $0xf40] sm:$0xff]
        %v1745 = vld [vmem:[%s203 + $0xf48] sm:$0xff]
        %v1746 = vld [vmem:[%s203 + $0xf50] sm:$0xff]
        %v1747 = vld [vmem:[%s203 + $0xf58] sm:$0xff]
        %v1748 = vld [vmem:[%s203 + $0xf60] sm:$0xff]
        %v1749 = vld [vmem:[%s203 + $0xf68] sm:$0xff]
        %v1750 = vld [vmem:[%s203 + $0xf70] sm:$0xff]
        %v1751 = vld [vmem:[%s203 + $0xf78] sm:$0xff]
        %v1752 = vld [vmem:[%s203 + $0xf80] sm:$0xff]
        %v1753 = vld [vmem:[%s203 + $0xf88] sm:$0xff]
        %v1754 = vld [vmem:[%s203 + $0xf90] sm:$0xff]
        %v1755 = vld [vmem:[%s203 + $0xf98] sm:$0xff]
        %v1756 = vld [vmem:[%s203 + $0xfa0] sm:$0xff]
        %v1757 = vld [vmem:[%s203 + $0xfa8] sm:$0xff]
        %v1758 = vld [vmem:[%s203 + $0xfb0] sm:$0xff]
        %v1759 = vld [vmem:[%s203 + $0xfb8] sm:$0xff]
        %v1760 = vld [vmem:[%s203 + $0xfc0] sm:$0xff]
        %v1761 = vld [vmem:[%s203 + $0xfc8] sm:$0xff]
        %v1762 = vld [vmem:[%s203 + $0xfd0] sm:$0xff]
        %v1763 = vld [vmem:[%s203 + $0xfd8] sm:$0xff]
        %v1764 = vld [vmem:[%s203 + $0xfe0] sm:$0xff]
        %v1765 = vld [vmem:[%s203 + $0xfe8] sm:$0xff]
        %v1766 = vld [vmem:[%s203 + $0xff0] sm:$0xff]
        %v1767 = vld [vmem:[%s203 + $0xff8] sm:$0xff]
        %v1768 = vadd.f32 %v232, %v1256
        %v1769 = vadd.f32 %v233, %v1257
        %v1770 = vadd.f32 %v234, %v1258
        %v1771 = vadd.f32 %v235, %v1259
        %v1772 = vadd.f32 %v236, %v1260
        %v1773 = vadd.f32 %v237, %v1261
        %v1774 = vadd.f32 %v238, %v1262
        %v1775 = vadd.f32 %v239, %v1263
        %v1776 = vadd.f32 %v240, %v1264
        %v1777 = vadd.f32 %v241, %v1265
        %v1778 = vadd.f32 %v242, %v1266
        %v1779 = vadd.f32 %v243, %v1267
        %v1780 = vadd.f32 %v244, %v1268
        %v1781 = vadd.f32 %v245, %v1269
        %v1782 = vadd.f32 %v246, %v1270
        %v1783 = vadd.f32 %v247, %v1271
        %v1784 = vadd.f32 %v248, %v1272
        %v1785 = vadd.f32 %v249, %v1273
        %v1786 = vadd.f32 %v250, %v1274
        %v1787 = vadd.f32 %v251, %v1275
        %v1788 = vadd.f32 %v252, %v1276
        %v1789 = vadd.f32 %v253, %v1277
        %v1790 = vadd.f32 %v254, %v1278
        %v1791 = vadd.f32 %v255, %v1279
        %v1792 = vadd.f32 %v256, %v1280
        %v1793 = vadd.f32 %v257, %v1281
        %v1794 = vadd.f32 %v258, %v1282
        %v1795 = vadd.f32 %v259, %v1283
        %v1796 = vadd.f32 %v260, %v1284
        %v1797 = vadd.f32 %v261, %v1285
        %v1798 = vadd.f32 %v262, %v1286
        %v1799 = vadd.f32 %v263, %v1287
        %v1800 = vadd.f32 %v264, %v1288
        %v1801 = vadd.f32 %v265, %v1289
        %v1802 = vadd.f32 %v266, %v1290
        %v1803 = vadd.f32 %v267, %v1291
        %v1804 = vadd.f32 %v268, %v1292
        %v1805 = vadd.f32 %v269, %v1293
        %v1806 = vadd.f32 %v270, %v1294
        %v1807 = vadd.f32 %v271, %v1295
        %v1808 = vadd.f32 %v272, %v1296
        %v1809 = vadd.f32 %v273, %v1297
        %v1810 = vadd.f32 %v274, %v1298
        %v1811 = vadd.f32 %v275, %v1299
        %v1812 = vadd.f32 %v276, %v1300
        %v1813 = vadd.f32 %v277, %v1301
        %v1814 = vadd.f32 %v278, %v1302
        %v1815 = vadd.f32 %v279, %v1303
        %v1816 = vadd.f32 %v280, %v1304
        %v1817 = vadd.f32 %v281, %v1305
        %v1818 = vadd.f32 %v282, %v1306
        %v1819 = vadd.f32 %v283, %v1307
        %v1820 = vadd.f32 %v284, %v1308
        %v1821 = vadd.f32 %v285, %v1309
        %v1822 = vadd.f32 %v286, %v1310
        %v1823 = vadd.f32 %v287, %v1311
        %v1824 = vadd.f32 %v288, %v1312
        %v1825 = vadd.f32 %v289, %v1313
        %v1826 = vadd.f32 %v290, %v1314
        %v1827 = vadd.f32 %v291, %v1315
        %v1828 = vadd.f32 %v292, %v1316
        %v1829 = vadd.f32 %v293, %v1317
        %v1830 = vadd.f32 %v294, %v1318
        %v1831 = vadd.f32 %v295, %v1319
        %v1832 = vadd.f32 %v296, %v1320
        %v1833 = vadd.f32 %v297, %v1321
        %v1834 = vadd.f32 %v298, %v1322
        %v1835 = vadd.f32 %v299, %v1323
        %v1836 = vadd.f32 %v300, %v1324
        %v1837 = vadd.f32 %v301, %v1325
        %v1838 = vadd.f32 %v302, %v1326
        %v1839 = vadd.f32 %v303, %v1327
        %v1840 = vadd.f32 %v304, %v1328
        %v1841 = vadd.f32 %v305, %v1329
        %v1842 = vadd.f32 %v306, %v1330
        %v1843 = vadd.f32 %v307, %v1331
        %v1844 = vadd.f32 %v308, %v1332
        %v1845 = vadd.f32 %v309, %v1333
        %v1846 = vadd.f32 %v310, %v1334
        %v1847 = vadd.f32 %v311, %v1335
        %v1848 = vadd.f32 %v312, %v1336
        %v1849 = vadd.f32 %v313, %v1337
        %v1850 = vadd.f32 %v314, %v1338
        %v1851 = vadd.f32 %v315, %v1339
        %v1852 = vadd.f32 %v316, %v1340
        %v1853 = vadd.f32 %v317, %v1341
        %v1854 = vadd.f32 %v318, %v1342
        %v1855 = vadd.f32 %v319, %v1343
        %v1856 = vadd.f32 %v320, %v1344
        %v1857 = vadd.f32 %v321, %v1345
        %v1858 = vadd.f32 %v322, %v1346
        %v1859 = vadd.f32 %v323, %v1347
        %v1860 = vadd.f32 %v324, %v1348
        %v1861 = vadd.f32 %v325, %v1349
        %v1862 = vadd.f32 %v326, %v1350
        %v1863 = vadd.f32 %v327, %v1351
        %v1864 = vadd.f32 %v328, %v1352
        %v1865 = vadd.f32 %v329, %v1353
        %v1866 = vadd.f32 %v330, %v1354
        %v1867 = vadd.f32 %v331, %v1355
        %v1868 = vadd.f32 %v332, %v1356
        %v1869 = vadd.f32 %v333, %v1357
        %v1870 = vadd.f32 %v334, %v1358
        %v1871 = vadd.f32 %v335, %v1359
        %v1872 = vadd.f32 %v336, %v1360
        %v1873 = vadd.f32 %v337, %v1361
        %v1874 = vadd.f32 %v338, %v1362
        %v1875 = vadd.f32 %v339, %v1363
        %v1876 = vadd.f32 %v340, %v1364
        %v1877 = vadd.f32 %v341, %v1365
        %v1878 = vadd.f32 %v342, %v1366
        %v1879 = vadd.f32 %v343, %v1367
        %v1880 = vadd.f32 %v344, %v1368
        %v1881 = vadd.f32 %v345, %v1369
        %v1882 = vadd.f32 %v346, %v1370
        %v1883 = vadd.f32 %v347, %v1371
        %v1884 = vadd.f32 %v348, %v1372
        %v1885 = vadd.f32 %v349, %v1373
        %v1886 = vadd.f32 %v350, %v1374
        %v1887 = vadd.f32 %v351, %v1375
        %v1888 = vadd.f32 %v352, %v1376
        %v1889 = vadd.f32 %v353, %v1377
        %v1890 = vadd.f32 %v354, %v1378
        %v1891 = vadd.f32 %v355, %v1379
        %v1892 = vadd.f32 %v356, %v1380
        %v1893 = vadd.f32 %v357, %v1381
        %v1894 = vadd.f32 %v358, %v1382
        %v1895 = vadd.f32 %v359, %v1383
        %v1896 = vadd.f32 %v360, %v1384
        %v1897 = vadd.f32 %v361, %v1385
        %v1898 = vadd.f32 %v362, %v1386
        %v1899 = vadd.f32 %v363, %v1387
        %v1900 = vadd.f32 %v364, %v1388
        %v1901 = vadd.f32 %v365, %v1389
        %v1902 = vadd.f32 %v366, %v1390
        %v1903 = vadd.f32 %v367, %v1391
        %v1904 = vadd.f32 %v368, %v1392
        %v1905 = vadd.f32 %v369, %v1393
        %v1906 = vadd.f32 %v370, %v1394
        %v1907 = vadd.f32 %v371, %v1395
        %v1908 = vadd.f32 %v372, %v1396
        %v1909 = vadd.f32 %v373, %v1397
        %v1910 = vadd.f32 %v374, %v1398
        %v1911 = vadd.f32 %v375, %v1399
        %v1912 = vadd.f32 %v376, %v1400
        %v1913 = vadd.f32 %v377, %v1401
        %v1914 = vadd.f32 %v378, %v1402
        %v1915 = vadd.f32 %v379, %v1403
        %v1916 = vadd.f32 %v380, %v1404
        %v1917 = vadd.f32 %v381, %v1405
        %v1918 = vadd.f32 %v382, %v1406
        %v1919 = vadd.f32 %v383, %v1407
        %v1920 = vadd.f32 %v384, %v1408
        %v1921 = vadd.f32 %v385, %v1409
        %v1922 = vadd.f32 %v386, %v1410
        %v1923 = vadd.f32 %v387, %v1411
        %v1924 = vadd.f32 %v388, %v1412
        %v1925 = vadd.f32 %v389, %v1413
        %v1926 = vadd.f32 %v390, %v1414
        %v1927 = vadd.f32 %v391, %v1415
        %v1928 = vadd.f32 %v392, %v1416
        %v1929 = vadd.f32 %v393, %v1417
        %v1930 = vadd.f32 %v394, %v1418
        %v1931 = vadd.f32 %v395, %v1419
        %v1932 = vadd.f32 %v396, %v1420
        %v1933 = vadd.f32 %v397, %v1421
        %v1934 = vadd.f32 %v398, %v1422
        %v1935 = vadd.f32 %v399, %v1423
        %v1936 = vadd.f32 %v400, %v1424
        %v1937 = vadd.f32 %v401, %v1425
        %v1938 = vadd.f32 %v402, %v1426
        %v1939 = vadd.f32 %v403, %v1427
        %v1940 = vadd.f32 %v404, %v1428
        %v1941 = vadd.f32 %v405, %v1429
        %v1942 = vadd.f32 %v406, %v1430
        %v1943 = vadd.f32 %v407, %v1431
        %v1944 = vadd.f32 %v408, %v1432
        %v1945 = vadd.f32 %v409, %v1433
        %v1946 = vadd.f32 %v410, %v1434
        %v1947 = vadd.f32 %v411, %v1435
        %v1948 = vadd.f32 %v412, %v1436
        %v1949 = vadd.f32 %v413, %v1437
        %v1950 = vadd.f32 %v414, %v1438
        %v1951 = vadd.f32 %v415, %v1439
        %v1952 = vadd.f32 %v416, %v1440
        %v1953 = vadd.f32 %v417, %v1441
        %v1954 = vadd.f32 %v418, %v1442
        %v1955 = vadd.f32 %v419, %v1443
        %v1956 = vadd.f32 %v420, %v1444
        %v1957 = vadd.f32 %v421, %v1445
        %v1958 = vadd.f32 %v422, %v1446
        %v1959 = vadd.f32 %v423, %v1447
        %v1960 = vadd.f32 %v424, %v1448
        %v1961 = vadd.f32 %v425, %v1449
        %v1962 = vadd.f32 %v426, %v1450
        %v1963 = vadd.f32 %v427, %v1451
        %v1964 = vadd.f32 %v428, %v1452
        %v1965 = vadd.f32 %v429, %v1453
        %v1966 = vadd.f32 %v430, %v1454
        %v1967 = vadd.f32 %v431, %v1455
        %v1968 = vadd.f32 %v432, %v1456
        %v1969 = vadd.f32 %v433, %v1457
        %v1970 = vadd.f32 %v434, %v1458
        %v1971 = vadd.f32 %v435, %v1459
        %v1972 = vadd.f32 %v436, %v1460
        %v1973 = vadd.f32 %v437, %v1461
        %v1974 = vadd.f32 %v438, %v1462
        %v1975 = vadd.f32 %v439, %v1463
        %v1976 = vadd.f32 %v440, %v1464
        %v1977 = vadd.f32 %v441, %v1465
        %v1978 = vadd.f32 %v442, %v1466
        %v1979 = vadd.f32 %v443, %v1467
        %v1980 = vadd.f32 %v444, %v1468
        %v1981 = vadd.f32 %v445, %v1469
        %v1982 = vadd.f32 %v446, %v1470
        %v1983 = vadd.f32 %v447, %v1471
        %v1984 = vadd.f32 %v448, %v1472
        %v1985 = vadd.f32 %v449, %v1473
        %v1986 = vadd.f32 %v450, %v1474
        %v1987 = vadd.f32 %v451, %v1475
        %v1988 = vadd.f32 %v452, %v1476
        %v1989 = vadd.f32 %v453, %v1477
        %v1990 = vadd.f32 %v454, %v1478
        %v1991 = vadd.f32 %v455, %v1479
        %v1992 = vadd.f32 %v456, %v1480
        %v1993 = vadd.f32 %v457, %v1481
        %v1994 = vadd.f32 %v458, %v1482
        %v1995 = vadd.f32 %v459, %v1483
        %v1996 = vadd.f32 %v460, %v1484
        %v1997 = vadd.f32 %v461, %v1485
        %v1998 = vadd.f32 %v462, %v1486
        %v1999 = vadd.f32 %v463, %v1487
        %v2000 = vadd.f32 %v464, %v1488
        %v2001 = vadd.f32 %v465, %v1489
        %v2002 = vadd.f32 %v466, %v1490
        %v2003 = vadd.f32 %v467, %v1491
        %v2004 = vadd.f32 %v468, %v1492
        %v2005 = vadd.f32 %v469, %v1493
        %v2006 = vadd.f32 %v470, %v1494
        %v2007 = vadd.f32 %v471, %v1495
        %v2008 = vadd.f32 %v472, %v1496
        %v2009 = vadd.f32 %v473, %v1497
        %v2010 = vadd.f32 %v474, %v1498
        %v2011 = vadd.f32 %v475, %v1499
        %v2012 = vadd.f32 %v476, %v1500
        %v2013 = vadd.f32 %v477, %v1501
        %v2014 = vadd.f32 %v478, %v1502
        %v2015 = vadd.f32 %v479, %v1503
        %v2016 = vadd.f32 %v480, %v1504
        %v2017 = vadd.f32 %v481, %v1505
        %v2018 = vadd.f32 %v482, %v1506
        %v2019 = vadd.f32 %v483, %v1507
        %v2020 = vadd.f32 %v484, %v1508
        %v2021 = vadd.f32 %v485, %v1509
        %v2022 = vadd.f32 %v486, %v1510
        %v2023 = vadd.f32 %v487, %v1511
        %v2024 = vadd.f32 %v488, %v1512
        %v2025 = vadd.f32 %v489, %v1513
        %v2026 = vadd.f32 %v490, %v1514
        %v2027 = vadd.f32 %v491, %v1515
        %v2028 = vadd.f32 %v492, %v1516
        %v2029 = vadd.f32 %v493, %v1517
        %v2030 = vadd.f32 %v494, %v1518
        %v2031 = vadd.f32 %v495, %v1519
        %v2032 = vadd.f32 %v496, %v1520
        %v2033 = vadd.f32 %v497, %v1521
        %v2034 = vadd.f32 %v498, %v1522
        %v2035 = vadd.f32 %v499, %v1523
        %v2036 = vadd.f32 %v500, %v1524
        %v2037 = vadd.f32 %v501, %v1525
        %v2038 = vadd.f32 %v502, %v1526
        %v2039 = vadd.f32 %v503, %v1527
        %v2040 = vadd.f32 %v504, %v1528
        %v2041 = vadd.f32 %v505, %v1529
        %v2042 = vadd.f32 %v506, %v1530
        %v2043 = vadd.f32 %v507, %v1531
        %v2044 = vadd.f32 %v508, %v1532
        %v2045 = vadd.f32 %v509, %v1533
        %v2046 = vadd.f32 %v510, %v1534
        %v2047 = vadd.f32 %v511, %v1535
        %v2048 = vadd.f32 %v512, %v1536
        %v2049 = vadd.f32 %v513, %v1537
        %v2050 = vadd.f32 %v514, %v1538
        %v2051 = vadd.f32 %v515, %v1539
        %v2052 = vadd.f32 %v516, %v1540
        %v2053 = vadd.f32 %v517, %v1541
        %v2054 = vadd.f32 %v518, %v1542
        %v2055 = vadd.f32 %v519, %v1543
        %v2056 = vadd.f32 %v520, %v1544
        %v2057 = vadd.f32 %v521, %v1545
        %v2058 = vadd.f32 %v522, %v1546
        %v2059 = vadd.f32 %v523, %v1547
        %v2060 = vadd.f32 %v524, %v1548
        %v2061 = vadd.f32 %v525, %v1549
        %v2062 = vadd.f32 %v526, %v1550
        %v2063 = vadd.f32 %v527, %v1551
        %v2064 = vadd.f32 %v528, %v1552
        %v2065 = vadd.f32 %v529, %v1553
        %v2066 = vadd.f32 %v530, %v1554
        %v2067 = vadd.f32 %v531, %v1555
        %v2068 = vadd.f32 %v532, %v1556
        %v2069 = vadd.f32 %v533, %v1557
        %v2070 = vadd.f32 %v534, %v1558
        %v2071 = vadd.f32 %v535, %v1559
        %v2072 = vadd.f32 %v536, %v1560
        %v2073 = vadd.f32 %v537, %v1561
        %v2074 = vadd.f32 %v538, %v1562
        %v2075 = vadd.f32 %v539, %v1563
        %v2076 = vadd.f32 %v540, %v1564
        %v2077 = vadd.f32 %v541, %v1565
        %v2078 = vadd.f32 %v542, %v1566
        %v2079 = vadd.f32 %v543, %v1567
        %v2080 = vadd.f32 %v544, %v1568
        %v2081 = vadd.f32 %v545, %v1569
        %v2082 = vadd.f32 %v546, %v1570
        %v2083 = vadd.f32 %v547, %v1571
        %v2084 = vadd.f32 %v548, %v1572
        %v2085 = vadd.f32 %v549, %v1573
        %v2086 = vadd.f32 %v550, %v1574
        %v2087 = vadd.f32 %v551, %v1575
        %v2088 = vadd.f32 %v552, %v1576
        %v2089 = vadd.f32 %v553, %v1577
        %v2090 = vadd.f32 %v554, %v1578
        %v2091 = vadd.f32 %v555, %v1579
        %v2092 = vadd.f32 %v556, %v1580
        %v2093 = vadd.f32 %v557, %v1581
        %v2094 = vadd.f32 %v558, %v1582
        %v2095 = vadd.f32 %v559, %v1583
        %v2096 = vadd.f32 %v560, %v1584
        %v2097 = vadd.f32 %v561, %v1585
        %v2098 = vadd.f32 %v562, %v1586
        %v2099 = vadd.f32 %v563, %v1587
        %v2100 = vadd.f32 %v564, %v1588
        %v2101 = vadd.f32 %v565, %v1589
        %v2102 = vadd.f32 %v566, %v1590
        %v2103 = vadd.f32 %v567, %v1591
        %v2104 = vadd.f32 %v568, %v1592
        %v2105 = vadd.f32 %v569, %v1593
        %v2106 = vadd.f32 %v570, %v1594
        %v2107 = vadd.f32 %v571, %v1595
        %v2108 = vadd.f32 %v572, %v1596
        %v2109 = vadd.f32 %v573, %v1597
        %v2110 = vadd.f32 %v574, %v1598
        %v2111 = vadd.f32 %v575, %v1599
        %v2112 = vadd.f32 %v576, %v1600
        %v2113 = vadd.f32 %v577, %v1601
        %v2114 = vadd.f32 %v578, %v1602
        %v2115 = vadd.f32 %v579, %v1603
        %v2116 = vadd.f32 %v580, %v1604
        %v2117 = vadd.f32 %v581, %v1605
        %v2118 = vadd.f32 %v582, %v1606
        %v2119 = vadd.f32 %v583, %v1607
        %v2120 = vadd.f32 %v584, %v1608
        %v2121 = vadd.f32 %v585, %v1609
        %v2122 = vadd.f32 %v586, %v1610
        %v2123 = vadd.f32 %v587, %v1611
        %v2124 = vadd.f32 %v588, %v1612
        %v2125 = vadd.f32 %v589, %v1613
        %v2126 = vadd.f32 %v590, %v1614
        %v2127 = vadd.f32 %v591, %v1615
        %v2128 = vadd.f32 %v592, %v1616
        %v2129 = vadd.f32 %v593, %v1617
        %v2130 = vadd.f32 %v594, %v1618
        %v2131 = vadd.f32 %v595, %v1619
        %v2132 = vadd.f32 %v596, %v1620
        %v2133 = vadd.f32 %v597, %v1621
        %v2134 = vadd.f32 %v598, %v1622
        %v2135 = vadd.f32 %v599, %v1623
        %v2136 = vadd.f32 %v600, %v1624
        %v2137 = vadd.f32 %v601, %v1625
        %v2138 = vadd.f32 %v602, %v1626
        %v2139 = vadd.f32 %v603, %v1627
        %v2140 = vadd.f32 %v604, %v1628
        %v2141 = vadd.f32 %v605, %v1629
        %v2142 = vadd.f32 %v606, %v1630
        %v2143 = vadd.f32 %v607, %v1631
        %v2144 = vadd.f32 %v608, %v1632
        %v2145 = vadd.f32 %v609, %v1633
        %v2146 = vadd.f32 %v610, %v1634
        %v2147 = vadd.f32 %v611, %v1635
        %v2148 = vadd.f32 %v612, %v1636
        %v2149 = vadd.f32 %v613, %v1637
        %v2150 = vadd.f32 %v614, %v1638
        %v2151 = vadd.f32 %v615, %v1639
        %v2152 = vadd.f32 %v616, %v1640
        %v2153 = vadd.f32 %v617, %v1641
        %v2154 = vadd.f32 %v618, %v1642
        %v2155 = vadd.f32 %v619, %v1643
        %v2156 = vadd.f32 %v620, %v1644
        %v2157 = vadd.f32 %v621, %v1645
        %v2158 = vadd.f32 %v622, %v1646
        %v2159 = vadd.f32 %v623, %v1647
        %v2160 = vadd.f32 %v624, %v1648
        %v2161 = vadd.f32 %v625, %v1649
        %v2162 = vadd.f32 %v626, %v1650
        %v2163 = vadd.f32 %v627, %v1651
        %v2164 = vadd.f32 %v628, %v1652
        %v2165 = vadd.f32 %v629, %v1653
        %v2166 = vadd.f32 %v630, %v1654
        %v2167 = vadd.f32 %v631, %v1655
        %v2168 = vadd.f32 %v632, %v1656
        %v2169 = vadd.f32 %v633, %v1657
        %v2170 = vadd.f32 %v634, %v1658
        %v2171 = vadd.f32 %v635, %v1659
        %v2172 = vadd.f32 %v636, %v1660
        %v2173 = vadd.f32 %v637, %v1661
        %v2174 = vadd.f32 %v638, %v1662
        %v2175 = vadd.f32 %v639, %v1663
        %v2176 = vadd.f32 %v640, %v1664
        %v2177 = vadd.f32 %v641, %v1665
        %v2178 = vadd.f32 %v642, %v1666
        %v2179 = vadd.f32 %v643, %v1667
        %v2180 = vadd.f32 %v644, %v1668
        %v2181 = vadd.f32 %v645, %v1669
        %v2182 = vadd.f32 %v646, %v1670
        %v2183 = vadd.f32 %v647, %v1671
        %v2184 = vadd.f32 %v648, %v1672
        %v2185 = vadd.f32 %v649, %v1673
        %v2186 = vadd.f32 %v650, %v1674
        %v2187 = vadd.f32 %v651, %v1675
        %v2188 = vadd.f32 %v652, %v1676
        %v2189 = vadd.f32 %v653, %v1677
        %v2190 = vadd.f32 %v654, %v1678
        %v2191 = vadd.f32 %v655, %v1679
        %v2192 = vadd.f32 %v656, %v1680
        %v2193 = vadd.f32 %v657, %v1681
        %v2194 = vadd.f32 %v658, %v1682
        %v2195 = vadd.f32 %v659, %v1683
        %v2196 = vadd.f32 %v660, %v1684
        %v2197 = vadd.f32 %v661, %v1685
        %v2198 = vadd.f32 %v662, %v1686
        %v2199 = vadd.f32 %v663, %v1687
        %v2200 = vadd.f32 %v664, %v1688
        %v2201 = vadd.f32 %v665, %v1689
        %v2202 = vadd.f32 %v666, %v1690
        %v2203 = vadd.f32 %v667, %v1691
        %v2204 = vadd.f32 %v668, %v1692
        %v2205 = vadd.f32 %v669, %v1693
        %v2206 = vadd.f32 %v670, %v1694
        %v2207 = vadd.f32 %v671, %v1695
        %v2208 = vadd.f32 %v672, %v1696
        %v2209 = vadd.f32 %v673, %v1697
        %v2210 = vadd.f32 %v674, %v1698
        %v2211 = vadd.f32 %v675, %v1699
        %v2212 = vadd.f32 %v676, %v1700
        %v2213 = vadd.f32 %v677, %v1701
        %v2214 = vadd.f32 %v678, %v1702
        %v2215 = vadd.f32 %v679, %v1703
        %v2216 = vadd.f32 %v680, %v1704
        %v2217 = vadd.f32 %v681, %v1705
        %v2218 = vadd.f32 %v682, %v1706
        %v2219 = vadd.f32 %v683, %v1707
        %v2220 = vadd.f32 %v684, %v1708
        %v2221 = vadd.f32 %v685, %v1709
        %v2222 = vadd.f32 %v686, %v1710
        %v2223 = vadd.f32 %v687, %v1711
        %v2224 = vadd.f32 %v688, %v1712
        %v2225 = vadd.f32 %v689, %v1713
        %v2226 = vadd.f32 %v690, %v1714
        %v2227 = vadd.f32 %v691, %v1715
        %v2228 = vadd.f32 %v692, %v1716
        %v2229 = vadd.f32 %v693, %v1717
        %v2230 = vadd.f32 %v694, %v1718
        %v2231 = vadd.f32 %v695, %v1719
        %v2232 = vadd.f32 %v696, %v1720
        %v2233 = vadd.f32 %v697, %v1721
        %v2234 = vadd.f32 %v698, %v1722
        %v2235 = vadd.f32 %v699, %v1723
        %v2236 = vadd.f32 %v700, %v1724
        %v2237 = vadd.f32 %v701, %v1725
        %v2238 = vadd.f32 %v702, %v1726
        %v2239 = vadd.f32 %v703, %v1727
        %v2240 = vadd.f32 %v704, %v1728
        %v2241 = vadd.f32 %v705, %v1729
        %v2242 = vadd.f32 %v706, %v1730
        %v2243 = vadd.f32 %v707, %v1731
        %v2244 = vadd.f32 %v708, %v1732
        %v2245 = vadd.f32 %v709, %v1733
        %v2246 = vadd.f32 %v710, %v1734
        %v2247 = vadd.f32 %v711, %v1735
        %v2248 = vadd.f32 %v712, %v1736
        %v2249 = vadd.f32 %v713, %v1737
        %v2250 = vadd.f32 %v714, %v1738
        %v2251 = vadd.f32 %v715, %v1739
        %v2252 = vadd.f32 %v716, %v1740
        %v2253 = vadd.f32 %v717, %v1741
        %v2254 = vadd.f32 %v718, %v1742
        %v2255 = vadd.f32 %v719, %v1743
        %v2256 = vadd.f32 %v720, %v1744
        %v2257 = vadd.f32 %v721, %v1745
        %v2258 = vadd.f32 %v722, %v1746
        %v2259 = vadd.f32 %v723, %v1747
        %v2260 = vadd.f32 %v724, %v1748
        %v2261 = vadd.f32 %v725, %v1749
        %v2262 = vadd.f32 %v726, %v1750
        %v2263 = vadd.f32 %v727, %v1751
        %v2264 = vadd.f32 %v728, %v1752
        %v2265 = vadd.f32 %v729, %v1753
        %v2266 = vadd.f32 %v730, %v1754
        %v2267 = vadd.f32 %v731, %v1755
        %v2268 = vadd.f32 %v732, %v1756
        %v2269 = vadd.f32 %v733, %v1757
        %v2270 = vadd.f32 %v734, %v1758
        %v2271 = vadd.f32 %v735, %v1759
        %v2272 = vadd.f32 %v736, %v1760
        %v2273 = vadd.f32 %v737, %v1761
        %v2274 = vadd.f32 %v738, %v1762
        %v2275 = vadd.f32 %v739, %v1763
        %v2276 = vadd.f32 %v740, %v1764
        %v2277 = vadd.f32 %v741, %v1765
        %v2278 = vadd.f32 %v742, %v1766
        %v2279 = vadd.f32 %v743, %v1767
        %v2280 = vadd.f32 %v744, %v1256
        %v2281 = vadd.f32 %v745, %v1257
        %v2282 = vadd.f32 %v746, %v1258
        %v2283 = vadd.f32 %v747, %v1259
        %v2284 = vadd.f32 %v748, %v1260
        %v2285 = vadd.f32 %v749, %v1261
        %v2286 = vadd.f32 %v750, %v1262
        %v2287 = vadd.f32 %v751, %v1263
        %v2288 = vadd.f32 %v752, %v1264
        %v2289 = vadd.f32 %v753, %v1265
        %v2290 = vadd.f32 %v754, %v1266
        %v2291 = vadd.f32 %v755, %v1267
        %v2292 = vadd.f32 %v756, %v1268
        %v2293 = vadd.f32 %v757, %v1269
        %v2294 = vadd.f32 %v758, %v1270
        %v2295 = vadd.f32 %v759, %v1271
        %v2296 = vadd.f32 %v760, %v1272
        %v2297 = vadd.f32 %v761, %v1273
        %v2298 = vadd.f32 %v762, %v1274
        %v2299 = vadd.f32 %v763, %v1275
        %v2300 = vadd.f32 %v764, %v1276
        %v2301 = vadd.f32 %v765, %v1277
        %v2302 = vadd.f32 %v766, %v1278
        %v2303 = vadd.f32 %v767, %v1279
        %v2304 = vadd.f32 %v768, %v1280
        %v2305 = vadd.f32 %v769, %v1281
        %v2306 = vadd.f32 %v770, %v1282
        %v2307 = vadd.f32 %v771, %v1283
        %v2308 = vadd.f32 %v772, %v1284
        %v2309 = vadd.f32 %v773, %v1285
        %v2310 = vadd.f32 %v774, %v1286
        %v2311 = vadd.f32 %v775, %v1287
        %v2312 = vadd.f32 %v776, %v1288
        %v2313 = vadd.f32 %v777, %v1289
        %v2314 = vadd.f32 %v778, %v1290
        %v2315 = vadd.f32 %v779, %v1291
        %v2316 = vadd.f32 %v780, %v1292
        %v2317 = vadd.f32 %v781, %v1293
        %v2318 = vadd.f32 %v782, %v1294
        %v2319 = vadd.f32 %v783, %v1295
        %v2320 = vadd.f32 %v784, %v1296
        %v2321 = vadd.f32 %v785, %v1297
        %v2322 = vadd.f32 %v786, %v1298
        %v2323 = vadd.f32 %v787, %v1299
        %v2324 = vadd.f32 %v788, %v1300
        %v2325 = vadd.f32 %v789, %v1301
        %v2326 = vadd.f32 %v790, %v1302
        %v2327 = vadd.f32 %v791, %v1303
        %v2328 = vadd.f32 %v792, %v1304
        %v2329 = vadd.f32 %v793, %v1305
        %v2330 = vadd.f32 %v794, %v1306
        %v2331 = vadd.f32 %v795, %v1307
        %v2332 = vadd.f32 %v796, %v1308
        %v2333 = vadd.f32 %v797, %v1309
        %v2334 = vadd.f32 %v798, %v1310
        %v2335 = vadd.f32 %v799, %v1311
        %v2336 = vadd.f32 %v800, %v1312
        %v2337 = vadd.f32 %v801, %v1313
        %v2338 = vadd.f32 %v802, %v1314
        %v2339 = vadd.f32 %v803, %v1315
        %v2340 = vadd.f32 %v804, %v1316
        %v2341 = vadd.f32 %v805, %v1317
        %v2342 = vadd.f32 %v806, %v1318
        %v2343 = vadd.f32 %v807, %v1319
        %v2344 = vadd.f32 %v808, %v1320
        %v2345 = vadd.f32 %v809, %v1321
        %v2346 = vadd.f32 %v810, %v1322
        %v2347 = vadd.f32 %v811, %v1323
        %v2348 = vadd.f32 %v812, %v1324
        %v2349 = vadd.f32 %v813, %v1325
        %v2350 = vadd.f32 %v814, %v1326
        %v2351 = vadd.f32 %v815, %v1327
        %v2352 = vadd.f32 %v816, %v1328
        %v2353 = vadd.f32 %v817, %v1329
        %v2354 = vadd.f32 %v818, %v1330
        %v2355 = vadd.f32 %v819, %v1331
        %v2356 = vadd.f32 %v820, %v1332
        %v2357 = vadd.f32 %v821, %v1333
        %v2358 = vadd.f32 %v822, %v1334
        %v2359 = vadd.f32 %v823, %v1335
        %v2360 = vadd.f32 %v824, %v1336
        %v2361 = vadd.f32 %v825, %v1337
        %v2362 = vadd.f32 %v826, %v1338
        %v2363 = vadd.f32 %v827, %v1339
        %v2364 = vadd.f32 %v828, %v1340
        %v2365 = vadd.f32 %v829, %v1341
        %v2366 = vadd.f32 %v830, %v1342
        %v2367 = vadd.f32 %v831, %v1343
        %v2368 = vadd.f32 %v832, %v1344
        %v2369 = vadd.f32 %v833, %v1345
        %v2370 = vadd.f32 %v834, %v1346
        %v2371 = vadd.f32 %v835, %v1347
        %v2372 = vadd.f32 %v836, %v1348
        %v2373 = vadd.f32 %v837, %v1349
        %v2374 = vadd.f32 %v838, %v1350
        %v2375 = vadd.f32 %v839, %v1351
        %v2376 = vadd.f32 %v840, %v1352
        %v2377 = vadd.f32 %v841, %v1353
        %v2378 = vadd.f32 %v842, %v1354
        %v2379 = vadd.f32 %v843, %v1355
        %v2380 = vadd.f32 %v844, %v1356
        %v2381 = vadd.f32 %v845, %v1357
        %v2382 = vadd.f32 %v846, %v1358
        %v2383 = vadd.f32 %v847, %v1359
        %v2384 = vadd.f32 %v848, %v1360
        %v2385 = vadd.f32 %v849, %v1361
        %v2386 = vadd.f32 %v850, %v1362
        %v2387 = vadd.f32 %v851, %v1363
        %v2388 = vadd.f32 %v852, %v1364
        %v2389 = vadd.f32 %v853, %v1365
        %v2390 = vadd.f32 %v854, %v1366
        %v2391 = vadd.f32 %v855, %v1367
        %v2392 = vadd.f32 %v856, %v1368
        %v2393 = vadd.f32 %v857, %v1369
        %v2394 = vadd.f32 %v858, %v1370
        %v2395 = vadd.f32 %v859, %v1371
        %v2396 = vadd.f32 %v860, %v1372
        %v2397 = vadd.f32 %v861, %v1373
        %v2398 = vadd.f32 %v862, %v1374
        %v2399 = vadd.f32 %v863, %v1375
        %v2400 = vadd.f32 %v864, %v1376
        %v2401 = vadd.f32 %v865, %v1377
        %v2402 = vadd.f32 %v866, %v1378
        %v2403 = vadd.f32 %v867, %v1379
        %v2404 = vadd.f32 %v868, %v1380
        %v2405 = vadd.f32 %v869, %v1381
        %v2406 = vadd.f32 %v870, %v1382
        %v2407 = vadd.f32 %v871, %v1383
        %v2408 = vadd.f32 %v872, %v1384
        %v2409 = vadd.f32 %v873, %v1385
        %v2410 = vadd.f32 %v874, %v1386
        %v2411 = vadd.f32 %v875, %v1387
        %v2412 = vadd.f32 %v876, %v1388
        %v2413 = vadd.f32 %v877, %v1389
        %v2414 = vadd.f32 %v878, %v1390
        %v2415 = vadd.f32 %v879, %v1391
        %v2416 = vadd.f32 %v880, %v1392
        %v2417 = vadd.f32 %v881, %v1393
        %v2418 = vadd.f32 %v882, %v1394
        %v2419 = vadd.f32 %v883, %v1395
        %v2420 = vadd.f32 %v884, %v1396
        %v2421 = vadd.f32 %v885, %v1397
        %v2422 = vadd.f32 %v886, %v1398
        %v2423 = vadd.f32 %v887, %v1399
        %v2424 = vadd.f32 %v888, %v1400
        %v2425 = vadd.f32 %v889, %v1401
        %v2426 = vadd.f32 %v890, %v1402
        %v2427 = vadd.f32 %v891, %v1403
        %v2428 = vadd.f32 %v892, %v1404
        %v2429 = vadd.f32 %v893, %v1405
        %v2430 = vadd.f32 %v894, %v1406
        %v2431 = vadd.f32 %v895, %v1407
        %v2432 = vadd.f32 %v896, %v1408
        %v2433 = vadd.f32 %v897, %v1409
        %v2434 = vadd.f32 %v898, %v1410
        %v2435 = vadd.f32 %v899, %v1411
        %v2436 = vadd.f32 %v900, %v1412
        %v2437 = vadd.f32 %v901, %v1413
        %v2438 = vadd.f32 %v902, %v1414
        %v2439 = vadd.f32 %v903, %v1415
        %v2440 = vadd.f32 %v904, %v1416
        %v2441 = vadd.f32 %v905, %v1417
        %v2442 = vadd.f32 %v906, %v1418
        %v2443 = vadd.f32 %v907, %v1419
        %v2444 = vadd.f32 %v908, %v1420
        %v2445 = vadd.f32 %v909, %v1421
        %v2446 = vadd.f32 %v910, %v1422
        %v2447 = vadd.f32 %v911, %v1423
        %v2448 = vadd.f32 %v912, %v1424
        %v2449 = vadd.f32 %v913, %v1425
        %v2450 = vadd.f32 %v914, %v1426
        %v2451 = vadd.f32 %v915, %v1427
        %v2452 = vadd.f32 %v916, %v1428
        %v2453 = vadd.f32 %v917, %v1429
        %v2454 = vadd.f32 %v918, %v1430
        %v2455 = vadd.f32 %v919, %v1431
        %v2456 = vadd.f32 %v920, %v1432
        %v2457 = vadd.f32 %v921, %v1433
        %v2458 = vadd.f32 %v922, %v1434
        %v2459 = vadd.f32 %v923, %v1435
        %v2460 = vadd.f32 %v924, %v1436
        %v2461 = vadd.f32 %v925, %v1437
        %v2462 = vadd.f32 %v926, %v1438
        %v2463 = vadd.f32 %v927, %v1439
        %v2464 = vadd.f32 %v928, %v1440
        %v2465 = vadd.f32 %v929, %v1441
        %v2466 = vadd.f32 %v930, %v1442
        %v2467 = vadd.f32 %v931, %v1443
        %v2468 = vadd.f32 %v932, %v1444
        %v2469 = vadd.f32 %v933, %v1445
        %v2470 = vadd.f32 %v934, %v1446
        %v2471 = vadd.f32 %v935, %v1447
        %v2472 = vadd.f32 %v936, %v1448
        %v2473 = vadd.f32 %v937, %v1449
        %v2474 = vadd.f32 %v938, %v1450
        %v2475 = vadd.f32 %v939, %v1451
        %v2476 = vadd.f32 %v940, %v1452
        %v2477 = vadd.f32 %v941, %v1453
        %v2478 = vadd.f32 %v942, %v1454
        %v2479 = vadd.f32 %v943, %v1455
        %v2480 = vadd.f32 %v944, %v1456
        %v2481 = vadd.f32 %v945, %v1457
        %v2482 = vadd.f32 %v946, %v1458
        %v2483 = vadd.f32 %v947, %v1459
        %v2484 = vadd.f32 %v948, %v1460
        %v2485 = vadd.f32 %v949, %v1461
        %v2486 = vadd.f32 %v950, %v1462
        %v2487 = vadd.f32 %v951, %v1463
        %v2488 = vadd.f32 %v952, %v1464
        %v2489 = vadd.f32 %v953, %v1465
        %v2490 = vadd.f32 %v954, %v1466
        %v2491 = vadd.f32 %v955, %v1467
        %v2492 = vadd.f32 %v956, %v1468
        %v2493 = vadd.f32 %v957, %v1469
        %v2494 = vadd.f32 %v958, %v1470
        %v2495 = vadd.f32 %v959, %v1471
        %v2496 = vadd.f32 %v960, %v1472
        %v2497 = vadd.f32 %v961, %v1473
        %v2498 = vadd.f32 %v962, %v1474
        %v2499 = vadd.f32 %v963, %v1475
        %v2500 = vadd.f32 %v964, %v1476
        %v2501 = vadd.f32 %v965, %v1477
        %v2502 = vadd.f32 %v966, %v1478
        %v2503 = vadd.f32 %v967, %v1479
        %v2504 = vadd.f32 %v968, %v1480
        %v2505 = vadd.f32 %v969, %v1481
        %v2506 = vadd.f32 %v970, %v1482
        %v2507 = vadd.f32 %v971, %v1483
        %v2508 = vadd.f32 %v972, %v1484
        %v2509 = vadd.f32 %v973, %v1485
        %v2510 = vadd.f32 %v974, %v1486
        %v2511 = vadd.f32 %v975, %v1487
        %v2512 = vadd.f32 %v976, %v1488
        %v2513 = vadd.f32 %v977, %v1489
        %v2514 = vadd.f32 %v978, %v1490
        %v2515 = vadd.f32 %v979, %v1491
        %v2516 = vadd.f32 %v980, %v1492
        %v2517 = vadd.f32 %v981, %v1493
        %v2518 = vadd.f32 %v982, %v1494
        %v2519 = vadd.f32 %v983, %v1495
        %v2520 = vadd.f32 %v984, %v1496
        %v2521 = vadd.f32 %v985, %v1497
        %v2522 = vadd.f32 %v986, %v1498
        %v2523 = vadd.f32 %v987, %v1499
        %v2524 = vadd.f32 %v988, %v1500
        %v2525 = vadd.f32 %v989, %v1501
        %v2526 = vadd.f32 %v990, %v1502
        %v2527 = vadd.f32 %v991, %v1503
        %v2528 = vadd.f32 %v992, %v1504
        %v2529 = vadd.f32 %v993, %v1505
        %v2530 = vadd.f32 %v994, %v1506
        %v2531 = vadd.f32 %v995, %v1507
        %v2532 = vadd.f32 %v996, %v1508
        %v2533 = vadd.f32 %v997, %v1509
        %v2534 = vadd.f32 %v998, %v1510
        %v2535 = vadd.f32 %v999, %v1511
        %v2536 = vadd.f32 %v1000, %v1512
        %v2537 = vadd.f32 %v1001, %v1513
        %v2538 = vadd.f32 %v1002, %v1514
        %v2539 = vadd.f32 %v1003, %v1515
        %v2540 = vadd.f32 %v1004, %v1516
        %v2541 = vadd.f32 %v1005, %v1517
        %v2542 = vadd.f32 %v1006, %v1518
        %v2543 = vadd.f32 %v1007, %v1519
        %v2544 = vadd.f32 %v1008, %v1520
        %v2545 = vadd.f32 %v1009, %v1521
        %v2546 = vadd.f32 %v1010, %v1522
        %v2547 = vadd.f32 %v1011, %v1523
        %v2548 = vadd.f32 %v1012, %v1524
        %v2549 = vadd.f32 %v1013, %v1525
        %v2550 = vadd.f32 %v1014, %v1526
        %v2551 = vadd.f32 %v1015, %v1527
        %v2552 = vadd.f32 %v1016, %v1528
        %v2553 = vadd.f32 %v1017, %v1529
        %v2554 = vadd.f32 %v1018, %v1530
        %v2555 = vadd.f32 %v1019, %v1531
        %v2556 = vadd.f32 %v1020, %v1532
        %v2557 = vadd.f32 %v1021, %v1533
        %v2558 = vadd.f32 %v1022, %v1534
        %v2559 = vadd.f32 %v1023, %v1535
        %v2560 = vadd.f32 %v1024, %v1536
        %v2561 = vadd.f32 %v1025, %v1537
        %v2562 = vadd.f32 %v1026, %v1538
        %v2563 = vadd.f32 %v1027, %v1539
        %v2564 = vadd.f32 %v1028, %v1540
        %v2565 = vadd.f32 %v1029, %v1541
        %v2566 = vadd.f32 %v1030, %v1542
        %v2567 = vadd.f32 %v1031, %v1543
        %v2568 = vadd.f32 %v1032, %v1544
        %v2569 = vadd.f32 %v1033, %v1545
        %v2570 = vadd.f32 %v1034, %v1546
        %v2571 = vadd.f32 %v1035, %v1547
        %v2572 = vadd.f32 %v1036, %v1548
        %v2573 = vadd.f32 %v1037, %v1549
        %v2574 = vadd.f32 %v1038, %v1550
        %v2575 = vadd.f32 %v1039, %v1551
        %v2576 = vadd.f32 %v1040, %v1552
        %v2577 = vadd.f32 %v1041, %v1553
        %v2578 = vadd.f32 %v1042, %v1554
        %v2579 = vadd.f32 %v1043, %v1555
        %v2580 = vadd.f32 %v1044, %v1556
        %v2581 = vadd.f32 %v1045, %v1557
        %v2582 = vadd.f32 %v1046, %v1558
        %v2583 = vadd.f32 %v1047, %v1559
        %v2584 = vadd.f32 %v1048, %v1560
        %v2585 = vadd.f32 %v1049, %v1561
        %v2586 = vadd.f32 %v1050, %v1562
        %v2587 = vadd.f32 %v1051, %v1563
        %v2588 = vadd.f32 %v1052, %v1564
        %v2589 = vadd.f32 %v1053, %v1565
        %v2590 = vadd.f32 %v1054, %v1566
        %v2591 = vadd.f32 %v1055, %v1567
        %v2592 = vadd.f32 %v1056, %v1568
        %v2593 = vadd.f32 %v1057, %v1569
        %v2594 = vadd.f32 %v1058, %v1570
        %v2595 = vadd.f32 %v1059, %v1571
        %v2596 = vadd.f32 %v1060, %v1572
        %v2597 = vadd.f32 %v1061, %v1573
        %v2598 = vadd.f32 %v1062, %v1574
        %v2599 = vadd.f32 %v1063, %v1575
        %v2600 = vadd.f32 %v1064, %v1576
        %v2601 = vadd.f32 %v1065, %v1577
        %v2602 = vadd.f32 %v1066, %v1578
        %v2603 = vadd.f32 %v1067, %v1579
        %v2604 = vadd.f32 %v1068, %v1580
        %v2605 = vadd.f32 %v1069, %v1581
        %v2606 = vadd.f32 %v1070, %v1582
        %v2607 = vadd.f32 %v1071, %v1583
        %v2608 = vadd.f32 %v1072, %v1584
        %v2609 = vadd.f32 %v1073, %v1585
        %v2610 = vadd.f32 %v1074, %v1586
        %v2611 = vadd.f32 %v1075, %v1587
        %v2612 = vadd.f32 %v1076, %v1588
        %v2613 = vadd.f32 %v1077, %v1589
        %v2614 = vadd.f32 %v1078, %v1590
        %v2615 = vadd.f32 %v1079, %v1591
        %v2616 = vadd.f32 %v1080, %v1592
        %v2617 = vadd.f32 %v1081, %v1593
        %v2618 = vadd.f32 %v1082, %v1594
        %v2619 = vadd.f32 %v1083, %v1595
        %v2620 = vadd.f32 %v1084, %v1596
        %v2621 = vadd.f32 %v1085, %v1597
        %v2622 = vadd.f32 %v1086, %v1598
        %v2623 = vadd.f32 %v1087, %v1599
        %v2624 = vadd.f32 %v1088, %v1600
        %v2625 = vadd.f32 %v1089, %v1601
        %v2626 = vadd.f32 %v1090, %v1602
        %v2627 = vadd.f32 %v1091, %v1603
        %v2628 = vadd.f32 %v1092, %v1604
        %v2629 = vadd.f32 %v1093, %v1605
        %v2630 = vadd.f32 %v1094, %v1606
        %v2631 = vadd.f32 %v1095, %v1607
        %v2632 = vadd.f32 %v1096, %v1608
        %v2633 = vadd.f32 %v1097, %v1609
        %v2634 = vadd.f32 %v1098, %v1610
        %v2635 = vadd.f32 %v1099, %v1611
        %v2636 = vadd.f32 %v1100, %v1612
        %v2637 = vadd.f32 %v1101, %v1613
        %v2638 = vadd.f32 %v1102, %v1614
        %v2639 = vadd.f32 %v1103, %v1615
        %v2640 = vadd.f32 %v1104, %v1616
        %v2641 = vadd.f32 %v1105, %v1617
        %v2642 = vadd.f32 %v1106, %v1618
        %v2643 = vadd.f32 %v1107, %v1619
        %v2644 = vadd.f32 %v1108, %v1620
        %v2645 = vadd.f32 %v1109, %v1621
        %v2646 = vadd.f32 %v1110, %v1622
        %v2647 = vadd.f32 %v1111, %v1623
        %v2648 = vadd.f32 %v1112, %v1624
        %v2649 = vadd.f32 %v1113, %v1625
        %v2650 = vadd.f32 %v1114, %v1626
        %v2651 = vadd.f32 %v1115, %v1627
        %v2652 = vadd.f32 %v1116, %v1628
        %v2653 = vadd.f32 %v1117, %v1629
        %v2654 = vadd.f32 %v1118, %v1630
        %v2655 = vadd.f32 %v1119, %v1631
        %v2656 = vadd.f32 %v1120, %v1632
        %v2657 = vadd.f32 %v1121, %v1633
        %v2658 = vadd.f32 %v1122, %v1634
        %v2659 = vadd.f32 %v1123, %v1635
        %v2660 = vadd.f32 %v1124, %v1636
        %v2661 = vadd.f32 %v1125, %v1637
        %v2662 = vadd.f32 %v1126, %v1638
        %v2663 = vadd.f32 %v1127, %v1639
        %v2664 = vadd.f32 %v1128, %v1640
        %v2665 = vadd.f32 %v1129, %v1641
        %v2666 = vadd.f32 %v1130, %v1642
        %v2667 = vadd.f32 %v1131, %v1643
        %v2668 = vadd.f32 %v1132, %v1644
        %v2669 = vadd.f32 %v1133, %v1645
        %v2670 = vadd.f32 %v1134, %v1646
        %v2671 = vadd.f32 %v1135, %v1647
        %v2672 = vadd.f32 %v1136, %v1648
        %v2673 = vadd.f32 %v1137, %v1649
        %v2674 = vadd.f32 %v1138, %v1650
        %v2675 = vadd.f32 %v1139, %v1651
        %v2676 = vadd.f32 %v1140, %v1652
        %v2677 = vadd.f32 %v1141, %v1653
        %v2678 = vadd.f32 %v1142, %v1654
        %v2679 = vadd.f32 %v1143, %v1655
        %v2680 = vadd.f32 %v1144, %v1656
        %v2681 = vadd.f32 %v1145, %v1657
        %v2682 = vadd.f32 %v1146, %v1658
        %v2683 = vadd.f32 %v1147, %v1659
        %v2684 = vadd.f32 %v1148, %v1660
        %v2685 = vadd.f32 %v1149, %v1661
        %v2686 = vadd.f32 %v1150, %v1662
        %v2687 = vadd.f32 %v1151, %v1663
        %v2688 = vadd.f32 %v1152, %v1664
        %v2689 = vadd.f32 %v1153, %v1665
        %v2690 = vadd.f32 %v1154, %v1666
        %v2691 = vadd.f32 %v1155, %v1667
        %v2692 = vadd.f32 %v1156, %v1668
        %v2693 = vadd.f32 %v1157, %v1669
        %v2694 = vadd.f32 %v1158, %v1670
        %v2695 = vadd.f32 %v1159, %v1671
        %v2696 = vadd.f32 %v1160, %v1672
        %v2697 = vadd.f32 %v1161, %v1673
        %v2698 = vadd.f32 %v1162, %v1674
        %v2699 = vadd.f32 %v1163, %v1675
        %v2700 = vadd.f32 %v1164, %v1676
        %v2701 = vadd.f32 %v1165, %v1677
        %v2702 = vadd.f32 %v1166, %v1678
        %v2703 = vadd.f32 %v1167, %v1679
        %v2704 = vadd.f32 %v1168, %v1680
        %v2705 = vadd.f32 %v1169, %v1681
        %v2706 = vadd.f32 %v1170, %v1682
        %v2707 = vadd.f32 %v1171, %v1683
        %v2708 = vadd.f32 %v1172, %v1684
        %v2709 = vadd.f32 %v1173, %v1685
        %v2710 = vadd.f32 %v1174, %v1686
        %v2711 = vadd.f32 %v1175, %v1687
        %v2712 = vadd.f32 %v1176, %v1688
        %v2713 = vadd.f32 %v1177, %v1689
        %v2714 = vadd.f32 %v1178, %v1690
        %v2715 = vadd.f32 %v1179, %v1691
        %v2716 = vadd.f32 %v1180, %v1692
        %v2717 = vadd.f32 %v1181, %v1693
        %v2718 = vadd.f32 %v1182, %v1694
        %v2719 = vadd.f32 %v1183, %v1695
        %v2720 = vadd.f32 %v1184, %v1696
        %v2721 = vadd.f32 %v1185, %v1697
        %v2722 = vadd.f32 %v1186, %v1698
        %v2723 = vadd.f32 %v1187, %v1699
        %v2724 = vadd.f32 %v1188, %v1700
        %v2725 = vadd.f32 %v1189, %v1701
        %v2726 = vadd.f32 %v1190, %v1702
        %v2727 = vadd.f32 %v1191, %v1703
        %v2728 = vadd.f32 %v1192, %v1704
        %v2729 = vadd.f32 %v1193, %v1705
        %v2730 = vadd.f32 %v1194, %v1706
        %v2731 = vadd.f32 %v1195, %v1707
        %v2732 = vadd.f32 %v1196, %v1708
        %v2733 = vadd.f32 %v1197, %v1709
        %v2734 = vadd.f32 %v1198, %v1710
        %v2735 = vadd.f32 %v1199, %v1711
        %v2736 = vadd.f32 %v1200, %v1712
        %v2737 = vadd.f32 %v1201, %v1713
        %v2738 = vadd.f32 %v1202, %v1714
        %v2739 = vadd.f32 %v1203, %v1715
        %v2740 = vadd.f32 %v1204, %v1716
        %v2741 = vadd.f32 %v1205, %v1717
        %v2742 = vadd.f32 %v1206, %v1718
        %v2743 = vadd.f32 %v1207, %v1719
        %v2744 = vadd.f32 %v1208, %v1720
        %v2745 = vadd.f32 %v1209, %v1721
        %v2746 = vadd.f32 %v1210, %v1722
        %v2747 = vadd.f32 %v1211, %v1723
        %v2748 = vadd.f32 %v1212, %v1724
        %v2749 = vadd.f32 %v1213, %v1725
        %v2750 = vadd.f32 %v1214, %v1726
        %v2751 = vadd.f32 %v1215, %v1727
        %v2752 = vadd.f32 %v1216, %v1728
        %v2753 = vadd.f32 %v1217, %v1729
        %v2754 = vadd.f32 %v1218, %v1730
        %v2755 = vadd.f32 %v1219, %v1731
        %v2756 = vadd.f32 %v1220, %v1732
        %v2757 = vadd.f32 %v1221, %v1733
        %v2758 = vadd.f32 %v1222, %v1734
        %v2759 = vadd.f32 %v1223, %v1735
        %v2760 = vadd.f32 %v1224, %v1736
        %v2761 = vadd.f32 %v1225, %v1737
        %v2762 = vadd.f32 %v1226, %v1738
        %v2763 = vadd.f32 %v1227, %v1739
        %v2764 = vadd.f32 %v1228, %v1740
        %v2765 = vadd.f32 %v1229, %v1741
        %v2766 = vadd.f32 %v1230, %v1742
        %v2767 = vadd.f32 %v1231, %v1743
        %v2768 = vadd.f32 %v1232, %v1744
        %v2769 = vadd.f32 %v1233, %v1745
        %v2770 = vadd.f32 %v1234, %v1746
        %v2771 = vadd.f32 %v1235, %v1747
        %v2772 = vadd.f32 %v1236, %v1748
        %v2773 = vadd.f32 %v1237, %v1749
        %v2774 = vadd.f32 %v1238, %v1750
        %v2775 = vadd.f32 %v1239, %v1751
        %v2776 = vadd.f32 %v1240, %v1752
        %v2777 = vadd.f32 %v1241, %v1753
        %v2778 = vadd.f32 %v1242, %v1754
        %v2779 = vadd.f32 %v1243, %v1755
        %v2780 = vadd.f32 %v1244, %v1756
        %v2781 = vadd.f32 %v1245, %v1757
        %v2782 = vadd.f32 %v1246, %v1758
        %v2783 = vadd.f32 %v1247, %v1759
        %v2784 = vadd.f32 %v1248, %v1760
        %v2785 = vadd.f32 %v1249, %v1761
        %v2786 = vadd.f32 %v1250, %v1762
        %v2787 = vadd.f32 %v1251, %v1763
        %v2788 = vadd.f32 %v1252, %v1764
        %v2789 = vadd.f32 %v1253, %v1765
        %v2790 = vadd.f32 %v1254, %v1766
        %v2791 = vadd.f32 %v1255, %v1767
        %2792 = vst [vmem:[%s228] sm:$0xff] %v1768
        %2793 = vst [vmem:[%s228 + $0x8] sm:$0xff] %v1769
        %2794 = vst [vmem:[%s228 + $0x10] sm:$0xff] %v1770
        %2795 = vst [vmem:[%s228 + $0x18] sm:$0xff] %v1771
        %2796 = vst [vmem:[%s228 + $0x20] sm:$0xff] %v1772
        %2797 = vst [vmem:[%s228 + $0x28] sm:$0xff] %v1773
        %2798 = vst [vmem:[%s228 + $0x30] sm:$0xff] %v1774
        %2799 = vst [vmem:[%s228 + $0x38] sm:$0xff] %v1775
        %2800 = vst [vmem:[%s228 + $0x40] sm:$0xff] %v1776
        %2801 = vst [vmem:[%s228 + $0x48] sm:$0xff] %v1777
        %2802 = vst [vmem:[%s228 + $0x50] sm:$0xff] %v1778
        %2803 = vst [vmem:[%s228 + $0x58] sm:$0xff] %v1779
        %2804 = vst [vmem:[%s228 + $0x60] sm:$0xff] %v1780
        %2805 = vst [vmem:[%s228 + $0x68] sm:$0xff] %v1781
        %2806 = vst [vmem:[%s228 + $0x70] sm:$0xff] %v1782
        %2807 = vst [vmem:[%s228 + $0x78] sm:$0xff] %v1783
        %2808 = vst [vmem:[%s228 + $0x80] sm:$0xff] %v1784
        %2809 = vst [vmem:[%s228 + $0x88] sm:$0xff] %v1785
        %2810 = vst [vmem:[%s228 + $0x90] sm:$0xff] %v1786
        %2811 = vst [vmem:[%s228 + $0x98] sm:$0xff] %v1787
        %2812 = vst [vmem:[%s228 + $0xa0] sm:$0xff] %v1788
        %2813 = vst [vmem:[%s228 + $0xa8] sm:$0xff] %v1789
        %2814 = vst [vmem:[%s228 + $0xb0] sm:$0xff] %v1790
        %2815 = vst [vmem:[%s228 + $0xb8] sm:$0xff] %v1791
        %2816 = vst [vmem:[%s228 + $0xc0] sm:$0xff] %v1792
        %2817 = vst [vmem:[%s228 + $0xc8] sm:$0xff] %v1793
        %2818 = vst [vmem:[%s228 + $0xd0] sm:$0xff] %v1794
        %2819 = vst [vmem:[%s228 + $0xd8] sm:$0xff] %v1795
        %2820 = vst [vmem:[%s228 + $0xe0] sm:$0xff] %v1796
        %2821 = vst [vmem:[%s228 + $0xe8] sm:$0xff] %v1797
        %2822 = vst [vmem:[%s228 + $0xf0] sm:$0xff] %v1798
        %2823 = vst [vmem:[%s228 + $0xf8] sm:$0xff] %v1799
        %2824 = vst [vmem:[%s228 + $0x100] sm:$0xff] %v1800
        %2825 = vst [vmem:[%s228 + $0x108] sm:$0xff] %v1801
        %2826 = vst [vmem:[%s228 + $0x110] sm:$0xff] %v1802
        %2827 = vst [vmem:[%s228 + $0x118] sm:$0xff] %v1803
        %2828 = vst [vmem:[%s228 + $0x120] sm:$0xff] %v1804
        %2829 = vst [vmem:[%s228 + $0x128] sm:$0xff] %v1805
        %2830 = vst [vmem:[%s228 + $0x130] sm:$0xff] %v1806
        %2831 = vst [vmem:[%s228 + $0x138] sm:$0xff] %v1807
        %2832 = vst [vmem:[%s228 + $0x140] sm:$0xff] %v1808
        %2833 = vst [vmem:[%s228 + $0x148] sm:$0xff] %v1809
        %2834 = vst [vmem:[%s228 + $0x150] sm:$0xff] %v1810
        %2835 = vst [vmem:[%s228 + $0x158] sm:$0xff] %v1811
        %2836 = vst [vmem:[%s228 + $0x160] sm:$0xff] %v1812
        %2837 = vst [vmem:[%s228 + $0x168] sm:$0xff] %v1813
        %2838 = vst [vmem:[%s228 + $0x170] sm:$0xff] %v1814
        %2839 = vst [vmem:[%s228 + $0x178] sm:$0xff] %v1815
        %2840 = vst [vmem:[%s228 + $0x180] sm:$0xff] %v1816
        %2841 = vst [vmem:[%s228 + $0x188] sm:$0xff] %v1817
        %2842 = vst [vmem:[%s228 + $0x190] sm:$0xff] %v1818
        %2843 = vst [vmem:[%s228 + $0x198] sm:$0xff] %v1819
        %2844 = vst [vmem:[%s228 + $0x1a0] sm:$0xff] %v1820
        %2845 = vst [vmem:[%s228 + $0x1a8] sm:$0xff] %v1821
        %2846 = vst [vmem:[%s228 + $0x1b0] sm:$0xff] %v1822
        %2847 = vst [vmem:[%s228 + $0x1b8] sm:$0xff] %v1823
        %2848 = vst [vmem:[%s228 + $0x1c0] sm:$0xff] %v1824
        %2849 = vst [vmem:[%s228 + $0x1c8] sm:$0xff] %v1825
        %2850 = vst [vmem:[%s228 + $0x1d0] sm:$0xff] %v1826
        %2851 = vst [vmem:[%s228 + $0x1d8] sm:$0xff] %v1827
        %2852 = vst [vmem:[%s228 + $0x1e0] sm:$0xff] %v1828
        %2853 = vst [vmem:[%s228 + $0x1e8] sm:$0xff] %v1829
        %2854 = vst [vmem:[%s228 + $0x1f0] sm:$0xff] %v1830
        %2855 = vst [vmem:[%s228 + $0x1f8] sm:$0xff] %v1831
        %2856 = vst [vmem:[%s228 + $0x200] sm:$0xff] %v1832
        %2857 = vst [vmem:[%s228 + $0x208] sm:$0xff] %v1833
        %2858 = vst [vmem:[%s228 + $0x210] sm:$0xff] %v1834
        %2859 = vst [vmem:[%s228 + $0x218] sm:$0xff] %v1835
        %2860 = vst [vmem:[%s228 + $0x220] sm:$0xff] %v1836
        %2861 = vst [vmem:[%s228 + $0x228] sm:$0xff] %v1837
        %2862 = vst [vmem:[%s228 + $0x230] sm:$0xff] %v1838
        %2863 = vst [vmem:[%s228 + $0x238] sm:$0xff] %v1839
        %2864 = vst [vmem:[%s228 + $0x240] sm:$0xff] %v1840
        %2865 = vst [vmem:[%s228 + $0x248] sm:$0xff] %v1841
        %2866 = vst [vmem:[%s228 + $0x250] sm:$0xff] %v1842
        %2867 = vst [vmem:[%s228 + $0x258] sm:$0xff] %v1843
        %2868 = vst [vmem:[%s228 + $0x260] sm:$0xff] %v1844
        %2869 = vst [vmem:[%s228 + $0x268] sm:$0xff] %v1845
        %2870 = vst [vmem:[%s228 + $0x270] sm:$0xff] %v1846
        %2871 = vst [vmem:[%s228 + $0x278] sm:$0xff] %v1847
        %2872 = vst [vmem:[%s228 + $0x280] sm:$0xff] %v1848
        %2873 = vst [vmem:[%s228 + $0x288] sm:$0xff] %v1849
        %2874 = vst [vmem:[%s228 + $0x290] sm:$0xff] %v1850
        %2875 = vst [vmem:[%s228 + $0x298] sm:$0xff] %v1851
        %2876 = vst [vmem:[%s228 + $0x2a0] sm:$0xff] %v1852
        %2877 = vst [vmem:[%s228 + $0x2a8] sm:$0xff] %v1853
        %2878 = vst [vmem:[%s228 + $0x2b0] sm:$0xff] %v1854
        %2879 = vst [vmem:[%s228 + $0x2b8] sm:$0xff] %v1855
        %2880 = vst [vmem:[%s228 + $0x2c0] sm:$0xff] %v1856
        %2881 = vst [vmem:[%s228 + $0x2c8] sm:$0xff] %v1857
        %2882 = vst [vmem:[%s228 + $0x2d0] sm:$0xff] %v1858
        %2883 = vst [vmem:[%s228 + $0x2d8] sm:$0xff] %v1859
        %2884 = vst [vmem:[%s228 + $0x2e0] sm:$0xff] %v1860
        %2885 = vst [vmem:[%s228 + $0x2e8] sm:$0xff] %v1861
        %2886 = vst [vmem:[%s228 + $0x2f0] sm:$0xff] %v1862
        %2887 = vst [vmem:[%s228 + $0x2f8] sm:$0xff] %v1863
        %2888 = vst [vmem:[%s228 + $0x300] sm:$0xff] %v1864
        %2889 = vst [vmem:[%s228 + $0x308] sm:$0xff] %v1865
        %2890 = vst [vmem:[%s228 + $0x310] sm:$0xff] %v1866
        %2891 = vst [vmem:[%s228 + $0x318] sm:$0xff] %v1867
        %2892 = vst [vmem:[%s228 + $0x320] sm:$0xff] %v1868
        %2893 = vst [vmem:[%s228 + $0x328] sm:$0xff] %v1869
        %2894 = vst [vmem:[%s228 + $0x330] sm:$0xff] %v1870
        %2895 = vst [vmem:[%s228 + $0x338] sm:$0xff] %v1871
        %2896 = vst [vmem:[%s228 + $0x340] sm:$0xff] %v1872
        %2897 = vst [vmem:[%s228 + $0x348] sm:$0xff] %v1873
        %2898 = vst [vmem:[%s228 + $0x350] sm:$0xff] %v1874
        %2899 = vst [vmem:[%s228 + $0x358] sm:$0xff] %v1875
        %2900 = vst [vmem:[%s228 + $0x360] sm:$0xff] %v1876
        %2901 = vst [vmem:[%s228 + $0x368] sm:$0xff] %v1877
        %2902 = vst [vmem:[%s228 + $0x370] sm:$0xff] %v1878
        %2903 = vst [vmem:[%s228 + $0x378] sm:$0xff] %v1879
        %2904 = vst [vmem:[%s228 + $0x380] sm:$0xff] %v1880
        %2905 = vst [vmem:[%s228 + $0x388] sm:$0xff] %v1881
        %2906 = vst [vmem:[%s228 + $0x390] sm:$0xff] %v1882
        %2907 = vst [vmem:[%s228 + $0x398] sm:$0xff] %v1883
        %2908 = vst [vmem:[%s228 + $0x3a0] sm:$0xff] %v1884
        %2909 = vst [vmem:[%s228 + $0x3a8] sm:$0xff] %v1885
        %2910 = vst [vmem:[%s228 + $0x3b0] sm:$0xff] %v1886
        %2911 = vst [vmem:[%s228 + $0x3b8] sm:$0xff] %v1887
        %2912 = vst [vmem:[%s228 + $0x3c0] sm:$0xff] %v1888
        %2913 = vst [vmem:[%s228 + $0x3c8] sm:$0xff] %v1889
        %2914 = vst [vmem:[%s228 + $0x3d0] sm:$0xff] %v1890
        %2915 = vst [vmem:[%s228 + $0x3d8] sm:$0xff] %v1891
        %2916 = vst [vmem:[%s228 + $0x3e0] sm:$0xff] %v1892
        %2917 = vst [vmem:[%s228 + $0x3e8] sm:$0xff] %v1893
        %2918 = vst [vmem:[%s228 + $0x3f0] sm:$0xff] %v1894
        %2919 = vst [vmem:[%s228 + $0x3f8] sm:$0xff] %v1895
        %2920 = vst [vmem:[%s228 + $0x400] sm:$0xff] %v1896
        %2921 = vst [vmem:[%s228 + $0x408] sm:$0xff] %v1897
        %2922 = vst [vmem:[%s228 + $0x410] sm:$0xff] %v1898
        %2923 = vst [vmem:[%s228 + $0x418] sm:$0xff] %v1899
        %2924 = vst [vmem:[%s228 + $0x420] sm:$0xff] %v1900
        %2925 = vst [vmem:[%s228 + $0x428] sm:$0xff] %v1901
        %2926 = vst [vmem:[%s228 + $0x430] sm:$0xff] %v1902
        %2927 = vst [vmem:[%s228 + $0x438] sm:$0xff] %v1903
        %2928 = vst [vmem:[%s228 + $0x440] sm:$0xff] %v1904
        %2929 = vst [vmem:[%s228 + $0x448] sm:$0xff] %v1905
        %2930 = vst [vmem:[%s228 + $0x450] sm:$0xff] %v1906
        %2931 = vst [vmem:[%s228 + $0x458] sm:$0xff] %v1907
        %2932 = vst [vmem:[%s228 + $0x460] sm:$0xff] %v1908
        %2933 = vst [vmem:[%s228 + $0x468] sm:$0xff] %v1909
        %2934 = vst [vmem:[%s228 + $0x470] sm:$0xff] %v1910
        %2935 = vst [vmem:[%s228 + $0x478] sm:$0xff] %v1911
        %2936 = vst [vmem:[%s228 + $0x480] sm:$0xff] %v1912
        %2937 = vst [vmem:[%s228 + $0x488] sm:$0xff] %v1913
        %2938 = vst [vmem:[%s228 + $0x490] sm:$0xff] %v1914
        %2939 = vst [vmem:[%s228 + $0x498] sm:$0xff] %v1915
        %2940 = vst [vmem:[%s228 + $0x4a0] sm:$0xff] %v1916
        %2941 = vst [vmem:[%s228 + $0x4a8] sm:$0xff] %v1917
        %2942 = vst [vmem:[%s228 + $0x4b0] sm:$0xff] %v1918
        %2943 = vst [vmem:[%s228 + $0x4b8] sm:$0xff] %v1919
        %2944 = vst [vmem:[%s228 + $0x4c0] sm:$0xff] %v1920
        %2945 = vst [vmem:[%s228 + $0x4c8] sm:$0xff] %v1921
        %2946 = vst [vmem:[%s228 + $0x4d0] sm:$0xff] %v1922
        %2947 = vst [vmem:[%s228 + $0x4d8] sm:$0xff] %v1923
        %2948 = vst [vmem:[%s228 + $0x4e0] sm:$0xff] %v1924
        %2949 = vst [vmem:[%s228 + $0x4e8] sm:$0xff] %v1925
        %2950 = vst [vmem:[%s228 + $0x4f0] sm:$0xff] %v1926
        %2951 = vst [vmem:[%s228 + $0x4f8] sm:$0xff] %v1927
        %2952 = vst [vmem:[%s228 + $0x500] sm:$0xff] %v1928
        %2953 = vst [vmem:[%s228 + $0x508] sm:$0xff] %v1929
        %2954 = vst [vmem:[%s228 + $0x510] sm:$0xff] %v1930
        %2955 = vst [vmem:[%s228 + $0x518] sm:$0xff] %v1931
        %2956 = vst [vmem:[%s228 + $0x520] sm:$0xff] %v1932
        %2957 = vst [vmem:[%s228 + $0x528] sm:$0xff] %v1933
        %2958 = vst [vmem:[%s228 + $0x530] sm:$0xff] %v1934
        %2959 = vst [vmem:[%s228 + $0x538] sm:$0xff] %v1935
        %2960 = vst [vmem:[%s228 + $0x540] sm:$0xff] %v1936
        %2961 = vst [vmem:[%s228 + $0x548] sm:$0xff] %v1937
        %2962 = vst [vmem:[%s228 + $0x550] sm:$0xff] %v1938
        %2963 = vst [vmem:[%s228 + $0x558] sm:$0xff] %v1939
        %2964 = vst [vmem:[%s228 + $0x560] sm:$0xff] %v1940
        %2965 = vst [vmem:[%s228 + $0x568] sm:$0xff] %v1941
        %2966 = vst [vmem:[%s228 + $0x570] sm:$0xff] %v1942
        %2967 = vst [vmem:[%s228 + $0x578] sm:$0xff] %v1943
        %2968 = vst [vmem:[%s228 + $0x580] sm:$0xff] %v1944
        %2969 = vst [vmem:[%s228 + $0x588] sm:$0xff] %v1945
        %2970 = vst [vmem:[%s228 + $0x590] sm:$0xff] %v1946
        %2971 = vst [vmem:[%s228 + $0x598] sm:$0xff] %v1947
        %2972 = vst [vmem:[%s228 + $0x5a0] sm:$0xff] %v1948
        %2973 = vst [vmem:[%s228 + $0x5a8] sm:$0xff] %v1949
        %2974 = vst [vmem:[%s228 + $0x5b0] sm:$0xff] %v1950
        %2975 = vst [vmem:[%s228 + $0x5b8] sm:$0xff] %v1951
        %2976 = vst [vmem:[%s228 + $0x5c0] sm:$0xff] %v1952
        %2977 = vst [vmem:[%s228 + $0x5c8] sm:$0xff] %v1953
        %2978 = vst [vmem:[%s228 + $0x5d0] sm:$0xff] %v1954
        %2979 = vst [vmem:[%s228 + $0x5d8] sm:$0xff] %v1955
        %2980 = vst [vmem:[%s228 + $0x5e0] sm:$0xff] %v1956
        %2981 = vst [vmem:[%s228 + $0x5e8] sm:$0xff] %v1957
        %2982 = vst [vmem:[%s228 + $0x5f0] sm:$0xff] %v1958
        %2983 = vst [vmem:[%s228 + $0x5f8] sm:$0xff] %v1959
        %2984 = vst [vmem:[%s228 + $0x600] sm:$0xff] %v1960
        %2985 = vst [vmem:[%s228 + $0x608] sm:$0xff] %v1961
        %2986 = vst [vmem:[%s228 + $0x610] sm:$0xff] %v1962
        %2987 = vst [vmem:[%s228 + $0x618] sm:$0xff] %v1963
        %2988 = vst [vmem:[%s228 + $0x620] sm:$0xff] %v1964
        %2989 = vst [vmem:[%s228 + $0x628] sm:$0xff] %v1965
        %2990 = vst [vmem:[%s228 + $0x630] sm:$0xff] %v1966
        %2991 = vst [vmem:[%s228 + $0x638] sm:$0xff] %v1967
        %2992 = vst [vmem:[%s228 + $0x640] sm:$0xff] %v1968
        %2993 = vst [vmem:[%s228 + $0x648] sm:$0xff] %v1969
        %2994 = vst [vmem:[%s228 + $0x650] sm:$0xff] %v1970
        %2995 = vst [vmem:[%s228 + $0x658] sm:$0xff] %v1971
        %2996 = vst [vmem:[%s228 + $0x660] sm:$0xff] %v1972
        %2997 = vst [vmem:[%s228 + $0x668] sm:$0xff] %v1973
        %2998 = vst [vmem:[%s228 + $0x670] sm:$0xff] %v1974
        %2999 = vst [vmem:[%s228 + $0x678] sm:$0xff] %v1975
        %3000 = vst [vmem:[%s228 + $0x680] sm:$0xff] %v1976
        %3001 = vst [vmem:[%s228 + $0x688] sm:$0xff] %v1977
        %3002 = vst [vmem:[%s228 + $0x690] sm:$0xff] %v1978
        %3003 = vst [vmem:[%s228 + $0x698] sm:$0xff] %v1979
        %3004 = vst [vmem:[%s228 + $0x6a0] sm:$0xff] %v1980
        %3005 = vst [vmem:[%s228 + $0x6a8] sm:$0xff] %v1981
        %3006 = vst [vmem:[%s228 + $0x6b0] sm:$0xff] %v1982
        %3007 = vst [vmem:[%s228 + $0x6b8] sm:$0xff] %v1983
        %3008 = vst [vmem:[%s228 + $0x6c0] sm:$0xff] %v1984
        %3009 = vst [vmem:[%s228 + $0x6c8] sm:$0xff] %v1985
        %3010 = vst [vmem:[%s228 + $0x6d0] sm:$0xff] %v1986
        %3011 = vst [vmem:[%s228 + $0x6d8] sm:$0xff] %v1987
        %3012 = vst [vmem:[%s228 + $0x6e0] sm:$0xff] %v1988
        %3013 = vst [vmem:[%s228 + $0x6e8] sm:$0xff] %v1989
        %3014 = vst [vmem:[%s228 + $0x6f0] sm:$0xff] %v1990
        %3015 = vst [vmem:[%s228 + $0x6f8] sm:$0xff] %v1991
        %3016 = vst [vmem:[%s228 + $0x700] sm:$0xff] %v1992
        %3017 = vst [vmem:[%s228 + $0x708] sm:$0xff] %v1993
        %3018 = vst [vmem:[%s228 + $0x710] sm:$0xff] %v1994
        %3019 = vst [vmem:[%s228 + $0x718] sm:$0xff] %v1995
        %3020 = vst [vmem:[%s228 + $0x720] sm:$0xff] %v1996
        %3021 = vst [vmem:[%s228 + $0x728] sm:$0xff] %v1997
        %3022 = vst [vmem:[%s228 + $0x730] sm:$0xff] %v1998
        %3023 = vst [vmem:[%s228 + $0x738] sm:$0xff] %v1999
        %3024 = vst [vmem:[%s228 + $0x740] sm:$0xff] %v2000
        %3025 = vst [vmem:[%s228 + $0x748] sm:$0xff] %v2001
        %3026 = vst [vmem:[%s228 + $0x750] sm:$0xff] %v2002
        %3027 = vst [vmem:[%s228 + $0x758] sm:$0xff] %v2003
        %3028 = vst [vmem:[%s228 + $0x760] sm:$0xff] %v2004
        %3029 = vst [vmem:[%s228 + $0x768] sm:$0xff] %v2005
        %3030 = vst [vmem:[%s228 + $0x770] sm:$0xff] %v2006
        %3031 = vst [vmem:[%s228 + $0x778] sm:$0xff] %v2007
        %3032 = vst [vmem:[%s228 + $0x780] sm:$0xff] %v2008
        %3033 = vst [vmem:[%s228 + $0x788] sm:$0xff] %v2009
        %3034 = vst [vmem:[%s228 + $0x790] sm:$0xff] %v2010
        %3035 = vst [vmem:[%s228 + $0x798] sm:$0xff] %v2011
        %3036 = vst [vmem:[%s228 + $0x7a0] sm:$0xff] %v2012
        %3037 = vst [vmem:[%s228 + $0x7a8] sm:$0xff] %v2013
        %3038 = vst [vmem:[%s228 + $0x7b0] sm:$0xff] %v2014
        %3039 = vst [vmem:[%s228 + $0x7b8] sm:$0xff] %v2015
        %3040 = vst [vmem:[%s228 + $0x7c0] sm:$0xff] %v2016
        %3041 = vst [vmem:[%s228 + $0x7c8] sm:$0xff] %v2017
        %3042 = vst [vmem:[%s228 + $0x7d0] sm:$0xff] %v2018
        %3043 = vst [vmem:[%s228 + $0x7d8] sm:$0xff] %v2019
        %3044 = vst [vmem:[%s228 + $0x7e0] sm:$0xff] %v2020
        %3045 = vst [vmem:[%s228 + $0x7e8] sm:$0xff] %v2021
        %3046 = vst [vmem:[%s228 + $0x7f0] sm:$0xff] %v2022
        %3047 = vst [vmem:[%s228 + $0x7f8] sm:$0xff] %v2023
        %3048 = vst [vmem:[%s228 + $0x800] sm:$0xff] %v2024
        %3049 = vst [vmem:[%s228 + $0x808] sm:$0xff] %v2025
        %3050 = vst [vmem:[%s228 + $0x810] sm:$0xff] %v2026
        %3051 = vst [vmem:[%s228 + $0x818] sm:$0xff] %v2027
        %3052 = vst [vmem:[%s228 + $0x820] sm:$0xff] %v2028
        %3053 = vst [vmem:[%s228 + $0x828] sm:$0xff] %v2029
        %3054 = vst [vmem:[%s228 + $0x830] sm:$0xff] %v2030
        %3055 = vst [vmem:[%s228 + $0x838] sm:$0xff] %v2031
        %3056 = vst [vmem:[%s228 + $0x840] sm:$0xff] %v2032
        %3057 = vst [vmem:[%s228 + $0x848] sm:$0xff] %v2033
        %3058 = vst [vmem:[%s228 + $0x850] sm:$0xff] %v2034
        %3059 = vst [vmem:[%s228 + $0x858] sm:$0xff] %v2035
        %3060 = vst [vmem:[%s228 + $0x860] sm:$0xff] %v2036
        %3061 = vst [vmem:[%s228 + $0x868] sm:$0xff] %v2037
        %3062 = vst [vmem:[%s228 + $0x870] sm:$0xff] %v2038
        %3063 = vst [vmem:[%s228 + $0x878] sm:$0xff] %v2039
        %3064 = vst [vmem:[%s228 + $0x880] sm:$0xff] %v2040
        %3065 = vst [vmem:[%s228 + $0x888] sm:$0xff] %v2041
        %3066 = vst [vmem:[%s228 + $0x890] sm:$0xff] %v2042
        %3067 = vst [vmem:[%s228 + $0x898] sm:$0xff] %v2043
        %3068 = vst [vmem:[%s228 + $0x8a0] sm:$0xff] %v2044
        %3069 = vst [vmem:[%s228 + $0x8a8] sm:$0xff] %v2045
        %3070 = vst [vmem:[%s228 + $0x8b0] sm:$0xff] %v2046
        %3071 = vst [vmem:[%s228 + $0x8b8] sm:$0xff] %v2047
        %3072 = vst [vmem:[%s228 + $0x8c0] sm:$0xff] %v2048
        %3073 = vst [vmem:[%s228 + $0x8c8] sm:$0xff] %v2049
        %3074 = vst [vmem:[%s228 + $0x8d0] sm:$0xff] %v2050
        %3075 = vst [vmem:[%s228 + $0x8d8] sm:$0xff] %v2051
        %3076 = vst [vmem:[%s228 + $0x8e0] sm:$0xff] %v2052
        %3077 = vst [vmem:[%s228 + $0x8e8] sm:$0xff] %v2053
        %3078 = vst [vmem:[%s228 + $0x8f0] sm:$0xff] %v2054
        %3079 = vst [vmem:[%s228 + $0x8f8] sm:$0xff] %v2055
        %3080 = vst [vmem:[%s228 + $0x900] sm:$0xff] %v2056
        %3081 = vst [vmem:[%s228 + $0x908] sm:$0xff] %v2057
        %3082 = vst [vmem:[%s228 + $0x910] sm:$0xff] %v2058
        %3083 = vst [vmem:[%s228 + $0x918] sm:$0xff] %v2059
        %3084 = vst [vmem:[%s228 + $0x920] sm:$0xff] %v2060
        %3085 = vst [vmem:[%s228 + $0x928] sm:$0xff] %v2061
        %3086 = vst [vmem:[%s228 + $0x930] sm:$0xff] %v2062
        %3087 = vst [vmem:[%s228 + $0x938] sm:$0xff] %v2063
        %3088 = vst [vmem:[%s228 + $0x940] sm:$0xff] %v2064
        %3089 = vst [vmem:[%s228 + $0x948] sm:$0xff] %v2065
        %3090 = vst [vmem:[%s228 + $0x950] sm:$0xff] %v2066
        %3091 = vst [vmem:[%s228 + $0x958] sm:$0xff] %v2067
        %3092 = vst [vmem:[%s228 + $0x960] sm:$0xff] %v2068
        %3093 = vst [vmem:[%s228 + $0x968] sm:$0xff] %v2069
        %3094 = vst [vmem:[%s228 + $0x970] sm:$0xff] %v2070
        %3095 = vst [vmem:[%s228 + $0x978] sm:$0xff] %v2071
        %3096 = vst [vmem:[%s228 + $0x980] sm:$0xff] %v2072
        %3097 = vst [vmem:[%s228 + $0x988] sm:$0xff] %v2073
        %3098 = vst [vmem:[%s228 + $0x990] sm:$0xff] %v2074
        %3099 = vst [vmem:[%s228 + $0x998] sm:$0xff] %v2075
        %3100 = vst [vmem:[%s228 + $0x9a0] sm:$0xff] %v2076
        %3101 = vst [vmem:[%s228 + $0x9a8] sm:$0xff] %v2077
        %3102 = vst [vmem:[%s228 + $0x9b0] sm:$0xff] %v2078
        %3103 = vst [vmem:[%s228 + $0x9b8] sm:$0xff] %v2079
        %3104 = vst [vmem:[%s228 + $0x9c0] sm:$0xff] %v2080
        %3105 = vst [vmem:[%s228 + $0x9c8] sm:$0xff] %v2081
        %3106 = vst [vmem:[%s228 + $0x9d0] sm:$0xff] %v2082
        %3107 = vst [vmem:[%s228 + $0x9d8] sm:$0xff] %v2083
        %3108 = vst [vmem:[%s228 + $0x9e0] sm:$0xff] %v2084
        %3109 = vst [vmem:[%s228 + $0x9e8] sm:$0xff] %v2085
        %3110 = vst [vmem:[%s228 + $0x9f0] sm:$0xff] %v2086
        %3111 = vst [vmem:[%s228 + $0x9f8] sm:$0xff] %v2087
        %3112 = vst [vmem:[%s228 + $0xa00] sm:$0xff] %v2088
        %3113 = vst [vmem:[%s228 + $0xa08] sm:$0xff] %v2089
        %3114 = vst [vmem:[%s228 + $0xa10] sm:$0xff] %v2090
        %3115 = vst [vmem:[%s228 + $0xa18] sm:$0xff] %v2091
        %3116 = vst [vmem:[%s228 + $0xa20] sm:$0xff] %v2092
        %3117 = vst [vmem:[%s228 + $0xa28] sm:$0xff] %v2093
        %3118 = vst [vmem:[%s228 + $0xa30] sm:$0xff] %v2094
        %3119 = vst [vmem:[%s228 + $0xa38] sm:$0xff] %v2095
        %3120 = vst [vmem:[%s228 + $0xa40] sm:$0xff] %v2096
        %3121 = vst [vmem:[%s228 + $0xa48] sm:$0xff] %v2097
        %3122 = vst [vmem:[%s228 + $0xa50] sm:$0xff] %v2098
        %3123 = vst [vmem:[%s228 + $0xa58] sm:$0xff] %v2099
        %3124 = vst [vmem:[%s228 + $0xa60] sm:$0xff] %v2100
        %3125 = vst [vmem:[%s228 + $0xa68] sm:$0xff] %v2101
        %3126 = vst [vmem:[%s228 + $0xa70] sm:$0xff] %v2102
        %3127 = vst [vmem:[%s228 + $0xa78] sm:$0xff] %v2103
        %3128 = vst [vmem:[%s228 + $0xa80] sm:$0xff] %v2104
        %3129 = vst [vmem:[%s228 + $0xa88] sm:$0xff] %v2105
        %3130 = vst [vmem:[%s228 + $0xa90] sm:$0xff] %v2106
        %3131 = vst [vmem:[%s228 + $0xa98] sm:$0xff] %v2107
        %3132 = vst [vmem:[%s228 + $0xaa0] sm:$0xff] %v2108
        %3133 = vst [vmem:[%s228 + $0xaa8] sm:$0xff] %v2109
        %3134 = vst [vmem:[%s228 + $0xab0] sm:$0xff] %v2110
        %3135 = vst [vmem:[%s228 + $0xab8] sm:$0xff] %v2111
        %3136 = vst [vmem:[%s228 + $0xac0] sm:$0xff] %v2112
        %3137 = vst [vmem:[%s228 + $0xac8] sm:$0xff] %v2113
        %3138 = vst [vmem:[%s228 + $0xad0] sm:$0xff] %v2114
        %3139 = vst [vmem:[%s228 + $0xad8] sm:$0xff] %v2115
        %3140 = vst [vmem:[%s228 + $0xae0] sm:$0xff] %v2116
        %3141 = vst [vmem:[%s228 + $0xae8] sm:$0xff] %v2117
        %3142 = vst [vmem:[%s228 + $0xaf0] sm:$0xff] %v2118
        %3143 = vst [vmem:[%s228 + $0xaf8] sm:$0xff] %v2119
        %3144 = vst [vmem:[%s228 + $0xb00] sm:$0xff] %v2120
        %3145 = vst [vmem:[%s228 + $0xb08] sm:$0xff] %v2121
        %3146 = vst [vmem:[%s228 + $0xb10] sm:$0xff] %v2122
        %3147 = vst [vmem:[%s228 + $0xb18] sm:$0xff] %v2123
        %3148 = vst [vmem:[%s228 + $0xb20] sm:$0xff] %v2124
        %3149 = vst [vmem:[%s228 + $0xb28] sm:$0xff] %v2125
        %3150 = vst [vmem:[%s228 + $0xb30] sm:$0xff] %v2126
        %3151 = vst [vmem:[%s228 + $0xb38] sm:$0xff] %v2127
        %3152 = vst [vmem:[%s228 + $0xb40] sm:$0xff] %v2128
        %3153 = vst [vmem:[%s228 + $0xb48] sm:$0xff] %v2129
        %3154 = vst [vmem:[%s228 + $0xb50] sm:$0xff] %v2130
        %3155 = vst [vmem:[%s228 + $0xb58] sm:$0xff] %v2131
        %3156 = vst [vmem:[%s228 + $0xb60] sm:$0xff] %v2132
        %3157 = vst [vmem:[%s228 + $0xb68] sm:$0xff] %v2133
        %3158 = vst [vmem:[%s228 + $0xb70] sm:$0xff] %v2134
        %3159 = vst [vmem:[%s228 + $0xb78] sm:$0xff] %v2135
        %3160 = vst [vmem:[%s228 + $0xb80] sm:$0xff] %v2136
        %3161 = vst [vmem:[%s228 + $0xb88] sm:$0xff] %v2137
        %3162 = vst [vmem:[%s228 + $0xb90] sm:$0xff] %v2138
        %3163 = vst [vmem:[%s228 + $0xb98] sm:$0xff] %v2139
        %3164 = vst [vmem:[%s228 + $0xba0] sm:$0xff] %v2140
        %3165 = vst [vmem:[%s228 + $0xba8] sm:$0xff] %v2141
        %3166 = vst [vmem:[%s228 + $0xbb0] sm:$0xff] %v2142
        %3167 = vst [vmem:[%s228 + $0xbb8] sm:$0xff] %v2143
        %3168 = vst [vmem:[%s228 + $0xbc0] sm:$0xff] %v2144
        %3169 = vst [vmem:[%s228 + $0xbc8] sm:$0xff] %v2145
        %3170 = vst [vmem:[%s228 + $0xbd0] sm:$0xff] %v2146
        %3171 = vst [vmem:[%s228 + $0xbd8] sm:$0xff] %v2147
        %3172 = vst [vmem:[%s228 + $0xbe0] sm:$0xff] %v2148
        %3173 = vst [vmem:[%s228 + $0xbe8] sm:$0xff] %v2149
        %3174 = vst [vmem:[%s228 + $0xbf0] sm:$0xff] %v2150
        %3175 = vst [vmem:[%s228 + $0xbf8] sm:$0xff] %v2151
        %3176 = vst [vmem:[%s228 + $0xc00] sm:$0xff] %v2152
        %3177 = vst [vmem:[%s228 + $0xc08] sm:$0xff] %v2153
        %3178 = vst [vmem:[%s228 + $0xc10] sm:$0xff] %v2154
        %3179 = vst [vmem:[%s228 + $0xc18] sm:$0xff] %v2155
        %3180 = vst [vmem:[%s228 + $0xc20] sm:$0xff] %v2156
        %3181 = vst [vmem:[%s228 + $0xc28] sm:$0xff] %v2157
        %3182 = vst [vmem:[%s228 + $0xc30] sm:$0xff] %v2158
        %3183 = vst [vmem:[%s228 + $0xc38] sm:$0xff] %v2159
        %3184 = vst [vmem:[%s228 + $0xc40] sm:$0xff] %v2160
        %3185 = vst [vmem:[%s228 + $0xc48] sm:$0xff] %v2161
        %3186 = vst [vmem:[%s228 + $0xc50] sm:$0xff] %v2162
        %3187 = vst [vmem:[%s228 + $0xc58] sm:$0xff] %v2163
        %3188 = vst [vmem:[%s228 + $0xc60] sm:$0xff] %v2164
        %3189 = vst [vmem:[%s228 + $0xc68] sm:$0xff] %v2165
        %3190 = vst [vmem:[%s228 + $0xc70] sm:$0xff] %v2166
        %3191 = vst [vmem:[%s228 + $0xc78] sm:$0xff] %v2167
        %3192 = vst [vmem:[%s228 + $0xc80] sm:$0xff] %v2168
        %3193 = vst [vmem:[%s228 + $0xc88] sm:$0xff] %v2169
        %3194 = vst [vmem:[%s228 + $0xc90] sm:$0xff] %v2170
        %3195 = vst [vmem:[%s228 + $0xc98] sm:$0xff] %v2171
        %3196 = vst [vmem:[%s228 + $0xca0] sm:$0xff] %v2172
        %3197 = vst [vmem:[%s228 + $0xca8] sm:$0xff] %v2173
        %3198 = vst [vmem:[%s228 + $0xcb0] sm:$0xff] %v2174
        %3199 = vst [vmem:[%s228 + $0xcb8] sm:$0xff] %v2175
        %3200 = vst [vmem:[%s228 + $0xcc0] sm:$0xff] %v2176
        %3201 = vst [vmem:[%s228 + $0xcc8] sm:$0xff] %v2177
        %3202 = vst [vmem:[%s228 + $0xcd0] sm:$0xff] %v2178
        %3203 = vst [vmem:[%s228 + $0xcd8] sm:$0xff] %v2179
        %3204 = vst [vmem:[%s228 + $0xce0] sm:$0xff] %v2180
        %3205 = vst [vmem:[%s228 + $0xce8] sm:$0xff] %v2181
        %3206 = vst [vmem:[%s228 + $0xcf0] sm:$0xff] %v2182
        %3207 = vst [vmem:[%s228 + $0xcf8] sm:$0xff] %v2183
        %3208 = vst [vmem:[%s228 + $0xd00] sm:$0xff] %v2184
        %3209 = vst [vmem:[%s228 + $0xd08] sm:$0xff] %v2185
        %3210 = vst [vmem:[%s228 + $0xd10] sm:$0xff] %v2186
        %3211 = vst [vmem:[%s228 + $0xd18] sm:$0xff] %v2187
        %3212 = vst [vmem:[%s228 + $0xd20] sm:$0xff] %v2188
        %3213 = vst [vmem:[%s228 + $0xd28] sm:$0xff] %v2189
        %3214 = vst [vmem:[%s228 + $0xd30] sm:$0xff] %v2190
        %3215 = vst [vmem:[%s228 + $0xd38] sm:$0xff] %v2191
        %3216 = vst [vmem:[%s228 + $0xd40] sm:$0xff] %v2192
        %3217 = vst [vmem:[%s228 + $0xd48] sm:$0xff] %v2193
        %3218 = vst [vmem:[%s228 + $0xd50] sm:$0xff] %v2194
        %3219 = vst [vmem:[%s228 + $0xd58] sm:$0xff] %v2195
        %3220 = vst [vmem:[%s228 + $0xd60] sm:$0xff] %v2196
        %3221 = vst [vmem:[%s228 + $0xd68] sm:$0xff] %v2197
        %3222 = vst [vmem:[%s228 + $0xd70] sm:$0xff] %v2198
        %3223 = vst [vmem:[%s228 + $0xd78] sm:$0xff] %v2199
        %3224 = vst [vmem:[%s228 + $0xd80] sm:$0xff] %v2200
        %3225 = vst [vmem:[%s228 + $0xd88] sm:$0xff] %v2201
        %3226 = vst [vmem:[%s228 + $0xd90] sm:$0xff] %v2202
        %3227 = vst [vmem:[%s228 + $0xd98] sm:$0xff] %v2203
        %3228 = vst [vmem:[%s228 + $0xda0] sm:$0xff] %v2204
        %3229 = vst [vmem:[%s228 + $0xda8] sm:$0xff] %v2205
        %3230 = vst [vmem:[%s228 + $0xdb0] sm:$0xff] %v2206
        %3231 = vst [vmem:[%s228 + $0xdb8] sm:$0xff] %v2207
        %3232 = vst [vmem:[%s228 + $0xdc0] sm:$0xff] %v2208
        %3233 = vst [vmem:[%s228 + $0xdc8] sm:$0xff] %v2209
        %3234 = vst [vmem:[%s228 + $0xdd0] sm:$0xff] %v2210
        %3235 = vst [vmem:[%s228 + $0xdd8] sm:$0xff] %v2211
        %3236 = vst [vmem:[%s228 + $0xde0] sm:$0xff] %v2212
        %3237 = vst [vmem:[%s228 + $0xde8] sm:$0xff] %v2213
        %3238 = vst [vmem:[%s228 + $0xdf0] sm:$0xff] %v2214
        %3239 = vst [vmem:[%s228 + $0xdf8] sm:$0xff] %v2215
        %3240 = vst [vmem:[%s228 + $0xe00] sm:$0xff] %v2216
        %3241 = vst [vmem:[%s228 + $0xe08] sm:$0xff] %v2217
        %3242 = vst [vmem:[%s228 + $0xe10] sm:$0xff] %v2218
        %3243 = vst [vmem:[%s228 + $0xe18] sm:$0xff] %v2219
        %3244 = vst [vmem:[%s228 + $0xe20] sm:$0xff] %v2220
        %3245 = vst [vmem:[%s228 + $0xe28] sm:$0xff] %v2221
        %3246 = vst [vmem:[%s228 + $0xe30] sm:$0xff] %v2222
        %3247 = vst [vmem:[%s228 + $0xe38] sm:$0xff] %v2223
        %3248 = vst [vmem:[%s228 + $0xe40] sm:$0xff] %v2224
        %3249 = vst [vmem:[%s228 + $0xe48] sm:$0xff] %v2225
        %3250 = vst [vmem:[%s228 + $0xe50] sm:$0xff] %v2226
        %3251 = vst [vmem:[%s228 + $0xe58] sm:$0xff] %v2227
        %3252 = vst [vmem:[%s228 + $0xe60] sm:$0xff] %v2228
        %3253 = vst [vmem:[%s228 + $0xe68] sm:$0xff] %v2229
        %3254 = vst [vmem:[%s228 + $0xe70] sm:$0xff] %v2230
        %3255 = vst [vmem:[%s228 + $0xe78] sm:$0xff] %v2231
        %3256 = vst [vmem:[%s228 + $0xe80] sm:$0xff] %v2232
        %3257 = vst [vmem:[%s228 + $0xe88] sm:$0xff] %v2233
        %3258 = vst [vmem:[%s228 + $0xe90] sm:$0xff] %v2234
        %3259 = vst [vmem:[%s228 + $0xe98] sm:$0xff] %v2235
        %3260 = vst [vmem:[%s228 + $0xea0] sm:$0xff] %v2236
        %3261 = vst [vmem:[%s228 + $0xea8] sm:$0xff] %v2237
        %3262 = vst [vmem:[%s228 + $0xeb0] sm:$0xff] %v2238
        %3263 = vst [vmem:[%s228 + $0xeb8] sm:$0xff] %v2239
        %3264 = vst [vmem:[%s228 + $0xec0] sm:$0xff] %v2240
        %3265 = vst [vmem:[%s228 + $0xec8] sm:$0xff] %v2241
        %3266 = vst [vmem:[%s228 + $0xed0] sm:$0xff] %v2242
        %3267 = vst [vmem:[%s228 + $0xed8] sm:$0xff] %v2243
        %3268 = vst [vmem:[%s228 + $0xee0] sm:$0xff] %v2244
        %3269 = vst [vmem:[%s228 + $0xee8] sm:$0xff] %v2245
        %3270 = vst [vmem:[%s228 + $0xef0] sm:$0xff] %v2246
        %3271 = vst [vmem:[%s228 + $0xef8] sm:$0xff] %v2247
        %3272 = vst [vmem:[%s228 + $0xf00] sm:$0xff] %v2248
        %3273 = vst [vmem:[%s228 + $0xf08] sm:$0xff] %v2249
        %3274 = vst [vmem:[%s228 + $0xf10] sm:$0xff] %v2250
        %3275 = vst [vmem:[%s228 + $0xf18] sm:$0xff] %v2251
        %3276 = vst [vmem:[%s228 + $0xf20] sm:$0xff] %v2252
        %3277 = vst [vmem:[%s228 + $0xf28] sm:$0xff] %v2253
        %3278 = vst [vmem:[%s228 + $0xf30] sm:$0xff] %v2254
        %3279 = vst [vmem:[%s228 + $0xf38] sm:$0xff] %v2255
        %3280 = vst [vmem:[%s228 + $0xf40] sm:$0xff] %v2256
        %3281 = vst [vmem:[%s228 + $0xf48] sm:$0xff] %v2257
        %3282 = vst [vmem:[%s228 + $0xf50] sm:$0xff] %v2258
        %3283 = vst [vmem:[%s228 + $0xf58] sm:$0xff] %v2259
        %3284 = vst [vmem:[%s228 + $0xf60] sm:$0xff] %v2260
        %3285 = vst [vmem:[%s228 + $0xf68] sm:$0xff] %v2261
        %3286 = vst [vmem:[%s228 + $0xf70] sm:$0xff] %v2262
        %3287 = vst [vmem:[%s228 + $0xf78] sm:$0xff] %v2263
        %3288 = vst [vmem:[%s228 + $0xf80] sm:$0xff] %v2264
        %3289 = vst [vmem:[%s228 + $0xf88] sm:$0xff] %v2265
        %3290 = vst [vmem:[%s228 + $0xf90] sm:$0xff] %v2266
        %3291 = vst [vmem:[%s228 + $0xf98] sm:$0xff] %v2267
        %3292 = vst [vmem:[%s228 + $0xfa0] sm:$0xff] %v2268
        %3293 = vst [vmem:[%s228 + $0xfa8] sm:$0xff] %v2269
        %3294 = vst [vmem:[%s228 + $0xfb0] sm:$0xff] %v2270
        %3295 = vst [vmem:[%s228 + $0xfb8] sm:$0xff] %v2271
        %3296 = vst [vmem:[%s228 + $0xfc0] sm:$0xff] %v2272
        %3297 = vst [vmem:[%s228 + $0xfc8] sm:$0xff] %v2273
        %3298 = vst [vmem:[%s228 + $0xfd0] sm:$0xff] %v2274
        %3299 = vst [vmem:[%s228 + $0xfd8] sm:$0xff] %v2275
        %3300 = vst [vmem:[%s228 + $0xfe0] sm:$0xff] %v2276
        %3301 = vst [vmem:[%s228 + $0xfe8] sm:$0xff] %v2277
        %3302 = vst [vmem:[%s228 + $0xff0] sm:$0xff] %v2278
        %3303 = vst [vmem:[%s228 + $0xff8] sm:$0xff] %v2279
        %3304 = vst [vmem:[%s228 + $0x1000] sm:$0xff] %v2280
        %3305 = vst [vmem:[%s228 + $0x1008] sm:$0xff] %v2281
        %3306 = vst [vmem:[%s228 + $0x1010] sm:$0xff] %v2282
        %3307 = vst [vmem:[%s228 + $0x1018] sm:$0xff] %v2283
        %3308 = vst [vmem:[%s228 + $0x1020] sm:$0xff] %v2284
        %3309 = vst [vmem:[%s228 + $0x1028] sm:$0xff] %v2285
        %3310 = vst [vmem:[%s228 + $0x1030] sm:$0xff] %v2286
        %3311 = vst [vmem:[%s228 + $0x1038] sm:$0xff] %v2287
        %3312 = vst [vmem:[%s228 + $0x1040] sm:$0xff] %v2288
        %3313 = vst [vmem:[%s228 + $0x1048] sm:$0xff] %v2289
        %3314 = vst [vmem:[%s228 + $0x1050] sm:$0xff] %v2290
        %3315 = vst [vmem:[%s228 + $0x1058] sm:$0xff] %v2291
        %3316 = vst [vmem:[%s228 + $0x1060] sm:$0xff] %v2292
        %3317 = vst [vmem:[%s228 + $0x1068] sm:$0xff] %v2293
        %3318 = vst [vmem:[%s228 + $0x1070] sm:$0xff] %v2294
        %3319 = vst [vmem:[%s228 + $0x1078] sm:$0xff] %v2295
        %3320 = vst [vmem:[%s228 + $0x1080] sm:$0xff] %v2296
        %3321 = vst [vmem:[%s228 + $0x1088] sm:$0xff] %v2297
        %3322 = vst [vmem:[%s228 + $0x1090] sm:$0xff] %v2298
        %3323 = vst [vmem:[%s228 + $0x1098] sm:$0xff] %v2299
        %3324 = vst [vmem:[%s228 + $0x10a0] sm:$0xff] %v2300
        %3325 = vst [vmem:[%s228 + $0x10a8] sm:$0xff] %v2301
        %3326 = vst [vmem:[%s228 + $0x10b0] sm:$0xff] %v2302
        %3327 = vst [vmem:[%s228 + $0x10b8] sm:$0xff] %v2303
        %3328 = vst [vmem:[%s228 + $0x10c0] sm:$0xff] %v2304
        %3329 = vst [vmem:[%s228 + $0x10c8] sm:$0xff] %v2305
        %3330 = vst [vmem:[%s228 + $0x10d0] sm:$0xff] %v2306
        %3331 = vst [vmem:[%s228 + $0x10d8] sm:$0xff] %v2307
        %3332 = vst [vmem:[%s228 + $0x10e0] sm:$0xff] %v2308
        %3333 = vst [vmem:[%s228 + $0x10e8] sm:$0xff] %v2309
        %3334 = vst [vmem:[%s228 + $0x10f0] sm:$0xff] %v2310
        %3335 = vst [vmem:[%s228 + $0x10f8] sm:$0xff] %v2311
        %3336 = vst [vmem:[%s228 + $0x1100] sm:$0xff] %v2312
        %3337 = vst [vmem:[%s228 + $0x1108] sm:$0xff] %v2313
        %3338 = vst [vmem:[%s228 + $0x1110] sm:$0xff] %v2314
        %3339 = vst [vmem:[%s228 + $0x1118] sm:$0xff] %v2315
        %3340 = vst [vmem:[%s228 + $0x1120] sm:$0xff] %v2316
        %3341 = vst [vmem:[%s228 + $0x1128] sm:$0xff] %v2317
        %3342 = vst [vmem:[%s228 + $0x1130] sm:$0xff] %v2318
        %3343 = vst [vmem:[%s228 + $0x1138] sm:$0xff] %v2319
        %3344 = vst [vmem:[%s228 + $0x1140] sm:$0xff] %v2320
        %3345 = vst [vmem:[%s228 + $0x1148] sm:$0xff] %v2321
        %3346 = vst [vmem:[%s228 + $0x1150] sm:$0xff] %v2322
        %3347 = vst [vmem:[%s228 + $0x1158] sm:$0xff] %v2323
        %3348 = vst [vmem:[%s228 + $0x1160] sm:$0xff] %v2324
        %3349 = vst [vmem:[%s228 + $0x1168] sm:$0xff] %v2325
        %3350 = vst [vmem:[%s228 + $0x1170] sm:$0xff] %v2326
        %3351 = vst [vmem:[%s228 + $0x1178] sm:$0xff] %v2327
        %3352 = vst [vmem:[%s228 + $0x1180] sm:$0xff] %v2328
        %3353 = vst [vmem:[%s228 + $0x1188] sm:$0xff] %v2329
        %3354 = vst [vmem:[%s228 + $0x1190] sm:$0xff] %v2330
        %3355 = vst [vmem:[%s228 + $0x1198] sm:$0xff] %v2331
        %3356 = vst [vmem:[%s228 + $0x11a0] sm:$0xff] %v2332
        %3357 = vst [vmem:[%s228 + $0x11a8] sm:$0xff] %v2333
        %3358 = vst [vmem:[%s228 + $0x11b0] sm:$0xff] %v2334
        %3359 = vst [vmem:[%s228 + $0x11b8] sm:$0xff] %v2335
        %3360 = vst [vmem:[%s228 + $0x11c0] sm:$0xff] %v2336
        %3361 = vst [vmem:[%s228 + $0x11c8] sm:$0xff] %v2337
        %3362 = vst [vmem:[%s228 + $0x11d0] sm:$0xff] %v2338
        %3363 = vst [vmem:[%s228 + $0x11d8] sm:$0xff] %v2339
        %3364 = vst [vmem:[%s228 + $0x11e0] sm:$0xff] %v2340
        %3365 = vst [vmem:[%s228 + $0x11e8] sm:$0xff] %v2341
        %3366 = vst [vmem:[%s228 + $0x11f0] sm:$0xff] %v2342
        %3367 = vst [vmem:[%s228 + $0x11f8] sm:$0xff] %v2343
        %3368 = vst [vmem:[%s228 + $0x1200] sm:$0xff] %v2344
        %3369 = vst [vmem:[%s228 + $0x1208] sm:$0xff] %v2345
        %3370 = vst [vmem:[%s228 + $0x1210] sm:$0xff] %v2346
        %3371 = vst [vmem:[%s228 + $0x1218] sm:$0xff] %v2347
        %3372 = vst [vmem:[%s228 + $0x1220] sm:$0xff] %v2348
        %3373 = vst [vmem:[%s228 + $0x1228] sm:$0xff] %v2349
        %3374 = vst [vmem:[%s228 + $0x1230] sm:$0xff] %v2350
        %3375 = vst [vmem:[%s228 + $0x1238] sm:$0xff] %v2351
        %3376 = vst [vmem:[%s228 + $0x1240] sm:$0xff] %v2352
        %3377 = vst [vmem:[%s228 + $0x1248] sm:$0xff] %v2353
        %3378 = vst [vmem:[%s228 + $0x1250] sm:$0xff] %v2354
        %3379 = vst [vmem:[%s228 + $0x1258] sm:$0xff] %v2355
        %3380 = vst [vmem:[%s228 + $0x1260] sm:$0xff] %v2356
        %3381 = vst [vmem:[%s228 + $0x1268] sm:$0xff] %v2357
        %3382 = vst [vmem:[%s228 + $0x1270] sm:$0xff] %v2358
        %3383 = vst [vmem:[%s228 + $0x1278] sm:$0xff] %v2359
        %3384 = vst [vmem:[%s228 + $0x1280] sm:$0xff] %v2360
        %3385 = vst [vmem:[%s228 + $0x1288] sm:$0xff] %v2361
        %3386 = vst [vmem:[%s228 + $0x1290] sm:$0xff] %v2362
        %3387 = vst [vmem:[%s228 + $0x1298] sm:$0xff] %v2363
        %3388 = vst [vmem:[%s228 + $0x12a0] sm:$0xff] %v2364
        %3389 = vst [vmem:[%s228 + $0x12a8] sm:$0xff] %v2365
        %3390 = vst [vmem:[%s228 + $0x12b0] sm:$0xff] %v2366
        %3391 = vst [vmem:[%s228 + $0x12b8] sm:$0xff] %v2367
        %3392 = vst [vmem:[%s228 + $0x12c0] sm:$0xff] %v2368
        %3393 = vst [vmem:[%s228 + $0x12c8] sm:$0xff] %v2369
        %3394 = vst [vmem:[%s228 + $0x12d0] sm:$0xff] %v2370
        %3395 = vst [vmem:[%s228 + $0x12d8] sm:$0xff] %v2371
        %3396 = vst [vmem:[%s228 + $0x12e0] sm:$0xff] %v2372
        %3397 = vst [vmem:[%s228 + $0x12e8] sm:$0xff] %v2373
        %3398 = vst [vmem:[%s228 + $0x12f0] sm:$0xff] %v2374
        %3399 = vst [vmem:[%s228 + $0x12f8] sm:$0xff] %v2375
        %3400 = vst [vmem:[%s228 + $0x1300] sm:$0xff] %v2376
        %3401 = vst [vmem:[%s228 + $0x1308] sm:$0xff] %v2377
        %3402 = vst [vmem:[%s228 + $0x1310] sm:$0xff] %v2378
        %3403 = vst [vmem:[%s228 + $0x1318] sm:$0xff] %v2379
        %3404 = vst [vmem:[%s228 + $0x1320] sm:$0xff] %v2380
        %3405 = vst [vmem:[%s228 + $0x1328] sm:$0xff] %v2381
        %3406 = vst [vmem:[%s228 + $0x1330] sm:$0xff] %v2382
        %3407 = vst [vmem:[%s228 + $0x1338] sm:$0xff] %v2383
        %3408 = vst [vmem:[%s228 + $0x1340] sm:$0xff] %v2384
        %3409 = vst [vmem:[%s228 + $0x1348] sm:$0xff] %v2385
        %3410 = vst [vmem:[%s228 + $0x1350] sm:$0xff] %v2386
        %3411 = vst [vmem:[%s228 + $0x1358] sm:$0xff] %v2387
        %3412 = vst [vmem:[%s228 + $0x1360] sm:$0xff] %v2388
        %3413 = vst [vmem:[%s228 + $0x1368] sm:$0xff] %v2389
        %3414 = vst [vmem:[%s228 + $0x1370] sm:$0xff] %v2390
        %3415 = vst [vmem:[%s228 + $0x1378] sm:$0xff] %v2391
        %3416 = vst [vmem:[%s228 + $0x1380] sm:$0xff] %v2392
        %3417 = vst [vmem:[%s228 + $0x1388] sm:$0xff] %v2393
        %3418 = vst [vmem:[%s228 + $0x1390] sm:$0xff] %v2394
        %3419 = vst [vmem:[%s228 + $0x1398] sm:$0xff] %v2395
        %3420 = vst [vmem:[%s228 + $0x13a0] sm:$0xff] %v2396
        %3421 = vst [vmem:[%s228 + $0x13a8] sm:$0xff] %v2397
        %3422 = vst [vmem:[%s228 + $0x13b0] sm:$0xff] %v2398
        %3423 = vst [vmem:[%s228 + $0x13b8] sm:$0xff] %v2399
        %3424 = vst [vmem:[%s228 + $0x13c0] sm:$0xff] %v2400
        %3425 = vst [vmem:[%s228 + $0x13c8] sm:$0xff] %v2401
        %3426 = vst [vmem:[%s228 + $0x13d0] sm:$0xff] %v2402
        %3427 = vst [vmem:[%s228 + $0x13d8] sm:$0xff] %v2403
        %3428 = vst [vmem:[%s228 + $0x13e0] sm:$0xff] %v2404
        %3429 = vst [vmem:[%s228 + $0x13e8] sm:$0xff] %v2405
        %3430 = vst [vmem:[%s228 + $0x13f0] sm:$0xff] %v2406
        %3431 = vst [vmem:[%s228 + $0x13f8] sm:$0xff] %v2407
        %3432 = vst [vmem:[%s228 + $0x1400] sm:$0xff] %v2408
        %3433 = vst [vmem:[%s228 + $0x1408] sm:$0xff] %v2409
        %3434 = vst [vmem:[%s228 + $0x1410] sm:$0xff] %v2410
        %3435 = vst [vmem:[%s228 + $0x1418] sm:$0xff] %v2411
        %3436 = vst [vmem:[%s228 + $0x1420] sm:$0xff] %v2412
        %3437 = vst [vmem:[%s228 + $0x1428] sm:$0xff] %v2413
        %3438 = vst [vmem:[%s228 + $0x1430] sm:$0xff] %v2414
        %3439 = vst [vmem:[%s228 + $0x1438] sm:$0xff] %v2415
        %3440 = vst [vmem:[%s228 + $0x1440] sm:$0xff] %v2416
        %3441 = vst [vmem:[%s228 + $0x1448] sm:$0xff] %v2417
        %3442 = vst [vmem:[%s228 + $0x1450] sm:$0xff] %v2418
        %3443 = vst [vmem:[%s228 + $0x1458] sm:$0xff] %v2419
        %3444 = vst [vmem:[%s228 + $0x1460] sm:$0xff] %v2420
        %3445 = vst [vmem:[%s228 + $0x1468] sm:$0xff] %v2421
        %3446 = vst [vmem:[%s228 + $0x1470] sm:$0xff] %v2422
        %3447 = vst [vmem:[%s228 + $0x1478] sm:$0xff] %v2423
        %3448 = vst [vmem:[%s228 + $0x1480] sm:$0xff] %v2424
        %3449 = vst [vmem:[%s228 + $0x1488] sm:$0xff] %v2425
        %3450 = vst [vmem:[%s228 + $0x1490] sm:$0xff] %v2426
        %3451 = vst [vmem:[%s228 + $0x1498] sm:$0xff] %v2427
        %3452 = vst [vmem:[%s228 + $0x14a0] sm:$0xff] %v2428
        %3453 = vst [vmem:[%s228 + $0x14a8] sm:$0xff] %v2429
        %3454 = vst [vmem:[%s228 + $0x14b0] sm:$0xff] %v2430
        %3455 = vst [vmem:[%s228 + $0x14b8] sm:$0xff] %v2431
        %3456 = vst [vmem:[%s228 + $0x14c0] sm:$0xff] %v2432
        %3457 = vst [vmem:[%s228 + $0x14c8] sm:$0xff] %v2433
        %3458 = vst [vmem:[%s228 + $0x14d0] sm:$0xff] %v2434
        %3459 = vst [vmem:[%s228 + $0x14d8] sm:$0xff] %v2435
        %3460 = vst [vmem:[%s228 + $0x14e0] sm:$0xff] %v2436
        %3461 = vst [vmem:[%s228 + $0x14e8] sm:$0xff] %v2437
        %3462 = vst [vmem:[%s228 + $0x14f0] sm:$0xff] %v2438
        %3463 = vst [vmem:[%s228 + $0x14f8] sm:$0xff] %v2439
        %3464 = vst [vmem:[%s228 + $0x1500] sm:$0xff] %v2440
        %3465 = vst [vmem:[%s228 + $0x1508] sm:$0xff] %v2441
        %3466 = vst [vmem:[%s228 + $0x1510] sm:$0xff] %v2442
        %3467 = vst [vmem:[%s228 + $0x1518] sm:$0xff] %v2443
        %3468 = vst [vmem:[%s228 + $0x1520] sm:$0xff] %v2444
        %3469 = vst [vmem:[%s228 + $0x1528] sm:$0xff] %v2445
        %3470 = vst [vmem:[%s228 + $0x1530] sm:$0xff] %v2446
        %3471 = vst [vmem:[%s228 + $0x1538] sm:$0xff] %v2447
        %3472 = vst [vmem:[%s228 + $0x1540] sm:$0xff] %v2448
        %3473 = vst [vmem:[%s228 + $0x1548] sm:$0xff] %v2449
        %3474 = vst [vmem:[%s228 + $0x1550] sm:$0xff] %v2450
        %3475 = vst [vmem:[%s228 + $0x1558] sm:$0xff] %v2451
        %3476 = vst [vmem:[%s228 + $0x1560] sm:$0xff] %v2452
        %3477 = vst [vmem:[%s228 + $0x1568] sm:$0xff] %v2453
        %3478 = vst [vmem:[%s228 + $0x1570] sm:$0xff] %v2454
        %3479 = vst [vmem:[%s228 + $0x1578] sm:$0xff] %v2455
        %3480 = vst [vmem:[%s228 + $0x1580] sm:$0xff] %v2456
        %3481 = vst [vmem:[%s228 + $0x1588] sm:$0xff] %v2457
        %3482 = vst [vmem:[%s228 + $0x1590] sm:$0xff] %v2458
        %3483 = vst [vmem:[%s228 + $0x1598] sm:$0xff] %v2459
        %3484 = vst [vmem:[%s228 + $0x15a0] sm:$0xff] %v2460
        %3485 = vst [vmem:[%s228 + $0x15a8] sm:$0xff] %v2461
        %3486 = vst [vmem:[%s228 + $0x15b0] sm:$0xff] %v2462
        %3487 = vst [vmem:[%s228 + $0x15b8] sm:$0xff] %v2463
        %3488 = vst [vmem:[%s228 + $0x15c0] sm:$0xff] %v2464
        %3489 = vst [vmem:[%s228 + $0x15c8] sm:$0xff] %v2465
        %3490 = vst [vmem:[%s228 + $0x15d0] sm:$0xff] %v2466
        %3491 = vst [vmem:[%s228 + $0x15d8] sm:$0xff] %v2467
        %3492 = vst [vmem:[%s228 + $0x15e0] sm:$0xff] %v2468
        %3493 = vst [vmem:[%s228 + $0x15e8] sm:$0xff] %v2469
        %3494 = vst [vmem:[%s228 + $0x15f0] sm:$0xff] %v2470
        %3495 = vst [vmem:[%s228 + $0x15f8] sm:$0xff] %v2471
        %3496 = vst [vmem:[%s228 + $0x1600] sm:$0xff] %v2472
        %3497 = vst [vmem:[%s228 + $0x1608] sm:$0xff] %v2473
        %3498 = vst [vmem:[%s228 + $0x1610] sm:$0xff] %v2474
        %3499 = vst [vmem:[%s228 + $0x1618] sm:$0xff] %v2475
        %3500 = vst [vmem:[%s228 + $0x1620] sm:$0xff] %v2476
        %3501 = vst [vmem:[%s228 + $0x1628] sm:$0xff] %v2477
        %3502 = vst [vmem:[%s228 + $0x1630] sm:$0xff] %v2478
        %3503 = vst [vmem:[%s228 + $0x1638] sm:$0xff] %v2479
        %3504 = vst [vmem:[%s228 + $0x1640] sm:$0xff] %v2480
        %3505 = vst [vmem:[%s228 + $0x1648] sm:$0xff] %v2481
        %3506 = vst [vmem:[%s228 + $0x1650] sm:$0xff] %v2482
        %3507 = vst [vmem:[%s228 + $0x1658] sm:$0xff] %v2483
        %3508 = vst [vmem:[%s228 + $0x1660] sm:$0xff] %v2484
        %3509 = vst [vmem:[%s228 + $0x1668] sm:$0xff] %v2485
        %3510 = vst [vmem:[%s228 + $0x1670] sm:$0xff] %v2486
        %3511 = vst [vmem:[%s228 + $0x1678] sm:$0xff] %v2487
        %3512 = vst [vmem:[%s228 + $0x1680] sm:$0xff] %v2488
        %3513 = vst [vmem:[%s228 + $0x1688] sm:$0xff] %v2489
        %3514 = vst [vmem:[%s228 + $0x1690] sm:$0xff] %v2490
        %3515 = vst [vmem:[%s228 + $0x1698] sm:$0xff] %v2491
        %3516 = vst [vmem:[%s228 + $0x16a0] sm:$0xff] %v2492
        %3517 = vst [vmem:[%s228 + $0x16a8] sm:$0xff] %v2493
        %3518 = vst [vmem:[%s228 + $0x16b0] sm:$0xff] %v2494
        %3519 = vst [vmem:[%s228 + $0x16b8] sm:$0xff] %v2495
        %3520 = vst [vmem:[%s228 + $0x16c0] sm:$0xff] %v2496
        %3521 = vst [vmem:[%s228 + $0x16c8] sm:$0xff] %v2497
        %3522 = vst [vmem:[%s228 + $0x16d0] sm:$0xff] %v2498
        %3523 = vst [vmem:[%s228 + $0x16d8] sm:$0xff] %v2499
        %3524 = vst [vmem:[%s228 + $0x16e0] sm:$0xff] %v2500
        %3525 = vst [vmem:[%s228 + $0x16e8] sm:$0xff] %v2501
        %3526 = vst [vmem:[%s228 + $0x16f0] sm:$0xff] %v2502
        %3527 = vst [vmem:[%s228 + $0x16f8] sm:$0xff] %v2503
        %3528 = vst [vmem:[%s228 + $0x1700] sm:$0xff] %v2504
        %3529 = vst [vmem:[%s228 + $0x1708] sm:$0xff] %v2505
        %3530 = vst [vmem:[%s228 + $0x1710] sm:$0xff] %v2506
        %3531 = vst [vmem:[%s228 + $0x1718] sm:$0xff] %v2507
        %3532 = vst [vmem:[%s228 + $0x1720] sm:$0xff] %v2508
        %3533 = vst [vmem:[%s228 + $0x1728] sm:$0xff] %v2509
        %3534 = vst [vmem:[%s228 + $0x1730] sm:$0xff] %v2510
        %3535 = vst [vmem:[%s228 + $0x1738] sm:$0xff] %v2511
        %3536 = vst [vmem:[%s228 + $0x1740] sm:$0xff] %v2512
        %3537 = vst [vmem:[%s228 + $0x1748] sm:$0xff] %v2513
        %3538 = vst [vmem:[%s228 + $0x1750] sm:$0xff] %v2514
        %3539 = vst [vmem:[%s228 + $0x1758] sm:$0xff] %v2515
        %3540 = vst [vmem:[%s228 + $0x1760] sm:$0xff] %v2516
        %3541 = vst [vmem:[%s228 + $0x1768] sm:$0xff] %v2517
        %3542 = vst [vmem:[%s228 + $0x1770] sm:$0xff] %v2518
        %3543 = vst [vmem:[%s228 + $0x1778] sm:$0xff] %v2519
        %3544 = vst [vmem:[%s228 + $0x1780] sm:$0xff] %v2520
        %3545 = vst [vmem:[%s228 + $0x1788] sm:$0xff] %v2521
        %3546 = vst [vmem:[%s228 + $0x1790] sm:$0xff] %v2522
        %3547 = vst [vmem:[%s228 + $0x1798] sm:$0xff] %v2523
        %3548 = vst [vmem:[%s228 + $0x17a0] sm:$0xff] %v2524
        %3549 = vst [vmem:[%s228 + $0x17a8] sm:$0xff] %v2525
        %3550 = vst [vmem:[%s228 + $0x17b0] sm:$0xff] %v2526
        %3551 = vst [vmem:[%s228 + $0x17b8] sm:$0xff] %v2527
        %3552 = vst [vmem:[%s228 + $0x17c0] sm:$0xff] %v2528
        %3553 = vst [vmem:[%s228 + $0x17c8] sm:$0xff] %v2529
        %3554 = vst [vmem:[%s228 + $0x17d0] sm:$0xff] %v2530
        %3555 = vst [vmem:[%s228 + $0x17d8] sm:$0xff] %v2531
        %3556 = vst [vmem:[%s228 + $0x17e0] sm:$0xff] %v2532
        %3557 = vst [vmem:[%s228 + $0x17e8] sm:$0xff] %v2533
        %3558 = vst [vmem:[%s228 + $0x17f0] sm:$0xff] %v2534
        %3559 = vst [vmem:[%s228 + $0x17f8] sm:$0xff] %v2535
        %3560 = vst [vmem:[%s228 + $0x1800] sm:$0xff] %v2536
        %3561 = vst [vmem:[%s228 + $0x1808] sm:$0xff] %v2537
        %3562 = vst [vmem:[%s228 + $0x1810] sm:$0xff] %v2538
        %3563 = vst [vmem:[%s228 + $0x1818] sm:$0xff] %v2539
        %3564 = vst [vmem:[%s228 + $0x1820] sm:$0xff] %v2540
        %3565 = vst [vmem:[%s228 + $0x1828] sm:$0xff] %v2541
        %3566 = vst [vmem:[%s228 + $0x1830] sm:$0xff] %v2542
        %3567 = vst [vmem:[%s228 + $0x1838] sm:$0xff] %v2543
        %3568 = vst [vmem:[%s228 + $0x1840] sm:$0xff] %v2544
        %3569 = vst [vmem:[%s228 + $0x1848] sm:$0xff] %v2545
        %3570 = vst [vmem:[%s228 + $0x1850] sm:$0xff] %v2546
        %3571 = vst [vmem:[%s228 + $0x1858] sm:$0xff] %v2547
        %3572 = vst [vmem:[%s228 + $0x1860] sm:$0xff] %v2548
        %3573 = vst [vmem:[%s228 + $0x1868] sm:$0xff] %v2549
        %3574 = vst [vmem:[%s228 + $0x1870] sm:$0xff] %v2550
        %3575 = vst [vmem:[%s228 + $0x1878] sm:$0xff] %v2551
        %3576 = vst [vmem:[%s228 + $0x1880] sm:$0xff] %v2552
        %3577 = vst [vmem:[%s228 + $0x1888] sm:$0xff] %v2553
        %3578 = vst [vmem:[%s228 + $0x1890] sm:$0xff] %v2554
        %3579 = vst [vmem:[%s228 + $0x1898] sm:$0xff] %v2555
        %3580 = vst [vmem:[%s228 + $0x18a0] sm:$0xff] %v2556
        %3581 = vst [vmem:[%s228 + $0x18a8] sm:$0xff] %v2557
        %3582 = vst [vmem:[%s228 + $0x18b0] sm:$0xff] %v2558
        %3583 = vst [vmem:[%s228 + $0x18b8] sm:$0xff] %v2559
        %3584 = vst [vmem:[%s228 + $0x18c0] sm:$0xff] %v2560
        %3585 = vst [vmem:[%s228 + $0x18c8] sm:$0xff] %v2561
        %3586 = vst [vmem:[%s228 + $0x18d0] sm:$0xff] %v2562
        %3587 = vst [vmem:[%s228 + $0x18d8] sm:$0xff] %v2563
        %3588 = vst [vmem:[%s228 + $0x18e0] sm:$0xff] %v2564
        %3589 = vst [vmem:[%s228 + $0x18e8] sm:$0xff] %v2565
        %3590 = vst [vmem:[%s228 + $0x18f0] sm:$0xff] %v2566
        %3591 = vst [vmem:[%s228 + $0x18f8] sm:$0xff] %v2567
        %3592 = vst [vmem:[%s228 + $0x1900] sm:$0xff] %v2568
        %3593 = vst [vmem:[%s228 + $0x1908] sm:$0xff] %v2569
        %3594 = vst [vmem:[%s228 + $0x1910] sm:$0xff] %v2570
        %3595 = vst [vmem:[%s228 + $0x1918] sm:$0xff] %v2571
        %3596 = vst [vmem:[%s228 + $0x1920] sm:$0xff] %v2572
        %3597 = vst [vmem:[%s228 + $0x1928] sm:$0xff] %v2573
        %3598 = vst [vmem:[%s228 + $0x1930] sm:$0xff] %v2574
        %3599 = vst [vmem:[%s228 + $0x1938] sm:$0xff] %v2575
        %3600 = vst [vmem:[%s228 + $0x1940] sm:$0xff] %v2576
        %3601 = vst [vmem:[%s228 + $0x1948] sm:$0xff] %v2577
        %3602 = vst [vmem:[%s228 + $0x1950] sm:$0xff] %v2578
        %3603 = vst [vmem:[%s228 + $0x1958] sm:$0xff] %v2579
        %3604 = vst [vmem:[%s228 + $0x1960] sm:$0xff] %v2580
        %3605 = vst [vmem:[%s228 + $0x1968] sm:$0xff] %v2581
        %3606 = vst [vmem:[%s228 + $0x1970] sm:$0xff] %v2582
        %3607 = vst [vmem:[%s228 + $0x1978] sm:$0xff] %v2583
        %3608 = vst [vmem:[%s228 + $0x1980] sm:$0xff] %v2584
        %3609 = vst [vmem:[%s228 + $0x1988] sm:$0xff] %v2585
        %3610 = vst [vmem:[%s228 + $0x1990] sm:$0xff] %v2586
        %3611 = vst [vmem:[%s228 + $0x1998] sm:$0xff] %v2587
        %3612 = vst [vmem:[%s228 + $0x19a0] sm:$0xff] %v2588
        %3613 = vst [vmem:[%s228 + $0x19a8] sm:$0xff] %v2589
        %3614 = vst [vmem:[%s228 + $0x19b0] sm:$0xff] %v2590
        %3615 = vst [vmem:[%s228 + $0x19b8] sm:$0xff] %v2591
        %3616 = vst [vmem:[%s228 + $0x19c0] sm:$0xff] %v2592
        %3617 = vst [vmem:[%s228 + $0x19c8] sm:$0xff] %v2593
        %3618 = vst [vmem:[%s228 + $0x19d0] sm:$0xff] %v2594
        %3619 = vst [vmem:[%s228 + $0x19d8] sm:$0xff] %v2595
        %3620 = vst [vmem:[%s228 + $0x19e0] sm:$0xff] %v2596
        %3621 = vst [vmem:[%s228 + $0x19e8] sm:$0xff] %v2597
        %3622 = vst [vmem:[%s228 + $0x19f0] sm:$0xff] %v2598
        %3623 = vst [vmem:[%s228 + $0x19f8] sm:$0xff] %v2599
        %3624 = vst [vmem:[%s228 + $0x1a00] sm:$0xff] %v2600
        %3625 = vst [vmem:[%s228 + $0x1a08] sm:$0xff] %v2601
        %3626 = vst [vmem:[%s228 + $0x1a10] sm:$0xff] %v2602
        %3627 = vst [vmem:[%s228 + $0x1a18] sm:$0xff] %v2603
        %3628 = vst [vmem:[%s228 + $0x1a20] sm:$0xff] %v2604
        %3629 = vst [vmem:[%s228 + $0x1a28] sm:$0xff] %v2605
        %3630 = vst [vmem:[%s228 + $0x1a30] sm:$0xff] %v2606
        %3631 = vst [vmem:[%s228 + $0x1a38] sm:$0xff] %v2607
        %3632 = vst [vmem:[%s228 + $0x1a40] sm:$0xff] %v2608
        %3633 = vst [vmem:[%s228 + $0x1a48] sm:$0xff] %v2609
        %3634 = vst [vmem:[%s228 + $0x1a50] sm:$0xff] %v2610
        %3635 = vst [vmem:[%s228 + $0x1a58] sm:$0xff] %v2611
        %3636 = vst [vmem:[%s228 + $0x1a60] sm:$0xff] %v2612
        %3637 = vst [vmem:[%s228 + $0x1a68] sm:$0xff] %v2613
        %3638 = vst [vmem:[%s228 + $0x1a70] sm:$0xff] %v2614
        %3639 = vst [vmem:[%s228 + $0x1a78] sm:$0xff] %v2615
        %3640 = vst [vmem:[%s228 + $0x1a80] sm:$0xff] %v2616
        %3641 = vst [vmem:[%s228 + $0x1a88] sm:$0xff] %v2617
        %3642 = vst [vmem:[%s228 + $0x1a90] sm:$0xff] %v2618
        %3643 = vst [vmem:[%s228 + $0x1a98] sm:$0xff] %v2619
        %3644 = vst [vmem:[%s228 + $0x1aa0] sm:$0xff] %v2620
        %3645 = vst [vmem:[%s228 + $0x1aa8] sm:$0xff] %v2621
        %3646 = vst [vmem:[%s228 + $0x1ab0] sm:$0xff] %v2622
        %3647 = vst [vmem:[%s228 + $0x1ab8] sm:$0xff] %v2623
        %3648 = vst [vmem:[%s228 + $0x1ac0] sm:$0xff] %v2624
        %3649 = vst [vmem:[%s228 + $0x1ac8] sm:$0xff] %v2625
        %3650 = vst [vmem:[%s228 + $0x1ad0] sm:$0xff] %v2626
        %3651 = vst [vmem:[%s228 + $0x1ad8] sm:$0xff] %v2627
        %3652 = vst [vmem:[%s228 + $0x1ae0] sm:$0xff] %v2628
        %3653 = vst [vmem:[%s228 + $0x1ae8] sm:$0xff] %v2629
        %3654 = vst [vmem:[%s228 + $0x1af0] sm:$0xff] %v2630
        %3655 = vst [vmem:[%s228 + $0x1af8] sm:$0xff] %v2631
        %3656 = vst [vmem:[%s228 + $0x1b00] sm:$0xff] %v2632
        %3657 = vst [vmem:[%s228 + $0x1b08] sm:$0xff] %v2633
        %3658 = vst [vmem:[%s228 + $0x1b10] sm:$0xff] %v2634
        %3659 = vst [vmem:[%s228 + $0x1b18] sm:$0xff] %v2635
        %3660 = vst [vmem:[%s228 + $0x1b20] sm:$0xff] %v2636
        %3661 = vst [vmem:[%s228 + $0x1b28] sm:$0xff] %v2637
        %3662 = vst [vmem:[%s228 + $0x1b30] sm:$0xff] %v2638
        %3663 = vst [vmem:[%s228 + $0x1b38] sm:$0xff] %v2639
        %3664 = vst [vmem:[%s228 + $0x1b40] sm:$0xff] %v2640
        %3665 = vst [vmem:[%s228 + $0x1b48] sm:$0xff] %v2641
        %3666 = vst [vmem:[%s228 + $0x1b50] sm:$0xff] %v2642
        %3667 = vst [vmem:[%s228 + $0x1b58] sm:$0xff] %v2643
        %3668 = vst [vmem:[%s228 + $0x1b60] sm:$0xff] %v2644
        %3669 = vst [vmem:[%s228 + $0x1b68] sm:$0xff] %v2645
        %3670 = vst [vmem:[%s228 + $0x1b70] sm:$0xff] %v2646
        %3671 = vst [vmem:[%s228 + $0x1b78] sm:$0xff] %v2647
        %3672 = vst [vmem:[%s228 + $0x1b80] sm:$0xff] %v2648
        %3673 = vst [vmem:[%s228 + $0x1b88] sm:$0xff] %v2649
        %3674 = vst [vmem:[%s228 + $0x1b90] sm:$0xff] %v2650
        %3675 = vst [vmem:[%s228 + $0x1b98] sm:$0xff] %v2651
        %3676 = vst [vmem:[%s228 + $0x1ba0] sm:$0xff] %v2652
        %3677 = vst [vmem:[%s228 + $0x1ba8] sm:$0xff] %v2653
        %3678 = vst [vmem:[%s228 + $0x1bb0] sm:$0xff] %v2654
        %3679 = vst [vmem:[%s228 + $0x1bb8] sm:$0xff] %v2655
        %3680 = vst [vmem:[%s228 + $0x1bc0] sm:$0xff] %v2656
        %3681 = vst [vmem:[%s228 + $0x1bc8] sm:$0xff] %v2657
        %3682 = vst [vmem:[%s228 + $0x1bd0] sm:$0xff] %v2658
        %3683 = vst [vmem:[%s228 + $0x1bd8] sm:$0xff] %v2659
        %3684 = vst [vmem:[%s228 + $0x1be0] sm:$0xff] %v2660
        %3685 = vst [vmem:[%s228 + $0x1be8] sm:$0xff] %v2661
        %3686 = vst [vmem:[%s228 + $0x1bf0] sm:$0xff] %v2662
        %3687 = vst [vmem:[%s228 + $0x1bf8] sm:$0xff] %v2663
        %3688 = vst [vmem:[%s228 + $0x1c00] sm:$0xff] %v2664
        %3689 = vst [vmem:[%s228 + $0x1c08] sm:$0xff] %v2665
        %3690 = vst [vmem:[%s228 + $0x1c10] sm:$0xff] %v2666
        %3691 = vst [vmem:[%s228 + $0x1c18] sm:$0xff] %v2667
        %3692 = vst [vmem:[%s228 + $0x1c20] sm:$0xff] %v2668
        %3693 = vst [vmem:[%s228 + $0x1c28] sm:$0xff] %v2669
        %3694 = vst [vmem:[%s228 + $0x1c30] sm:$0xff] %v2670
        %3695 = vst [vmem:[%s228 + $0x1c38] sm:$0xff] %v2671
        %3696 = vst [vmem:[%s228 + $0x1c40] sm:$0xff] %v2672
        %3697 = vst [vmem:[%s228 + $0x1c48] sm:$0xff] %v2673
        %3698 = vst [vmem:[%s228 + $0x1c50] sm:$0xff] %v2674
        %3699 = vst [vmem:[%s228 + $0x1c58] sm:$0xff] %v2675
        %3700 = vst [vmem:[%s228 + $0x1c60] sm:$0xff] %v2676
        %3701 = vst [vmem:[%s228 + $0x1c68] sm:$0xff] %v2677
        %3702 = vst [vmem:[%s228 + $0x1c70] sm:$0xff] %v2678
        %3703 = vst [vmem:[%s228 + $0x1c78] sm:$0xff] %v2679
        %3704 = vst [vmem:[%s228 + $0x1c80] sm:$0xff] %v2680
        %3705 = vst [vmem:[%s228 + $0x1c88] sm:$0xff] %v2681
        %3706 = vst [vmem:[%s228 + $0x1c90] sm:$0xff] %v2682
        %3707 = vst [vmem:[%s228 + $0x1c98] sm:$0xff] %v2683
        %3708 = vst [vmem:[%s228 + $0x1ca0] sm:$0xff] %v2684
        %3709 = vst [vmem:[%s228 + $0x1ca8] sm:$0xff] %v2685
        %3710 = vst [vmem:[%s228 + $0x1cb0] sm:$0xff] %v2686
        %3711 = vst [vmem:[%s228 + $0x1cb8] sm:$0xff] %v2687
        %3712 = vst [vmem:[%s228 + $0x1cc0] sm:$0xff] %v2688
        %3713 = vst [vmem:[%s228 + $0x1cc8] sm:$0xff] %v2689
        %3714 = vst [vmem:[%s228 + $0x1cd0] sm:$0xff] %v2690
        %3715 = vst [vmem:[%s228 + $0x1cd8] sm:$0xff] %v2691
        %3716 = vst [vmem:[%s228 + $0x1ce0] sm:$0xff] %v2692
        %3717 = vst [vmem:[%s228 + $0x1ce8] sm:$0xff] %v2693
        %3718 = vst [vmem:[%s228 + $0x1cf0] sm:$0xff] %v2694
        %3719 = vst [vmem:[%s228 + $0x1cf8] sm:$0xff] %v2695
        %3720 = vst [vmem:[%s228 + $0x1d00] sm:$0xff] %v2696
        %3721 = vst [vmem:[%s228 + $0x1d08] sm:$0xff] %v2697
        %3722 = vst [vmem:[%s228 + $0x1d10] sm:$0xff] %v2698
        %3723 = vst [vmem:[%s228 + $0x1d18] sm:$0xff] %v2699
        %3724 = vst [vmem:[%s228 + $0x1d20] sm:$0xff] %v2700
        %3725 = vst [vmem:[%s228 + $0x1d28] sm:$0xff] %v2701
        %3726 = vst [vmem:[%s228 + $0x1d30] sm:$0xff] %v2702
        %3727 = vst [vmem:[%s228 + $0x1d38] sm:$0xff] %v2703
        %3728 = vst [vmem:[%s228 + $0x1d40] sm:$0xff] %v2704
        %3729 = vst [vmem:[%s228 + $0x1d48] sm:$0xff] %v2705
        %3730 = vst [vmem:[%s228 + $0x1d50] sm:$0xff] %v2706
        %3731 = vst [vmem:[%s228 + $0x1d58] sm:$0xff] %v2707
        %3732 = vst [vmem:[%s228 + $0x1d60] sm:$0xff] %v2708
        %3733 = vst [vmem:[%s228 + $0x1d68] sm:$0xff] %v2709
        %3734 = vst [vmem:[%s228 + $0x1d70] sm:$0xff] %v2710
        %3735 = vst [vmem:[%s228 + $0x1d78] sm:$0xff] %v2711
        %3736 = vst [vmem:[%s228 + $0x1d80] sm:$0xff] %v2712
        %3737 = vst [vmem:[%s228 + $0x1d88] sm:$0xff] %v2713
        %3738 = vst [vmem:[%s228 + $0x1d90] sm:$0xff] %v2714
        %3739 = vst [vmem:[%s228 + $0x1d98] sm:$0xff] %v2715
        %3740 = vst [vmem:[%s228 + $0x1da0] sm:$0xff] %v2716
        %3741 = vst [vmem:[%s228 + $0x1da8] sm:$0xff] %v2717
        %3742 = vst [vmem:[%s228 + $0x1db0] sm:$0xff] %v2718
        %3743 = vst [vmem:[%s228 + $0x1db8] sm:$0xff] %v2719
        %3744 = vst [vmem:[%s228 + $0x1dc0] sm:$0xff] %v2720
        %3745 = vst [vmem:[%s228 + $0x1dc8] sm:$0xff] %v2721
        %3746 = vst [vmem:[%s228 + $0x1dd0] sm:$0xff] %v2722
        %3747 = vst [vmem:[%s228 + $0x1dd8] sm:$0xff] %v2723
        %3748 = vst [vmem:[%s228 + $0x1de0] sm:$0xff] %v2724
        %3749 = vst [vmem:[%s228 + $0x1de8] sm:$0xff] %v2725
        %3750 = vst [vmem:[%s228 + $0x1df0] sm:$0xff] %v2726
        %3751 = vst [vmem:[%s228 + $0x1df8] sm:$0xff] %v2727
        %3752 = vst [vmem:[%s228 + $0x1e00] sm:$0xff] %v2728
        %3753 = vst [vmem:[%s228 + $0x1e08] sm:$0xff] %v2729
        %3754 = vst [vmem:[%s228 + $0x1e10] sm:$0xff] %v2730
        %3755 = vst [vmem:[%s228 + $0x1e18] sm:$0xff] %v2731
        %3756 = vst [vmem:[%s228 + $0x1e20] sm:$0xff] %v2732
        %3757 = vst [vmem:[%s228 + $0x1e28] sm:$0xff] %v2733
        %3758 = vst [vmem:[%s228 + $0x1e30] sm:$0xff] %v2734
        %3759 = vst [vmem:[%s228 + $0x1e38] sm:$0xff] %v2735
        %3760 = vst [vmem:[%s228 + $0x1e40] sm:$0xff] %v2736
        %3761 = vst [vmem:[%s228 + $0x1e48] sm:$0xff] %v2737
        %3762 = vst [vmem:[%s228 + $0x1e50] sm:$0xff] %v2738
        %3763 = vst [vmem:[%s228 + $0x1e58] sm:$0xff] %v2739
        %3764 = vst [vmem:[%s228 + $0x1e60] sm:$0xff] %v2740
        %3765 = vst [vmem:[%s228 + $0x1e68] sm:$0xff] %v2741
        %3766 = vst [vmem:[%s228 + $0x1e70] sm:$0xff] %v2742
        %3767 = vst [vmem:[%s228 + $0x1e78] sm:$0xff] %v2743
        %3768 = vst [vmem:[%s228 + $0x1e80] sm:$0xff] %v2744
        %3769 = vst [vmem:[%s228 + $0x1e88] sm:$0xff] %v2745
        %3770 = vst [vmem:[%s228 + $0x1e90] sm:$0xff] %v2746
        %3771 = vst [vmem:[%s228 + $0x1e98] sm:$0xff] %v2747
        %3772 = vst [vmem:[%s228 + $0x1ea0] sm:$0xff] %v2748
        %3773 = vst [vmem:[%s228 + $0x1ea8] sm:$0xff] %v2749
        %3774 = vst [vmem:[%s228 + $0x1eb0] sm:$0xff] %v2750
        %3775 = vst [vmem:[%s228 + $0x1eb8] sm:$0xff] %v2751
        %3776 = vst [vmem:[%s228 + $0x1ec0] sm:$0xff] %v2752
        %3777 = vst [vmem:[%s228 + $0x1ec8] sm:$0xff] %v2753
        %3778 = vst [vmem:[%s228 + $0x1ed0] sm:$0xff] %v2754
        %3779 = vst [vmem:[%s228 + $0x1ed8] sm:$0xff] %v2755
        %3780 = vst [vmem:[%s228 + $0x1ee0] sm:$0xff] %v2756
        %3781 = vst [vmem:[%s228 + $0x1ee8] sm:$0xff] %v2757
        %3782 = vst [vmem:[%s228 + $0x1ef0] sm:$0xff] %v2758
        %3783 = vst [vmem:[%s228 + $0x1ef8] sm:$0xff] %v2759
        %3784 = vst [vmem:[%s228 + $0x1f00] sm:$0xff] %v2760
        %3785 = vst [vmem:[%s228 + $0x1f08] sm:$0xff] %v2761
        %3786 = vst [vmem:[%s228 + $0x1f10] sm:$0xff] %v2762
        %3787 = vst [vmem:[%s228 + $0x1f18] sm:$0xff] %v2763
        %3788 = vst [vmem:[%s228 + $0x1f20] sm:$0xff] %v2764
        %3789 = vst [vmem:[%s228 + $0x1f28] sm:$0xff] %v2765
        %3790 = vst [vmem:[%s228 + $0x1f30] sm:$0xff] %v2766
        %3791 = vst [vmem:[%s228 + $0x1f38] sm:$0xff] %v2767
        %3792 = vst [vmem:[%s228 + $0x1f40] sm:$0xff] %v2768
        %3793 = vst [vmem:[%s228 + $0x1f48] sm:$0xff] %v2769
        %3794 = vst [vmem:[%s228 + $0x1f50] sm:$0xff] %v2770
        %3795 = vst [vmem:[%s228 + $0x1f58] sm:$0xff] %v2771
        %3796 = vst [vmem:[%s228 + $0x1f60] sm:$0xff] %v2772
        %3797 = vst [vmem:[%s228 + $0x1f68] sm:$0xff] %v2773
        %3798 = vst [vmem:[%s228 + $0x1f70] sm:$0xff] %v2774
        %3799 = vst [vmem:[%s228 + $0x1f78] sm:$0xff] %v2775
        %3800 = vst [vmem:[%s228 + $0x1f80] sm:$0xff] %v2776
        %3801 = vst [vmem:[%s228 + $0x1f88] sm:$0xff] %v2777
        %3802 = vst [vmem:[%s228 + $0x1f90] sm:$0xff] %v2778
        %3803 = vst [vmem:[%s228 + $0x1f98] sm:$0xff] %v2779
        %3804 = vst [vmem:[%s228 + $0x1fa0] sm:$0xff] %v2780
        %3805 = vst [vmem:[%s228 + $0x1fa8] sm:$0xff] %v2781
        %3806 = vst [vmem:[%s228 + $0x1fb0] sm:$0xff] %v2782
        %3807 = vst [vmem:[%s228 + $0x1fb8] sm:$0xff] %v2783
        %3808 = vst [vmem:[%s228 + $0x1fc0] sm:$0xff] %v2784
        %3809 = vst [vmem:[%s228 + $0x1fc8] sm:$0xff] %v2785
        %3810 = vst [vmem:[%s228 + $0x1fd0] sm:$0xff] %v2786
        %3811 = vst [vmem:[%s228 + $0x1fd8] sm:$0xff] %v2787
        %3812 = vst [vmem:[%s228 + $0x1fe0] sm:$0xff] %v2788
        %3813 = vst [vmem:[%s228 + $0x1fe8] sm:$0xff] %v2789
        %3814 = vst [vmem:[%s228 + $0x1ff0] sm:$0xff] %v2790
        %3815 = vst [vmem:[%s228 + $0x1ff8] sm:$0xff] %v2791
        %s3816 = sand.u32 %s82, 1
        %s3817 = scalar_lea.sflag [#allocation4], %s3816
        %s3818 = sand.u32 %s82, 1
        %s3819 = smul.addr %s3818, 8192
        %s3820 = scalar_lea.vmem [#allocation7], %s3819
        // Predicated region
        $region37: #{learned_positional_encoding_3d.1} parent=27 // pred_check
          %p3821 = pneg %p92
        $region38: #{learned_positional_encoding_3d.1} parent=27 // pred_check_branch
          %3823 = sbr.rel (%p3821) target = $region40
        $region39: #{learned_positional_encoding_3d.1} parent=27 // pred_region
          #allocation11 [shape = 'u32[6]{0}', space=smem, size = 0x18, scoped, tag = 'DMA stride descriptor']
          %s3824 = smul.u32 128, %s22
          %s3826 = ssub.s32 131072, 131072
          %3827 = vsyncadd %s3817, %s3826
          %s3828 = smul.addr %s3824, 4
          %s3829 = smul.addr %s3828, 128
          %s3830 = scalar_lea.hbm %s2, %s3829
          %s3832 = sshll.u32 1, 14
          %s3833 = sxor.u32 4294967295, %s3832
          %s3836 = sshll.u32 7, 18
          %s3837 = sxor.u32 4294967295, %s3836
          %s3838 = sand.u32 0, %s3837
          %s3840 = sor.u32 %s3838, 0
          %s3842 = sshll.u32 3, 24
          %s3843 = sxor.u32 4294967295, %s3842
          %s3844 = sand.u32 %s3840, %s3843
          %s3846 = sor.u32 %s3844, 0
          %s3847 = sshll.u32 %s3820, 4
          %s3848 = int_to_ptr.vmem [resolvable:$true] %s3847
          %3854 = sst [smem:[#allocation11]] 65536
          %s3855 = scalar_lea.smem [#allocation11], 1
          %3856 = sst [smem:[%s3855]] 262144
          %s3857 = scalar_lea.smem [#allocation11], 2
          %3858 = sst [smem:[%s3857]] 128
          %s3859 = scalar_lea.smem [#allocation11], 3
          %3860 = sst [smem:[%s3859]] 512
          %s3861 = scalar_lea.smem [#allocation11], 4
          %3862 = sst [smem:[%s3861]] 512
          %s3863 = scalar_lea.smem [#allocation11], 5
          %3864 = sst [smem:[%s3863]] 32
          %3866 = dma.general %s3848, 131072, %s3830, %s3817, [#allocation10], [#allocation11], %s3846, 0
        $region40: #{learned_positional_encoding_3d.1} parent=27 // pred_fallthru
          _
      $region28: #{learned_positional_encoding_3d.1} parent=5 // pred_fallthru
        _
      %p3867 = scmp.le.s32.totalorder 2, %s17
      // Predicated region
      $region41: #{learned_positional_encoding_3d.1} parent=5 // pred_check
        %p3868 = pneg %p3867
      $region42: #{learned_positional_encoding_3d.1} parent=5 // pred_check_branch
        %3870 = sbr.rel (%p3868) target = $region44
      $region43: #{learned_positional_encoding_3d.1} parent=5 // pred_region
        %s3871 = ssub.s32 %s17, 2
        // Predicated region
        $region45: #{learned_positional_encoding_3d.1} parent=43 // pred_check
          %p3872 = pneg %p98
        $region46: #{learned_positional_encoding_3d.1} parent=43 // pred_check_branch
          %3874 = sbr.rel (%p3872) target = $region48
        $region47: #{learned_positional_encoding_3d.1} parent=43 // pred_region
          %s3875 = sand.u32 %s83, 1
          %s3876 = scalar_lea.sflag [#allocation4], %s3875
          %s3877 = sand.u32 %s83, 1
          %s3878 = smul.addr %s3877, 8192
          %s3879 = scalar_lea.vmem [#allocation7], %s3878
          %3880 = dma.done %s3876, 131072
        $region48: #{learned_positional_encoding_3d.1} parent=43 // pred_fallthru
          _
      $region44: #{learned_positional_encoding_3d.1} parent=5 // pred_fallthru
        _
    $region6: #{learned_positional_encoding_3d.1} parent=1 // loop_footer
      %s21 = sadd.s32 1, %s17
    $region7: #{learned_positional_encoding_3d.1} parent=1 // loop_footer_branch
      %16 = sbr.rel target = $region3
    $region8: #{learned_positional_encoding_3d.1} parent=1 // loop_exit
      _
    %3881 = vsyncpa [#allocation3], 1
    %s3882 = scalar_lea.sflag [#allocation3], 1
    %3883 = vsyncpa %s3882, 1
    %3884 = vsyncpa [#allocation6], 1
    %s3885 = scalar_lea.sflag [#allocation6], 1
    %3886 = vsyncpa %s3885, 1
    %3887 = vsyncpa [#allocation4], 1
    %s3888 = scalar_lea.sflag [#allocation4], 1
    %3889 = vsyncpa %s3888, 1

</llo_original>
